<compile_context>
chip_gen: v5e
topology: v5e:2x2
jax: 0.10.0
libtpu: 0.0.40
codegen_flags: <defaults>
</compile_context>

<pallas_src>
import functools

import numpy as np
import jax
import jax.numpy as jnp
from jax.experimental import pallas as pl
from jax.experimental.pallas import tpu as pltpu


def _rotate_kernel(head_ref, rel_ref, tail_ref, out_ref, *,
                   gamma, inv_scale, half):
    """Per-tile RotatE score: out[:, 0] = gamma - sum_k |h.r - t|_k."""
    f32 = jnp.float32
    h = head_ref[...].astype(f32)
    t = tail_ref[...].astype(f32)
    phase = rel_ref[...].astype(f32) * inv_scale
    re_r = jnp.cos(phase)
    im_r = jnp.sin(phase)
    # Lane-aligned static slices (free when half % 128 == 0).
    re_h, im_h = h[:, :half], h[:, half:]
    re_t, im_t = t[:, :half], t[:, half:]
    re_s = re_h * re_r - im_h * im_r - re_t
    im_s = re_h * im_r + im_h * re_r - im_t
    norm = jnp.sqrt(re_s * re_s + im_s * im_s)
    # keepdims cross-lane reduce -> (block_e, 1) column, no relayout needed.
    # TODO(synk): if a bundle dump shows VALU/XLU saturation (bf16 on v7x),
    # route this reduce through the idle MXU (dot with a ones vector).
    score = gamma - jnp.sum(norm, axis=-1, keepdims=True)
    out_ref[...] = score.astype(out_ref.dtype)


def _vmem_sizes():
    """(compiler vmem_limit_bytes, user-buffer tile budget), generation-aware."""
    try:
        cap = int(pltpu.get_tpu_info().vmem_capacity_bytes)
    except Exception:
        cap = 64 * 1024 * 1024          # conservative: v7x has 64 MiB per TC
    limit = min(cap // 2, 32 * 1024 * 1024)   # headroom for compiler scratch
    return limit, limit // 2


def _pick_block_e(E, D, itemsize, budget_bytes, *, max_block=1024, min_steps=8):
    """Largest row tile (<= max_block) that fits the budget with >= min_steps
    grid steps when the batch is large enough."""
    half = D // 2
    in_bytes = 2 * (2 * D + half) * itemsize   # head + tail + rel, double-buffered
    f32_tmp = 8 * half * 4                     # upcast + intermediate f32 temporaries
    per_row = in_bytes + f32_tmp
    be = max(1, min(max_block, budget_bytes // per_row, E))
    if E >= min_steps * 128:
        be = min(be, -(-E // min_steps))       # ensure >= min_steps grid steps
    if be >= E:
        return E                               # single block covers the batch
    return max(128, (be // 128) * 128)


def rotate_edge_score(head, rel, tail, gamma, emb_init, *, block_e=None):
    """Pallas implementation of RotatEScore.edge_func for a batch of edges.

    head, tail: (E, D) with [:, :D//2]=real, [:, D//2:]=imag.
    rel:        (E, D//2) phases.
    Returns (E,) f32 scores = gamma - sum |h.r - t|.
    """
    E, D = head.shape
    assert D % 2 == 0
    half = D // 2
    assert rel.shape == (E, half)
    assert tail.shape == (E, D)

    vmem_limit, budget = _vmem_sizes()
    if block_e is None:
        block_e = _pick_block_e(E, D, jnp.dtype(head.dtype).itemsize, budget)
    block_e = min(block_e, E)

    inv_scale = float(np.pi / emb_init)
    kernel = functools.partial(_rotate_kernel, gamma=float(gamma),
                               inv_scale=inv_scale, half=half)

    out = pl.pallas_call(
        kernel,
        out_shape=jax.ShapeDtypeStruct((E, 1), jnp.float32),
        grid_spec=pl.GridSpec(
            grid=(pl.cdiv(E, block_e),),
            in_specs=[pl.BlockSpec((block_e, D), lambda i: (i, 0)),
                      pl.BlockSpec((block_e, half), lambda i: (i, 0)),
                      pl.BlockSpec((block_e, D), lambda i: (i, 0))],
            out_specs=pl.BlockSpec((block_e, 1), lambda i: (i, 0))),
        compiler_params=pltpu.CompilerParams(
            dimension_semantics=("parallel",),
            vmem_limit_bytes=vmem_limit),
    )(head, rel, tail)
    return out[:, 0]


def rotate_edge_score_ref(head, rel, tail, gamma, emb_init):
    """Pure-JAX reference mirroring the PyTorch edge_func exactly."""
    half = head.shape[-1] // 2
    re_h, im_h = head[:, :half], head[:, half:]
    re_t, im_t = tail[:, :half], tail[:, half:]
    phase = rel / (emb_init / np.pi)
    re_r, im_r = jnp.cos(phase), jnp.sin(phase)
    re_s = re_h * re_r - im_h * im_r - re_t
    im_s = re_h * im_r + im_h * re_r - im_t
    norm = jnp.sqrt(re_s ** 2 + im_s ** 2)
    return gamma - norm.sum(-1)


if __name__ == "__main__":
    # Small synthetic problem: 1024 edges, hidden_dim = 256 (128 complex dims),
    # relation embedding dim = 128.
    E, D = 1024, 256
    gamma = 12.0
    emb_init = (gamma + 2.0) / D   # standard DGL-KE initialization scale

    key = jax.random.PRNGKey(0)
    kh, kr, kt = jax.random.split(key, 3)
    head = jax.random.normal(kh, (E, D), dtype=jnp.float32) * emb_init
    rel = jax.random.normal(kr, (E, D // 2), dtype=jnp.float32) * emb_init
    tail = jax.random.normal(kt, (E, D), dtype=jnp.float32) * emb_init

    # f32 path (multi-step grid: 8 tiles of 128 rows).
    out = jax.block_until_ready(rotate_edge_score(head, rel, tail, gamma, emb_init))
    ref = rotate_edge_score_ref(head, rel, tail, gamma, emb_init)
    np.testing.assert_allclose(np.asarray(out), np.asarray(ref),
                               rtol=1e-5, atol=1e-5)

    # bf16 inputs (halves HBM traffic on v6e/v7x); kernel upcasts to f32 inside.
    hb, rb, tb = (x.astype(jnp.bfloat16) for x in (head, rel, tail))
    out_bf = jax.block_until_ready(rotate_edge_score(hb, rb, tb, gamma, emb_init))
    ref_bf = rotate_edge_score_ref(hb.astype(jnp.float32), rb.astype(jnp.float32),
                                   tb.astype(jnp.float32), gamma, emb_init)
    np.testing.assert_allclose(np.asarray(out_bf), np.asarray(ref_bf),
                               rtol=1e-4, atol=1e-4)

    # Ragged batch size (no divisibility requirement on E).
    E2 = 1000
    out_r = jax.block_until_ready(
        rotate_edge_score(head[:E2], rel[:E2], tail[:E2], gamma, emb_init))
    np.testing.assert_allclose(np.asarray(out_r), np.asarray(ref[:E2]),
                               rtol=1e-5, atol=1e-5)

    print("KERNEL_OK")
</pallas_src>

<mosaic_0001>
module attributes {stable_mosaic.version = 11 : i64} {
  func.func @_rotate_kernel(%arg0: i32, %arg1: memref<128x256xf32, #tpu.memory_space<vmem>>, %arg2: memref<128x128xf32, #tpu.memory_space<vmem>>, %arg3: memref<128x256xf32, #tpu.memory_space<vmem>>, %arg4: memref<128x1xf32, #tpu.memory_space<vmem>>) attributes {dimension_semantics = [#tpu.dimension_semantics<parallel>], iteration_bounds = array<i64: 8>, scalar_prefetch = 0 : i64, scratch_operands = 0 : i64, tpu.core_type = #tpu.core_type<tc>, window_params = [{transform_indices = @transform_0, window_bounds = array<i64: 128, 256>}, {transform_indices = @transform_1, window_bounds = array<i64: 128, 128>}, {transform_indices = @transform_2, window_bounds = array<i64: 128, 256>}, {transform_indices = @transform_3, window_bounds = array<i64: 128, 1>}]} {
    %c0 = arith.constant 0 : index
    %c0_0 = arith.constant 0 : index
    %0 = vector.load %arg1[%c0, %c0_0] : memref<128x256xf32, #tpu.memory_space<vmem>>, vector<128x256xf32>
    %c0_1 = arith.constant 0 : index
    %c0_2 = arith.constant 0 : index
    %1 = vector.load %arg3[%c0_1, %c0_2] : memref<128x256xf32, #tpu.memory_space<vmem>>, vector<128x256xf32>
    %c0_3 = arith.constant 0 : index
    %c0_4 = arith.constant 0 : index
    %2 = vector.load %arg2[%c0_3, %c0_4] : memref<128x128xf32, #tpu.memory_space<vmem>>, vector<128x128xf32>
    %cst = arith.constant 57.4462662 : f32
    %3 = vector.broadcast %cst : f32 to vector<128x128xf32>
    %4 = arith.mulf %2, %3 : vector<128x128xf32>
    %5 = math.cos %4 : vector<128x128xf32>
    %6 = math.sin %4 : vector<128x128xf32>
    %7 = vector.extract_strided_slice %0 {offsets = [0, 0], sizes = [128, 128], strides = [1, 1]} : vector<128x256xf32> to vector<128x128xf32>
    %8 = vector.extract_strided_slice %0 {offsets = [0, 128], sizes = [128, 128], strides = [1, 1]} : vector<128x256xf32> to vector<128x128xf32>
    %9 = vector.extract_strided_slice %1 {offsets = [0, 0], sizes = [128, 128], strides = [1, 1]} : vector<128x256xf32> to vector<128x128xf32>
    %10 = vector.extract_strided_slice %1 {offsets = [0, 128], sizes = [128, 128], strides = [1, 1]} : vector<128x256xf32> to vector<128x128xf32>
    %11 = arith.mulf %7, %5 : vector<128x128xf32>
    %12 = arith.mulf %8, %6 : vector<128x128xf32>
    %13 = arith.subf %11, %12 : vector<128x128xf32>
    %14 = arith.subf %13, %9 : vector<128x128xf32>
    %15 = arith.mulf %7, %6 : vector<128x128xf32>
    %16 = arith.mulf %8, %5 : vector<128x128xf32>
    %17 = arith.addf %15, %16 : vector<128x128xf32>
    %18 = arith.subf %17, %10 : vector<128x128xf32>
    %19 = arith.mulf %14, %14 : vector<128x128xf32>
    %20 = arith.mulf %18, %18 : vector<128x128xf32>
    %21 = arith.addf %19, %20 : vector<128x128xf32>
    %22 = math.sqrt %21 : vector<128x128xf32>
    %cst_5 = arith.constant dense<0.000000e+00> : vector<128xf32>
    %23 = vector.multi_reduction <add>, %22, %cst_5 [1] : vector<128x128xf32> to vector<128xf32>
    %24 = vector.shape_cast %23 : vector<128xf32> to vector<128x1xf32>
    %cst_6 = arith.constant 1.200000e+01 : f32
    %25 = vector.broadcast %cst_6 : f32 to vector<128x1xf32>
    %26 = arith.subf %25, %24 : vector<128x1xf32>
    %c0_7 = arith.constant 0 : index
    %c0_8 = arith.constant 0 : index
    %27 = vector.load %arg4[%c0_7, %c0_8] : memref<128x1xf32, #tpu.memory_space<vmem>>, vector<128x1xf32>
    tpu.vector_store %arg4[%c0_7, %c0_8], %26 {strides = array<i32>} : memref<128x1xf32, #tpu.memory_space<vmem>>, vector<128x1xf32>,
    return
  }
  func.func @transform_0(%arg0: i32) -> (i32, i32) {
    %c0_i32 = arith.constant 0 : i32
    %c0_i32_0 = arith.constant 0 : i32
    return %arg0, %c0_i32 : i32, i32
  }
  func.func @transform_1(%arg0: i32) -> (i32, i32) {
    %c0_i32 = arith.constant 0 : i32
    %c0_i32_0 = arith.constant 0 : i32
    return %arg0, %c0_i32 : i32, i32
  }
  func.func @transform_2(%arg0: i32) -> (i32, i32) {
    %c0_i32 = arith.constant 0 : i32
    %c0_i32_0 = arith.constant 0 : i32
    return %arg0, %c0_i32 : i32, i32
  }
  func.func @transform_3(%arg0: i32) -> (i32, i32) {
    %c0_i32 = arith.constant 0 : i32
    %c0_i32_0 = arith.constant 0 : i32
    return %arg0, %c0_i32 : i32, i32
  }
}

</mosaic_0001>

<llo_original>
// kernel: tpu_custom_call.1
$region0: #{tpu_custom_call.1}
  #allocation0 [shape = 'u32[]', space=smem, size = 0x4, offset = 0x4, fixed_abs, tag = 'smem constant byte address 0x4 - core index']
  #allocation1 [shape = 'u32[72,128]{1,0:T(1,128)}', space=vmem, size = 0x9000, scoped, tag = 'internal scratch']
  %s0 = inlined_call_operand.hbm [shape: f32[1024,256], index: 0, kind: input, shape index: {}]
  %s1 = inlined_call_operand.hbm [shape: f32[1024,128], index: 1, kind: input, shape index: {}]
  %s2 = inlined_call_operand.hbm [shape: f32[1024,256], index: 2, kind: input, shape index: {}]
  %s3 = inlined_call_operand.vmem [shape: f32[1024,1], index: 3, kind: output, shape index: {}]
  %s4 = sld [smem:[#allocation0]]
  $region57: #{tpu_custom_call.1} parent=0
    _
  %s6 = ssub.s32 1, %s4
  %s7 = scalar_select 0, %s6, %s4
  $region1: #{tpu_custom_call.1} parent=0
    #allocation2 [shape = 'u8[262144]{0}', space=vmem, size = 0x40000, scoped, tag = 'input window, operand 0']
    #allocation3 [shape = 's32[2]{0}', space=sflag, size = 0x8, scoped, tag = 'scoped memory for tpu_custom_call.1']
    #allocation4 [shape = 'u8[131072]{0}', space=vmem, size = 0x20000, scoped, tag = 'input window, operand 1']
    #allocation5 [shape = 's32[2]{0}', space=sflag, size = 0x8, scoped, tag = 'scoped memory for tpu_custom_call.1']
    #allocation6 [shape = 'u8[262144]{0}', space=vmem, size = 0x40000, scoped, tag = 'input window, operand 2']
    %8 = vsyncpa [#allocation3], 0
    %s9 = scalar_lea.sflag [#allocation3], 1
    %10 = vsyncpa %s9, 0
    %11 = vsyncpa [#allocation5], 0
    %s12 = scalar_lea.sflag [#allocation5], 1
    %13 = vsyncpa %s12, 0
    loop: start=0, step=1, limit=10
    $region2: #{tpu_custom_call.1} parent=1 // loop_pre_header
      _
    $region3: #{tpu_custom_call.1} parent=1 // loop_header
      %s15 = sphi 0, %s19
      %p16 = scmp.ge.s32.totalorder %s15, 10
      %s25 = sphi 0, %s27
      %s28 = sphi 0, %s25
      %s29 = sphi 0, %s28
      %s45 = sphi 0, %s29
      %s51 = sphi 0, %s53
      %s54 = sphi 0, %s51
      %s55 = sphi 0, %s54
      %s71 = sphi 0, %s55
      %s77 = sphi 0, %s79
      %s80 = sphi 0, %s77
      %s81 = sphi 0, %s80
      %s97 = sphi 0, %s81
      %s103 = sphi 0, %s105
      %s106 = sphi 0, %s103
      %s107 = sphi 0, %s106
      %s123 = sphi 0, %s107
    $region4: #{tpu_custom_call.1} parent=1 // loop_header_branch
      %18 = sbr.rel (%p16) target = $region8
    $region5: #{tpu_custom_call.1} parent=1 // loop_body
      %s20 = ssub.s32 %s15, 1
      %s21 = ssub.s32 %s15, 2
      %s22 = sadd.s32 %s15, 1
      %s23 = ssub.s32 %s15, %s22
      %p24 = scmp.eq.s32.totalorder %s23, 0
      %s26 = sadd.s32 %s25, 1
      %s27 = scalar_select %p24, %s25, %s26
      %p30 = pneg %p24
      %p31 = scmp.eq.s32.totalorder %s15, 7
      %p32 = por %p30, %p31
      %p33 = scmp.ne.s32.totalorder %s25, %s28
      %p34 = scmp.eq.s32.totalorder %s15, 0
      %p35 = por %p33, %p34
      %p36 = scmp.ne.s32.totalorder %s25, %s28
      %p37 = scmp.eq.s32.totalorder %s20, 7
      %p38 = por %p36, %p37
      %p39 = scmp.ne.s32.totalorder %s28, %s29
      %p40 = scmp.eq.s32.totalorder %s20, 0
      %p41 = por %p39, %p40
      %p42 = scmp.ne.s32.totalorder %s28, %s29
      %p43 = scmp.eq.s32.totalorder %s21, 7
      %p44 = por %p42, %p43
      %p46 = scmp.ne.s32.totalorder %s29, %s45
      %p47 = scmp.eq.s32.totalorder %s21, 0
      %p48 = por %p46, %p47
      %s49 = ssub.s32 %s15, %s22
      %p50 = scmp.eq.s32.totalorder %s49, 0
      %s52 = sadd.s32 %s51, 1
      %s53 = scalar_select %p50, %s51, %s52
      %p56 = pneg %p50
      %p57 = scmp.eq.s32.totalorder %s15, 7
      %p58 = por %p56, %p57
      %p59 = scmp.ne.s32.totalorder %s51, %s54
      %p60 = scmp.eq.s32.totalorder %s15, 0
      %p61 = por %p59, %p60
      %p62 = scmp.ne.s32.totalorder %s51, %s54
      %p63 = scmp.eq.s32.totalorder %s20, 7
      %p64 = por %p62, %p63
      %p65 = scmp.ne.s32.totalorder %s54, %s55
      %p66 = scmp.eq.s32.totalorder %s20, 0
      %p67 = por %p65, %p66
      %p68 = scmp.ne.s32.totalorder %s54, %s55
      %p69 = scmp.eq.s32.totalorder %s21, 7
      %p70 = por %p68, %p69
      %p72 = scmp.ne.s32.totalorder %s55, %s71
      %p73 = scmp.eq.s32.totalorder %s21, 0
      %p74 = por %p72, %p73
      %s75 = ssub.s32 %s15, %s22
      %p76 = scmp.eq.s32.totalorder %s75, 0
      %s78 = sadd.s32 %s77, 1
      %s79 = scalar_select %p76, %s77, %s78
      %p82 = pneg %p76
      %p83 = scmp.eq.s32.totalorder %s15, 7
      %p84 = por %p82, %p83
      %p85 = scmp.ne.s32.totalorder %s77, %s80
      %p86 = scmp.eq.s32.totalorder %s15, 0
      %p87 = por %p85, %p86
      %p88 = scmp.ne.s32.totalorder %s77, %s80
      %p89 = scmp.eq.s32.totalorder %s20, 7
      %p90 = por %p88, %p89
      %p91 = scmp.ne.s32.totalorder %s80, %s81
      %p92 = scmp.eq.s32.totalorder %s20, 0
      %p93 = por %p91, %p92
      %p94 = scmp.ne.s32.totalorder %s80, %s81
      %p95 = scmp.eq.s32.totalorder %s21, 7
      %p96 = por %p94, %p95
      %p98 = scmp.ne.s32.totalorder %s81, %s97
      %p99 = scmp.eq.s32.totalorder %s21, 0
      %p100 = por %p98, %p99
      %s101 = ssub.s32 %s15, %s22
      %p102 = scmp.eq.s32.totalorder %s101, 0
      %s104 = sadd.s32 %s103, 1
      %s105 = scalar_select %p102, %s103, %s104
      %p108 = pneg %p102
      %p109 = scmp.eq.s32.totalorder %s15, 7
      %p110 = por %p108, %p109
      %p111 = scmp.ne.s32.totalorder %s103, %s106
      %p112 = scmp.eq.s32.totalorder %s15, 0
      %p113 = por %p111, %p112
      %p114 = scmp.ne.s32.totalorder %s103, %s106
      %p115 = scmp.eq.s32.totalorder %s20, 7
      %p116 = por %p114, %p115
      %p117 = scmp.ne.s32.totalorder %s106, %s107
      %p118 = scmp.eq.s32.totalorder %s20, 0
      %p119 = por %p117, %p118
      %p120 = scmp.ne.s32.totalorder %s106, %s107
      %p121 = scmp.eq.s32.totalorder %s21, 7
      %p122 = por %p120, %p121
      %p124 = scmp.ne.s32.totalorder %s107, %s123
      %p125 = scmp.eq.s32.totalorder %s21, 0
      %p126 = por %p124, %p125
      %p127 = scmp.le.s32.totalorder 1, %s15
      %p128 = scmp.lt.s32.totalorder %s15, 9
      %p129 = pnand %p127, %p128
      %p130 = pneg %p129
      // Predicated region
      $region9: #{tpu_custom_call.1} parent=5 // pred_check
        _
      $region10: #{tpu_custom_call.1} parent=5 // pred_check_branch
        %132 = sbr.rel (%p129) target = $region12
      $region11: #{tpu_custom_call.1} parent=5 // pred_region
        %s133 = ssub.s32 %s15, 1
      $region12: #{tpu_custom_call.1} parent=5 // pred_fallthru
        _
      %p134 = scmp.lt.s32.totalorder %s15, 8
      // Predicated region
      $region13: #{tpu_custom_call.1} parent=5 // pred_check
        %p135 = pneg %p134
      $region14: #{tpu_custom_call.1} parent=5 // pred_check_branch
        %137 = sbr.rel (%p135) target = $region16
      $region15: #{tpu_custom_call.1} parent=5 // pred_region
        // Predicated region
        $region17: #{tpu_custom_call.1} parent=15 // pred_check
          %p138 = pneg %p35
        $region18: #{tpu_custom_call.1} parent=15 // pred_check_branch
          %140 = sbr.rel (%p138) target = $region20
        $region19: #{tpu_custom_call.1} parent=15 // pred_region
          %s141 = sand.u32 %s25, 1
          %s142 = scalar_lea.sflag [#allocation3], %s141
          %s143 = sand.u32 %s25, 1
          %s144 = smul.addr %s143, 256
          %s145 = scalar_lea.vmem [#allocation2], %s144
          %s146 = smul.u32 16, %s15
          %148 = vsyncadd %s142, 0
          %s149 = smul.addr %s146, 2
          %s150 = smul.addr %s149, 8
          %s151 = scalar_lea.hbm %s0, %s150
          %s152 = sshll.u32 %s151, 4
          %s153 = int_to_ptr.hbm [resolvable:$true] %s152
          %s154 = sshll.u32 %s145, 4
          %s155 = int_to_ptr.vmem [resolvable:$true] %s154
          %160 = dma.hbm_to_vmem [thread:$0]  %s153, 4096, %s155, %s142, 256, 256, 16
        $region20: #{tpu_custom_call.1} parent=15 // pred_fallthru
          _
        // Predicated region
        $region21: #{tpu_custom_call.1} parent=15 // pred_check
          %p161 = pneg %p61
        $region22: #{tpu_custom_call.1} parent=15 // pred_check_branch
          %163 = sbr.rel (%p161) target = $region24
        $region23: #{tpu_custom_call.1} parent=15 // pred_region
          %s164 = sand.u32 %s15, 1
          %s165 = scalar_lea.sflag [#allocation5], %s164
          %s166 = sand.u32 %s51, 1
          %s167 = smul.addr %s166, 128
          %s168 = scalar_lea.vmem [#allocation4], %s167
          %s169 = smul.u32 16, %s15
          %171 = vsyncadd %s165, 0
          %s172 = smul.addr %s169, 8
          %s173 = scalar_lea.hbm %s1, %s172
          %s174 = sshll.u32 %s173, 4
          %s175 = int_to_ptr.hbm [resolvable:$true] %s174
          %s176 = sshll.u32 %s168, 4
          %s177 = int_to_ptr.vmem [resolvable:$true] %s176
          %182 = dma.hbm_to_vmem [thread:$0]  %s175, 2048, %s177, %s165, 128, 128, 8
        $region24: #{tpu_custom_call.1} parent=15 // pred_fallthru
          _
        // Predicated region
        $region25: #{tpu_custom_call.1} parent=15 // pred_check
          %p183 = pneg %p87
        $region26: #{tpu_custom_call.1} parent=15 // pred_check_branch
          %185 = sbr.rel (%p183) target = $region28
        $region27: #{tpu_custom_call.1} parent=15 // pred_region
          %s186 = sand.u32 %s15, 1
          %s187 = scalar_lea.sflag [#allocation5], %s186
          %s188 = sand.u32 %s77, 1
          %s189 = smul.addr %s188, 256
          %s190 = scalar_lea.vmem [#allocation6], %s189
          %s191 = smul.u32 16, %s15
          %193 = vsyncadd %s187, 0
          %s194 = smul.addr %s191, 2
          %s195 = smul.addr %s194, 8
          %s196 = scalar_lea.hbm %s2, %s195
          %s197 = sshll.u32 %s196, 4
          %s198 = int_to_ptr.hbm [resolvable:$true] %s197
          %s199 = sshll.u32 %s190, 4
          %s200 = int_to_ptr.vmem [resolvable:$true] %s199
          %205 = dma.hbm_to_vmem [thread:$0]  %s198, 4096, %s200, %s187, 256, 256, 16
        $region28: #{tpu_custom_call.1} parent=15 // pred_fallthru
          _
      $region16: #{tpu_custom_call.1} parent=5 // pred_fallthru
        _
      %p206 = scmp.le.s32.totalorder 1, %s15
      %p207 = scmp.lt.s32.totalorder %s15, 9
      %p208 = pnand %p206, %p207
      %p209 = pneg %p208
      // Predicated region
      $region29: #{tpu_custom_call.1} parent=5 // pred_check
        _
      $region30: #{tpu_custom_call.1} parent=5 // pred_check_branch
        %211 = sbr.rel (%p208) target = $region32
      $region31: #{tpu_custom_call.1} parent=5 // pred_region
        %s212 = ssub.s32 %s15, 1
        %s213 = sand.u32 %s28, 1
        %s214 = scalar_lea.sflag [#allocation3], %s213
        %s215 = sand.u32 %s28, 1
        %s216 = smul.addr %s215, 256
        %s217 = scalar_lea.vmem [#allocation2], %s216
        // Predicated region
        $region33: #{tpu_custom_call.1} parent=31 // pred_check
          %p218 = pneg %p41
        $region34: #{tpu_custom_call.1} parent=31 // pred_check_branch
          %220 = sbr.rel (%p218) target = $region36
        $region35: #{tpu_custom_call.1} parent=31 // pred_region
          %222 = dma.done %s214, 4096
        $region36: #{tpu_custom_call.1} parent=31 // pred_fallthru
          _
        %s223 = sand.u32 %s20, 1
        %s224 = scalar_lea.sflag [#allocation5], %s223
        %s225 = sand.u32 %s54, 1
        %s226 = smul.addr %s225, 128
        %s227 = scalar_lea.vmem [#allocation4], %s226
        // Predicated region
        $region37: #{tpu_custom_call.1} parent=31 // pred_check
          %p228 = pneg %p67
        $region38: #{tpu_custom_call.1} parent=31 // pred_check_branch
          %230 = sbr.rel (%p228) target = $region40
        $region39: #{tpu_custom_call.1} parent=31 // pred_region
          %232 = dma.done %s224, 2048
        $region40: #{tpu_custom_call.1} parent=31 // pred_fallthru
          _
        %s233 = sand.u32 %s20, 1
        %s234 = scalar_lea.sflag [#allocation5], %s233
        %s235 = sand.u32 %s80, 1
        %s236 = smul.addr %s235, 256
        %s237 = scalar_lea.vmem [#allocation6], %s236
        // Predicated region
        $region41: #{tpu_custom_call.1} parent=31 // pred_check
          %p238 = pneg %p93
        $region42: #{tpu_custom_call.1} parent=31 // pred_check_branch
          %240 = sbr.rel (%p238) target = $region44
        $region43: #{tpu_custom_call.1} parent=31 // pred_region
          %242 = dma.done %s234, 4096
        $region44: #{tpu_custom_call.1} parent=31 // pred_fallthru
          _
        %s243 = sand.u32 %s28, 1
        %s244 = scalar_lea.sflag [#allocation3], %s243
        %s245 = sand.u32 %s28, 1
        %s246 = smul.addr %s245, 256
        %s247 = scalar_lea.vmem [#allocation2], %s246
        %p248 = pneg %p41
        %p249 = pneg %p38
        %s250 = sand.u32 %s20, 1
        %s251 = scalar_lea.sflag [#allocation5], %s250
        %s252 = sand.u32 %s54, 1
        %s253 = smul.addr %s252, 128
        %s254 = scalar_lea.vmem [#allocation4], %s253
        %p255 = pneg %p67
        %p256 = pneg %p64
        %s257 = sand.u32 %s20, 1
        %s258 = scalar_lea.sflag [#allocation5], %s257
        %s259 = sand.u32 %s80, 1
        %s260 = smul.addr %s259, 256
        %s261 = scalar_lea.vmem [#allocation6], %s260
        %p262 = pneg %p93
        %p263 = pneg %p90
        %p264 = pneg %p119
        %p265 = pneg %p116
        %s266 = smul.u32 16, %s20
        %p267 = scmp.lt.s32.totalorder %s266, 127
        %s268 = scalar_select %p267, %s266, 127
        %s269 = smul.addr %s268, 8
        %s270 = scalar_lea.vmem %s3, %s269
        %s271 = smul.u32 16, %s20
        %s272 = smul.u32 16, %s20
        %s273 = smul.u32 16, %s20
        %s274 = smul.u32 16, %s20
        %p275 = scmp.lt.s32.totalorder %s274, 127
        %s276 = scalar_select %p275, %s274, 127
        %s277 = smul.addr %s276, 8
        %s278 = scalar_lea.vmem %s3, %s277
        %s279 = smul.u32 16, %s20
        %v280 = vld [vmem:[%s217] sm:$0xff]
        %v281 = vld [vmem:[%s217 + $0x8] sm:$0xff]
        %v282 = vld [vmem:[%s217 + $0x10] sm:$0xff]
        %v283 = vld [vmem:[%s217 + $0x18] sm:$0xff]
        %v284 = vld [vmem:[%s217 + $0x20] sm:$0xff]
        %v285 = vld [vmem:[%s217 + $0x28] sm:$0xff]
        %v286 = vld [vmem:[%s217 + $0x30] sm:$0xff]
        %v287 = vld [vmem:[%s217 + $0x38] sm:$0xff]
        %v288 = vld [vmem:[%s217 + $0x40] sm:$0xff]
        %v289 = vld [vmem:[%s217 + $0x48] sm:$0xff]
        %v290 = vld [vmem:[%s217 + $0x50] sm:$0xff]
        %v291 = vld [vmem:[%s217 + $0x58] sm:$0xff]
        %v292 = vld [vmem:[%s217 + $0x60] sm:$0xff]
        %v293 = vld [vmem:[%s217 + $0x68] sm:$0xff]
        %v294 = vld [vmem:[%s217 + $0x70] sm:$0xff]
        %v295 = vld [vmem:[%s217 + $0x78] sm:$0xff]
        %v296 = vld [vmem:[%s217 + $0x80] sm:$0xff]
        %v297 = vld [vmem:[%s217 + $0x88] sm:$0xff]
        %v298 = vld [vmem:[%s217 + $0x90] sm:$0xff]
        %v299 = vld [vmem:[%s217 + $0x98] sm:$0xff]
        %v300 = vld [vmem:[%s217 + $0xa0] sm:$0xff]
        %v301 = vld [vmem:[%s217 + $0xa8] sm:$0xff]
        %v302 = vld [vmem:[%s217 + $0xb0] sm:$0xff]
        %v303 = vld [vmem:[%s217 + $0xb8] sm:$0xff]
        %v304 = vld [vmem:[%s217 + $0xc0] sm:$0xff]
        %v305 = vld [vmem:[%s217 + $0xc8] sm:$0xff]
        %v306 = vld [vmem:[%s217 + $0xd0] sm:$0xff]
        %v307 = vld [vmem:[%s217 + $0xd8] sm:$0xff]
        %v308 = vld [vmem:[%s217 + $0xe0] sm:$0xff]
        %v309 = vld [vmem:[%s217 + $0xe8] sm:$0xff]
        %v310 = vld [vmem:[%s217 + $0xf0] sm:$0xff]
        %v311 = vld [vmem:[%s217 + $0xf8] sm:$0xff]
        %v312 = vld [vmem:[%s237] sm:$0xff]
        %v313 = vld [vmem:[%s237 + $0x8] sm:$0xff]
        %v314 = vld [vmem:[%s237 + $0x10] sm:$0xff]
        %v315 = vld [vmem:[%s237 + $0x18] sm:$0xff]
        %v316 = vld [vmem:[%s237 + $0x20] sm:$0xff]
        %v317 = vld [vmem:[%s237 + $0x28] sm:$0xff]
        %v318 = vld [vmem:[%s237 + $0x30] sm:$0xff]
        %v319 = vld [vmem:[%s237 + $0x38] sm:$0xff]
        %v320 = vld [vmem:[%s237 + $0x40] sm:$0xff]
        %v321 = vld [vmem:[%s237 + $0x48] sm:$0xff]
        %v322 = vld [vmem:[%s237 + $0x50] sm:$0xff]
        %v323 = vld [vmem:[%s237 + $0x58] sm:$0xff]
        %v324 = vld [vmem:[%s237 + $0x60] sm:$0xff]
        %v325 = vld [vmem:[%s237 + $0x68] sm:$0xff]
        %v326 = vld [vmem:[%s237 + $0x70] sm:$0xff]
        %v327 = vld [vmem:[%s237 + $0x78] sm:$0xff]
        %v328 = vld [vmem:[%s237 + $0x80] sm:$0xff]
        %v329 = vld [vmem:[%s237 + $0x88] sm:$0xff]
        %v330 = vld [vmem:[%s237 + $0x90] sm:$0xff]
        %v331 = vld [vmem:[%s237 + $0x98] sm:$0xff]
        %v332 = vld [vmem:[%s237 + $0xa0] sm:$0xff]
        %v333 = vld [vmem:[%s237 + $0xa8] sm:$0xff]
        %v334 = vld [vmem:[%s237 + $0xb0] sm:$0xff]
        %v335 = vld [vmem:[%s237 + $0xb8] sm:$0xff]
        %v336 = vld [vmem:[%s237 + $0xc0] sm:$0xff]
        %v337 = vld [vmem:[%s237 + $0xc8] sm:$0xff]
        %v338 = vld [vmem:[%s237 + $0xd0] sm:$0xff]
        %v339 = vld [vmem:[%s237 + $0xd8] sm:$0xff]
        %v340 = vld [vmem:[%s237 + $0xe0] sm:$0xff]
        %v341 = vld [vmem:[%s237 + $0xe8] sm:$0xff]
        %v342 = vld [vmem:[%s237 + $0xf0] sm:$0xff]
        %v343 = vld [vmem:[%s237 + $0xf8] sm:$0xff]
        %v344 = vld [vmem:[%s227] sm:$0xff]
        %v345 = vld [vmem:[%s227 + $0x8] sm:$0xff]
        %v346 = vld [vmem:[%s227 + $0x10] sm:$0xff]
        %v347 = vld [vmem:[%s227 + $0x18] sm:$0xff]
        %v348 = vld [vmem:[%s227 + $0x20] sm:$0xff]
        %v349 = vld [vmem:[%s227 + $0x28] sm:$0xff]
        %v350 = vld [vmem:[%s227 + $0x30] sm:$0xff]
        %v351 = vld [vmem:[%s227 + $0x38] sm:$0xff]
        %v352 = vld [vmem:[%s227 + $0x40] sm:$0xff]
        %v353 = vld [vmem:[%s227 + $0x48] sm:$0xff]
        %v354 = vld [vmem:[%s227 + $0x50] sm:$0xff]
        %v355 = vld [vmem:[%s227 + $0x58] sm:$0xff]
        %v356 = vld [vmem:[%s227 + $0x60] sm:$0xff]
        %v357 = vld [vmem:[%s227 + $0x68] sm:$0xff]
        %v358 = vld [vmem:[%s227 + $0x70] sm:$0xff]
        %v359 = vld [vmem:[%s227 + $0x78] sm:$0xff]
        %v360 = vmul.f32 %v344, 57.446266
        %v361 = vmul.f32 %v345, 57.446266
        %v362 = vmul.f32 %v346, 57.446266
        %v363 = vmul.f32 %v347, 57.446266
        %v364 = vmul.f32 %v348, 57.446266
        %v365 = vmul.f32 %v349, 57.446266
        %v366 = vmul.f32 %v350, 57.446266
        %v367 = vmul.f32 %v351, 57.446266
        %v368 = vmul.f32 %v352, 57.446266
        %v369 = vmul.f32 %v353, 57.446266
        %v370 = vmul.f32 %v354, 57.446266
        %v371 = vmul.f32 %v355, 57.446266
        %v372 = vmul.f32 %v356, 57.446266
        %v373 = vmul.f32 %v357, 57.446266
        %v374 = vmul.f32 %v358, 57.446266
        %v375 = vmul.f32 %v359, 57.446266
        %v376 = vand.u32 2147483647, %v360
        %vm377 = vcmp.le.f32.partialorder %v376, 0.7853982
        %vm378 = vcmp.lt.s32.totalorder %v360, 0
        %v379 = vand.u32 %v360, 2139095040
        %v380 = vshrl.u32 %v379, 23
        %v381 = vsub.s32 %v380, 127
        %v382 = vand.u32 2147483647, %v360
        %v383 = vand.u32 %v382, 8388607
        %v384 = vor.u32 %v383, 8388608
        %v385 = vsub.s32 0, %v384
        %v386 = vadd.s32 %v381, 1
        %vm387 = vcmp.gt.s32.totalorder %v386, 0
        %v388 = vsel %vm387, %v386, 0
        %v389 = vshrl.u32 %v388, 5
        %v390 = vand.u32 %v388, 31
        %v391 = vsub.s32 32, %v390
        %v392 = vshrl.u32 683565275, %v391
        %v393 = vshll.u32 683565275, %v390
        %v394 = vshrl.u32 2475754826, %v391
        %v395 = vor.u32 %v393, %v394
        %v396 = vshll.u32 2475754826, %v390
        %v397 = vshrl.u32 2131351028, %v391
        %v398 = vor.u32 %v396, %v397
        %v399 = vshll.u32 2131351028, %v390
        %v400 = vshrl.u32 2102212464, %v391
        %v401 = vor.u32 %v399, %v400
        %v402 = vshll.u32 2102212464, %v390
        %v403 = vshrl.u32 920167782, %v391
        %v404 = vor.u32 %v402, %v403
        %v405 = vshll.u32 920167782, %v390
        %v406 = vshrl.u32 1326507024, %v391
        %v407 = vor.u32 %v405, %v406
        %vm408 = vcmp.lt.s32.totalorder %v389, 1
        %vm409 = vcmp.lt.s32.totalorder %v389, 2
        %vm410 = vcmp.lt.s32.totalorder %v389, 3
        %vm411 = vcmp.lt.s32.totalorder %v389, 4
        %v412 = vsel %vm408, %v392, %v395
        %v413 = vsel %vm411, %v401, 2102212464
        %v414 = vsel %vm410, %v398, %v413
        %v415 = vsel %vm409, %v412, %v414
        %v416 = vsel %vm408, %v395, %v398
        %v417 = vsel %vm411, %v404, 920167782
        %v418 = vsel %vm410, %v401, %v417
        %v419 = vsel %vm409, %v416, %v418
        %v420 = vsel %vm408, %v398, %v401
        %v421 = vsel %vm411, %v407, 1326507024
        %v422 = vsel %vm410, %v404, %v421
        %v423 = vsel %vm409, %v420, %v422
        %v424 = vshll.u32 %v384, 8
        %v425 = vand.u32 %v424, 65535
        %v426 = vshrl.u32 %v424, 16
        %v427 = vand.u32 %v423, 65535
        %v428 = vshrl.u32 %v423, 16
        %v429 = vmul.u32 %v425, %v427
        %v430 = vmul.u32 %v425, %v428
        %v431 = vmul.u32 %v426, %v427
        %v432 = vmul.u32 %v426, %v428
        %v433 = vshll.u32 %v430, 16
        %v434 = vshrl.u32 %v430, 16
        %v435 = vshll.u32 %v431, 16
        %v436 = vshrl.u32 %v431, 16
        %vm437 = vc.u32 %v429, %v433
        %v438 = vsel %vm437, 1, 0
        %v439 = vadd.s32 %v429, %v433
        %v440 = vadd.s32 %v432, %v438
        %vm441 = vc.u32 %v439, %v435
        %v442 = vsel %vm441, 1, 0
        %v443 = vadd.s32 %v439, %v435
        %v444 = vadd.s32 %v440, %v442
        %v445 = vadd.s32 %v444, %v434
        %v446 = vadd.s32 %v445, %v436
        %v447 = vand.u32 %v424, 65535
        %v448 = vshrl.u32 %v424, 16
        %v449 = vand.u32 %v419, 65535
        %v450 = vshrl.u32 %v419, 16
        %v451 = vmul.u32 %v447, %v449
        %v452 = vmul.u32 %v447, %v450
        %v453 = vmul.u32 %v448, %v449
        %v454 = vmul.u32 %v448, %v450
        %v455 = vshll.u32 %v452, 16
        %v456 = vshrl.u32 %v452, 16
        %v457 = vshll.u32 %v453, 16
        %v458 = vshrl.u32 %v453, 16
        %vm459 = vc.u32 %v451, %v455
        %v460 = vsel %vm459, 1, 0
        %v461 = vadd.s32 %v451, %v455
        %v462 = vadd.s32 %v454, %v460
        %vm463 = vc.u32 %v461, %v457
        %v464 = vsel %vm463, 1, 0
        %v465 = vadd.s32 %v461, %v457
        %v466 = vadd.s32 %v462, %v464
        %v467 = vadd.s32 %v466, %v456
        %v468 = vadd.s32 %v467, %v458
        %v469 = vmul.u32 %v424, %v415
        %v470 = vadd.s32 %v446, %v465
        %vm471 = vc.u32 %v446, %v465
        %v472 = vadd.s32 %v468, 1
        %v473 = vsel %vm471, %v472, %v468
        %v474 = vadd.s32 %v469, %v473
        %v475 = vadd.s32 %v474, 536870912
        %v476 = vshrl.u32 %v475, 30
        %v477 = vshll.u32 %v476, 30
        %v478 = vsub.s32 %v474, %v477
        %vm479 = vcmp.lt.s32.totalorder %v478, 0
        %v480 = vsub.s32 0, %v478
        %v481 = vsel %vm479, %v480, %v478
        %v482 = vclz %v481
        %v483 = vsub.s32 %v482, 2
        %vm484 = vcmp.gt.s32.totalorder 0, %v483
        %v485 = vsel %vm484, 0, %v483
        %v486 = vsub.s32 32, %v485
        %v487 = vshll.u32 %v478, %v485
        %v488 = vshrl.u32 %v470, %v486
        %v489 = vor.u32 %v487, %v488
        %v490 = vsub.s32 4294967266, %v485
        %v491 = vadd.s32 %v490, 127
        %v492 = vshll.u32 %v491, 23
        %v493 = vor.u32 4788187, %v492
        %v494 = vand.u32 2147483647, %v493
        %v496 = vcvt.s32.f32 %v489
        %v497 = vmul.f32 %v496, %v494
        %v498 = vxor.u32 %v497, 2147483648
        %v499 = vsel %vm378, %v498, %v497
        %v500 = vsub.s32 4, %v476
        %v501 = vsel %vm378, %v500, %v476
        %v502 = vsel %vm377, %v360, %v499
        %v503 = vsel %vm377, 0, %v501
        %v504 = vmul.f32 %v502, %v502
        %v505 = vmul.f32 %v504, -0.001358992
        %v506 = vadd.f32 %v505, 0.041655596
        %v507 = vmul.f32 %v504, %v506
        %v508 = vadd.f32 %v507, -0.4999988
        %v509 = vmul.f32 %v504, %v508
        %v510 = vadd.f32 1.0, %v509
        %v511 = vmul.f32 %v502, %v502
        %v512 = vmul.f32 %v511, -0.00019511016
        %v513 = vadd.f32 %v512, 0.008332121
        %v514 = vmul.f32 %v511, %v513
        %v515 = vadd.f32 %v514, -0.16666654
        %v516 = vmul.f32 %v511, %v515
        %v517 = vadd.f32 %v516, 1.0
        %v518 = vmul.f32 %v517, %v502
        %vm519 = vweird.f32 %v360
        %v520 = vand.u32 %v503, 3
        %vm521 = vcmp.lt.s32.totalorder %v520, 2
        %vm522 = vcmp.eq.s32.totalorder %v520, 0
        %v523 = vxor.u32 %v518, 2147483648
        %v524 = vsel %vm522, %v510, %v523
        %vm525 = vcmp.eq.s32.totalorder %v520, 2
        %v526 = vxor.u32 %v510, 2147483648
        %v527 = vsel %vm525, %v526, %v518
        %v528 = vsel %vm521, %v524, %v527
        %v529 = vsel %vm519, nan, %v528
        %v530 = vand.u32 2147483647, %v361
        %vm531 = vcmp.le.f32.partialorder %v530, 0.7853982
        %vm532 = vcmp.lt.s32.totalorder %v361, 0
        %v533 = vand.u32 %v361, 2139095040
        %v534 = vshrl.u32 %v533, 23
        %v535 = vsub.s32 %v534, 127
        %v536 = vand.u32 2147483647, %v361
        %v537 = vand.u32 %v536, 8388607
        %v538 = vor.u32 %v537, 8388608
        %v539 = vsub.s32 0, %v538
        %v540 = vadd.s32 %v535, 1
        %vm541 = vcmp.gt.s32.totalorder %v540, 0
        %v542 = vsel %vm541, %v540, 0
        %v543 = vshrl.u32 %v542, 5
        %v544 = vand.u32 %v542, 31
        %v545 = vsub.s32 32, %v544
        %v546 = vshrl.u32 683565275, %v545
        %v547 = vshll.u32 683565275, %v544
        %v548 = vshrl.u32 2475754826, %v545
        %v549 = vor.u32 %v547, %v548
        %v550 = vshll.u32 2475754826, %v544
        %v551 = vshrl.u32 2131351028, %v545
        %v552 = vor.u32 %v550, %v551
        %v553 = vshll.u32 2131351028, %v544
        %v554 = vshrl.u32 2102212464, %v545
        %v555 = vor.u32 %v553, %v554
        %v556 = vshll.u32 2102212464, %v544
        %v557 = vshrl.u32 920167782, %v545
        %v558 = vor.u32 %v556, %v557
        %v559 = vshll.u32 920167782, %v544
        %v560 = vshrl.u32 1326507024, %v545
        %v561 = vor.u32 %v559, %v560
        %vm562 = vcmp.lt.s32.totalorder %v543, 1
        %vm563 = vcmp.lt.s32.totalorder %v543, 2
        %vm564 = vcmp.lt.s32.totalorder %v543, 3
        %vm565 = vcmp.lt.s32.totalorder %v543, 4
        %v566 = vsel %vm562, %v546, %v549
        %v567 = vsel %vm565, %v555, 2102212464
        %v568 = vsel %vm564, %v552, %v567
        %v569 = vsel %vm563, %v566, %v568
        %v570 = vsel %vm562, %v549, %v552
        %v571 = vsel %vm565, %v558, 920167782
        %v572 = vsel %vm564, %v555, %v571
        %v573 = vsel %vm563, %v570, %v572
        %v574 = vsel %vm562, %v552, %v555
        %v575 = vsel %vm565, %v561, 1326507024
        %v576 = vsel %vm564, %v558, %v575
        %v577 = vsel %vm563, %v574, %v576
        %v578 = vshll.u32 %v538, 8
        %v579 = vand.u32 %v578, 65535
        %v580 = vshrl.u32 %v578, 16
        %v581 = vand.u32 %v577, 65535
        %v582 = vshrl.u32 %v577, 16
        %v583 = vmul.u32 %v579, %v581
        %v584 = vmul.u32 %v579, %v582
        %v585 = vmul.u32 %v580, %v581
        %v586 = vmul.u32 %v580, %v582
        %v587 = vshll.u32 %v584, 16
        %v588 = vshrl.u32 %v584, 16
        %v589 = vshll.u32 %v585, 16
        %v590 = vshrl.u32 %v585, 16
        %vm591 = vc.u32 %v583, %v587
        %v592 = vsel %vm591, 1, 0
        %v593 = vadd.s32 %v583, %v587
        %v594 = vadd.s32 %v586, %v592
        %vm595 = vc.u32 %v593, %v589
        %v596 = vsel %vm595, 1, 0
        %v597 = vadd.s32 %v593, %v589
        %v598 = vadd.s32 %v594, %v596
        %v599 = vadd.s32 %v598, %v588
        %v600 = vadd.s32 %v599, %v590
        %v601 = vand.u32 %v578, 65535
        %v602 = vshrl.u32 %v578, 16
        %v603 = vand.u32 %v573, 65535
        %v604 = vshrl.u32 %v573, 16
        %v605 = vmul.u32 %v601, %v603
        %v606 = vmul.u32 %v601, %v604
        %v607 = vmul.u32 %v602, %v603
        %v608 = vmul.u32 %v602, %v604
        %v609 = vshll.u32 %v606, 16
        %v610 = vshrl.u32 %v606, 16
        %v611 = vshll.u32 %v607, 16
        %v612 = vshrl.u32 %v607, 16
        %vm613 = vc.u32 %v605, %v609
        %v614 = vsel %vm613, 1, 0
        %v615 = vadd.s32 %v605, %v609
        %v616 = vadd.s32 %v608, %v614
        %vm617 = vc.u32 %v615, %v611
        %v618 = vsel %vm617, 1, 0
        %v619 = vadd.s32 %v615, %v611
        %v620 = vadd.s32 %v616, %v618
        %v621 = vadd.s32 %v620, %v610
        %v622 = vadd.s32 %v621, %v612
        %v623 = vmul.u32 %v578, %v569
        %v624 = vadd.s32 %v600, %v619
        %vm625 = vc.u32 %v600, %v619
        %v626 = vadd.s32 %v622, 1
        %v627 = vsel %vm625, %v626, %v622
        %v628 = vadd.s32 %v623, %v627
        %v629 = vadd.s32 %v628, 536870912
        %v630 = vshrl.u32 %v629, 30
        %v631 = vshll.u32 %v630, 30
        %v632 = vsub.s32 %v628, %v631
        %vm633 = vcmp.lt.s32.totalorder %v632, 0
        %v634 = vsub.s32 0, %v632
        %v635 = vsel %vm633, %v634, %v632
        %v636 = vclz %v635
        %v637 = vsub.s32 %v636, 2
        %vm638 = vcmp.gt.s32.totalorder 0, %v637
        %v639 = vsel %vm638, 0, %v637
        %v640 = vsub.s32 32, %v639
        %v641 = vshll.u32 %v632, %v639
        %v642 = vshrl.u32 %v624, %v640
        %v643 = vor.u32 %v641, %v642
        %v644 = vsub.s32 4294967266, %v639
        %v645 = vadd.s32 %v644, 127
        %v646 = vshll.u32 %v645, 23
        %v647 = vor.u32 4788187, %v646
        %v648 = vand.u32 2147483647, %v647
        %v650 = vcvt.s32.f32 %v643
        %v651 = vmul.f32 %v650, %v648
        %v652 = vxor.u32 %v651, 2147483648
        %v653 = vsel %vm532, %v652, %v651
        %v654 = vsub.s32 4, %v630
        %v655 = vsel %vm532, %v654, %v630
        %v656 = vsel %vm531, %v361, %v653
        %v657 = vsel %vm531, 0, %v655
        %v658 = vmul.f32 %v656, %v656
        %v659 = vmul.f32 %v658, -0.001358992
        %v660 = vadd.f32 %v659, 0.041655596
        %v661 = vmul.f32 %v658, %v660
        %v662 = vadd.f32 %v661, -0.4999988
        %v663 = vmul.f32 %v658, %v662
        %v664 = vadd.f32 1.0, %v663
        %v665 = vmul.f32 %v656, %v656
        %v666 = vmul.f32 %v665, -0.00019511016
        %v667 = vadd.f32 %v666, 0.008332121
        %v668 = vmul.f32 %v665, %v667
        %v669 = vadd.f32 %v668, -0.16666654
        %v670 = vmul.f32 %v665, %v669
        %v671 = vadd.f32 %v670, 1.0
        %v672 = vmul.f32 %v671, %v656
        %vm673 = vweird.f32 %v361
        %v674 = vand.u32 %v657, 3
        %vm675 = vcmp.lt.s32.totalorder %v674, 2
        %vm676 = vcmp.eq.s32.totalorder %v674, 0
        %v677 = vxor.u32 %v672, 2147483648
        %v678 = vsel %vm676, %v664, %v677
        %vm679 = vcmp.eq.s32.totalorder %v674, 2
        %v680 = vxor.u32 %v664, 2147483648
        %v681 = vsel %vm679, %v680, %v672
        %v682 = vsel %vm675, %v678, %v681
        %v683 = vsel %vm673, nan, %v682
        %v684 = vand.u32 2147483647, %v362
        %vm685 = vcmp.le.f32.partialorder %v684, 0.7853982
        %vm686 = vcmp.lt.s32.totalorder %v362, 0
        %v687 = vand.u32 %v362, 2139095040
        %v688 = vshrl.u32 %v687, 23
        %v689 = vsub.s32 %v688, 127
        %v690 = vand.u32 2147483647, %v362
        %v691 = vand.u32 %v690, 8388607
        %v692 = vor.u32 %v691, 8388608
        %v693 = vsub.s32 0, %v692
        %v694 = vadd.s32 %v689, 1
        %vm695 = vcmp.gt.s32.totalorder %v694, 0
        %v696 = vsel %vm695, %v694, 0
        %v697 = vshrl.u32 %v696, 5
        %v698 = vand.u32 %v696, 31
        %v699 = vsub.s32 32, %v698
        %v700 = vshrl.u32 683565275, %v699
        %v701 = vshll.u32 683565275, %v698
        %v702 = vshrl.u32 2475754826, %v699
        %v703 = vor.u32 %v701, %v702
        %v704 = vshll.u32 2475754826, %v698
        %v705 = vshrl.u32 2131351028, %v699
        %v706 = vor.u32 %v704, %v705
        %v707 = vshll.u32 2131351028, %v698
        %v708 = vshrl.u32 2102212464, %v699
        %v709 = vor.u32 %v707, %v708
        %v710 = vshll.u32 2102212464, %v698
        %v711 = vshrl.u32 920167782, %v699
        %v712 = vor.u32 %v710, %v711
        %v713 = vshll.u32 920167782, %v698
        %v714 = vshrl.u32 1326507024, %v699
        %v715 = vor.u32 %v713, %v714
        %vm716 = vcmp.lt.s32.totalorder %v697, 1
        %vm717 = vcmp.lt.s32.totalorder %v697, 2
        %vm718 = vcmp.lt.s32.totalorder %v697, 3
        %vm719 = vcmp.lt.s32.totalorder %v697, 4
        %v720 = vsel %vm716, %v700, %v703
        %v721 = vsel %vm719, %v709, 2102212464
        %v722 = vsel %vm718, %v706, %v721
        %v723 = vsel %vm717, %v720, %v722
        %v724 = vsel %vm716, %v703, %v706
        %v725 = vsel %vm719, %v712, 920167782
        %v726 = vsel %vm718, %v709, %v725
        %v727 = vsel %vm717, %v724, %v726
        %v728 = vsel %vm716, %v706, %v709
        %v729 = vsel %vm719, %v715, 1326507024
        %v730 = vsel %vm718, %v712, %v729
        %v731 = vsel %vm717, %v728, %v730
        %v732 = vshll.u32 %v692, 8
        %v733 = vand.u32 %v732, 65535
        %v734 = vshrl.u32 %v732, 16
        %v735 = vand.u32 %v731, 65535
        %v736 = vshrl.u32 %v731, 16
        %v737 = vmul.u32 %v733, %v735
        %v738 = vmul.u32 %v733, %v736
        %v739 = vmul.u32 %v734, %v735
        %v740 = vmul.u32 %v734, %v736
        %v741 = vshll.u32 %v738, 16
        %v742 = vshrl.u32 %v738, 16
        %v743 = vshll.u32 %v739, 16
        %v744 = vshrl.u32 %v739, 16
        %vm745 = vc.u32 %v737, %v741
        %v746 = vsel %vm745, 1, 0
        %v747 = vadd.s32 %v737, %v741
        %v748 = vadd.s32 %v740, %v746
        %vm749 = vc.u32 %v747, %v743
        %v750 = vsel %vm749, 1, 0
        %v751 = vadd.s32 %v747, %v743
        %v752 = vadd.s32 %v748, %v750
        %v753 = vadd.s32 %v752, %v742
        %v754 = vadd.s32 %v753, %v744
        %v755 = vand.u32 %v732, 65535
        %v756 = vshrl.u32 %v732, 16
        %v757 = vand.u32 %v727, 65535
        %v758 = vshrl.u32 %v727, 16
        %v759 = vmul.u32 %v755, %v757
        %v760 = vmul.u32 %v755, %v758
        %v761 = vmul.u32 %v756, %v757
        %v762 = vmul.u32 %v756, %v758
        %v763 = vshll.u32 %v760, 16
        %v764 = vshrl.u32 %v760, 16
        %v765 = vshll.u32 %v761, 16
        %v766 = vshrl.u32 %v761, 16
        %vm767 = vc.u32 %v759, %v763
        %v768 = vsel %vm767, 1, 0
        %v769 = vadd.s32 %v759, %v763
        %v770 = vadd.s32 %v762, %v768
        %vm771 = vc.u32 %v769, %v765
        %v772 = vsel %vm771, 1, 0
        %v773 = vadd.s32 %v769, %v765
        %v774 = vadd.s32 %v770, %v772
        %v775 = vadd.s32 %v774, %v764
        %v776 = vadd.s32 %v775, %v766
        %v777 = vmul.u32 %v732, %v723
        %v778 = vadd.s32 %v754, %v773
        %vm779 = vc.u32 %v754, %v773
        %v780 = vadd.s32 %v776, 1
        %v781 = vsel %vm779, %v780, %v776
        %v782 = vadd.s32 %v777, %v781
        %v783 = vadd.s32 %v782, 536870912
        %v784 = vshrl.u32 %v783, 30
        %v785 = vshll.u32 %v784, 30
        %v786 = vsub.s32 %v782, %v785
        %vm787 = vcmp.lt.s32.totalorder %v786, 0
        %v788 = vsub.s32 0, %v786
        %v789 = vsel %vm787, %v788, %v786
        %v790 = vclz %v789
        %v791 = vsub.s32 %v790, 2
        %vm792 = vcmp.gt.s32.totalorder 0, %v791
        %v793 = vsel %vm792, 0, %v791
        %v794 = vsub.s32 32, %v793
        %v795 = vshll.u32 %v786, %v793
        %v796 = vshrl.u32 %v778, %v794
        %v797 = vor.u32 %v795, %v796
        %v798 = vsub.s32 4294967266, %v793
        %v799 = vadd.s32 %v798, 127
        %v800 = vshll.u32 %v799, 23
        %v801 = vor.u32 4788187, %v800
        %v802 = vand.u32 2147483647, %v801
        %v804 = vcvt.s32.f32 %v797
        %v805 = vmul.f32 %v804, %v802
        %v806 = vxor.u32 %v805, 2147483648
        %v807 = vsel %vm686, %v806, %v805
        %v808 = vsub.s32 4, %v784
        %v809 = vsel %vm686, %v808, %v784
        %v810 = vsel %vm685, %v362, %v807
        %v811 = vsel %vm685, 0, %v809
        %v812 = vmul.f32 %v810, %v810
        %v813 = vmul.f32 %v812, -0.001358992
        %v814 = vadd.f32 %v813, 0.041655596
        %v815 = vmul.f32 %v812, %v814
        %v816 = vadd.f32 %v815, -0.4999988
        %v817 = vmul.f32 %v812, %v816
        %v818 = vadd.f32 1.0, %v817
        %v819 = vmul.f32 %v810, %v810
        %v820 = vmul.f32 %v819, -0.00019511016
        %v821 = vadd.f32 %v820, 0.008332121
        %v822 = vmul.f32 %v819, %v821
        %v823 = vadd.f32 %v822, -0.16666654
        %v824 = vmul.f32 %v819, %v823
        %v825 = vadd.f32 %v824, 1.0
        %v826 = vmul.f32 %v825, %v810
        %vm827 = vweird.f32 %v362
        %v828 = vand.u32 %v811, 3
        %vm829 = vcmp.lt.s32.totalorder %v828, 2
        %vm830 = vcmp.eq.s32.totalorder %v828, 0
        %v831 = vxor.u32 %v826, 2147483648
        %v832 = vsel %vm830, %v818, %v831
        %vm833 = vcmp.eq.s32.totalorder %v828, 2
        %v834 = vxor.u32 %v818, 2147483648
        %v835 = vsel %vm833, %v834, %v826
        %v836 = vsel %vm829, %v832, %v835
        %v837 = vsel %vm827, nan, %v836
        %v838 = vand.u32 2147483647, %v363
        %vm839 = vcmp.le.f32.partialorder %v838, 0.7853982
        %vm840 = vcmp.lt.s32.totalorder %v363, 0
        %v841 = vand.u32 %v363, 2139095040
        %v842 = vshrl.u32 %v841, 23
        %v843 = vsub.s32 %v842, 127
        %v844 = vand.u32 2147483647, %v363
        %v845 = vand.u32 %v844, 8388607
        %v846 = vor.u32 %v845, 8388608
        %v847 = vsub.s32 0, %v846
        %v848 = vadd.s32 %v843, 1
        %vm849 = vcmp.gt.s32.totalorder %v848, 0
        %v850 = vsel %vm849, %v848, 0
        %v851 = vshrl.u32 %v850, 5
        %v852 = vand.u32 %v850, 31
        %v853 = vsub.s32 32, %v852
        %v854 = vshrl.u32 683565275, %v853
        %v855 = vshll.u32 683565275, %v852
        %v856 = vshrl.u32 2475754826, %v853
        %v857 = vor.u32 %v855, %v856
        %v858 = vshll.u32 2475754826, %v852
        %v859 = vshrl.u32 2131351028, %v853
        %v860 = vor.u32 %v858, %v859
        %v861 = vshll.u32 2131351028, %v852
        %v862 = vshrl.u32 2102212464, %v853
        %v863 = vor.u32 %v861, %v862
        %v864 = vshll.u32 2102212464, %v852
        %v865 = vshrl.u32 920167782, %v853
        %v866 = vor.u32 %v864, %v865
        %v867 = vshll.u32 920167782, %v852
        %v868 = vshrl.u32 1326507024, %v853
        %v869 = vor.u32 %v867, %v868
        %vm870 = vcmp.lt.s32.totalorder %v851, 1
        %vm871 = vcmp.lt.s32.totalorder %v851, 2
        %vm872 = vcmp.lt.s32.totalorder %v851, 3
        %vm873 = vcmp.lt.s32.totalorder %v851, 4
        %v874 = vsel %vm870, %v854, %v857
        %v875 = vsel %vm873, %v863, 2102212464
        %v876 = vsel %vm872, %v860, %v875
        %v877 = vsel %vm871, %v874, %v876
        %v878 = vsel %vm870, %v857, %v860
        %v879 = vsel %vm873, %v866, 920167782
        %v880 = vsel %vm872, %v863, %v879
        %v881 = vsel %vm871, %v878, %v880
        %v882 = vsel %vm870, %v860, %v863
        %v883 = vsel %vm873, %v869, 1326507024
        %v884 = vsel %vm872, %v866, %v883
        %v885 = vsel %vm871, %v882, %v884
        %v886 = vshll.u32 %v846, 8
        %v887 = vand.u32 %v886, 65535
        %v888 = vshrl.u32 %v886, 16
        %v889 = vand.u32 %v885, 65535
        %v890 = vshrl.u32 %v885, 16
        %v891 = vmul.u32 %v887, %v889
        %v892 = vmul.u32 %v887, %v890
        %v893 = vmul.u32 %v888, %v889
        %v894 = vmul.u32 %v888, %v890
        %v895 = vshll.u32 %v892, 16
        %v896 = vshrl.u32 %v892, 16
        %v897 = vshll.u32 %v893, 16
        %v898 = vshrl.u32 %v893, 16
        %vm899 = vc.u32 %v891, %v895
        %v900 = vsel %vm899, 1, 0
        %v901 = vadd.s32 %v891, %v895
        %v902 = vadd.s32 %v894, %v900
        %vm903 = vc.u32 %v901, %v897
        %v904 = vsel %vm903, 1, 0
        %v905 = vadd.s32 %v901, %v897
        %v906 = vadd.s32 %v902, %v904
        %v907 = vadd.s32 %v906, %v896
        %v908 = vadd.s32 %v907, %v898
        %v909 = vand.u32 %v886, 65535
        %v910 = vshrl.u32 %v886, 16
        %v911 = vand.u32 %v881, 65535
        %v912 = vshrl.u32 %v881, 16
        %v913 = vmul.u32 %v909, %v911
        %v914 = vmul.u32 %v909, %v912
        %v915 = vmul.u32 %v910, %v911
        %v916 = vmul.u32 %v910, %v912
        %v917 = vshll.u32 %v914, 16
        %v918 = vshrl.u32 %v914, 16
        %v919 = vshll.u32 %v915, 16
        %v920 = vshrl.u32 %v915, 16
        %vm921 = vc.u32 %v913, %v917
        %v922 = vsel %vm921, 1, 0
        %v923 = vadd.s32 %v913, %v917
        %v924 = vadd.s32 %v916, %v922
        %vm925 = vc.u32 %v923, %v919
        %v926 = vsel %vm925, 1, 0
        %v927 = vadd.s32 %v923, %v919
        %v928 = vadd.s32 %v924, %v926
        %v929 = vadd.s32 %v928, %v918
        %v930 = vadd.s32 %v929, %v920
        %v931 = vmul.u32 %v886, %v877
        %v932 = vadd.s32 %v908, %v927
        %vm933 = vc.u32 %v908, %v927
        %v934 = vadd.s32 %v930, 1
        %v935 = vsel %vm933, %v934, %v930
        %v936 = vadd.s32 %v931, %v935
        %v937 = vadd.s32 %v936, 536870912
        %v938 = vshrl.u32 %v937, 30
        %v939 = vshll.u32 %v938, 30
        %v940 = vsub.s32 %v936, %v939
        %vm941 = vcmp.lt.s32.totalorder %v940, 0
        %v942 = vsub.s32 0, %v940
        %v943 = vsel %vm941, %v942, %v940
        %v944 = vclz %v943
        %v945 = vsub.s32 %v944, 2
        %vm946 = vcmp.gt.s32.totalorder 0, %v945
        %v947 = vsel %vm946, 0, %v945
        %v948 = vsub.s32 32, %v947
        %v949 = vshll.u32 %v940, %v947
        %v950 = vshrl.u32 %v932, %v948
        %v951 = vor.u32 %v949, %v950
        %v952 = vsub.s32 4294967266, %v947
        %v953 = vadd.s32 %v952, 127
        %v954 = vshll.u32 %v953, 23
        %v955 = vor.u32 4788187, %v954
        %v956 = vand.u32 2147483647, %v955
        %v958 = vcvt.s32.f32 %v951
        %v959 = vmul.f32 %v958, %v956
        %v960 = vxor.u32 %v959, 2147483648
        %v961 = vsel %vm840, %v960, %v959
        %v962 = vsub.s32 4, %v938
        %v963 = vsel %vm840, %v962, %v938
        %v964 = vsel %vm839, %v363, %v961
        %v965 = vsel %vm839, 0, %v963
        %v966 = vmul.f32 %v964, %v964
        %v967 = vmul.f32 %v966, -0.001358992
        %v968 = vadd.f32 %v967, 0.041655596
        %v969 = vmul.f32 %v966, %v968
        %v970 = vadd.f32 %v969, -0.4999988
        %v971 = vmul.f32 %v966, %v970
        %v972 = vadd.f32 1.0, %v971
        %v973 = vmul.f32 %v964, %v964
        %v974 = vmul.f32 %v973, -0.00019511016
        %v975 = vadd.f32 %v974, 0.008332121
        %v976 = vmul.f32 %v973, %v975
        %v977 = vadd.f32 %v976, -0.16666654
        %v978 = vmul.f32 %v973, %v977
        %v979 = vadd.f32 %v978, 1.0
        %v980 = vmul.f32 %v979, %v964
        %vm981 = vweird.f32 %v363
        %v982 = vand.u32 %v965, 3
        %vm983 = vcmp.lt.s32.totalorder %v982, 2
        %vm984 = vcmp.eq.s32.totalorder %v982, 0
        %v985 = vxor.u32 %v980, 2147483648
        %v986 = vsel %vm984, %v972, %v985
        %vm987 = vcmp.eq.s32.totalorder %v982, 2
        %v988 = vxor.u32 %v972, 2147483648
        %v989 = vsel %vm987, %v988, %v980
        %v990 = vsel %vm983, %v986, %v989
        %v991 = vsel %vm981, nan, %v990
        %v992 = vand.u32 2147483647, %v364
        %vm993 = vcmp.le.f32.partialorder %v992, 0.7853982
        %vm994 = vcmp.lt.s32.totalorder %v364, 0
        %v995 = vand.u32 %v364, 2139095040
        %v996 = vshrl.u32 %v995, 23
        %v997 = vsub.s32 %v996, 127
        %v998 = vand.u32 2147483647, %v364
        %v999 = vand.u32 %v998, 8388607
        %v1000 = vor.u32 %v999, 8388608
        %v1001 = vsub.s32 0, %v1000
        %v1002 = vadd.s32 %v997, 1
        %vm1003 = vcmp.gt.s32.totalorder %v1002, 0
        %v1004 = vsel %vm1003, %v1002, 0
        %v1005 = vshrl.u32 %v1004, 5
        %v1006 = vand.u32 %v1004, 31
        %v1007 = vsub.s32 32, %v1006
        %v1008 = vshrl.u32 683565275, %v1007
        %v1009 = vshll.u32 683565275, %v1006
        %v1010 = vshrl.u32 2475754826, %v1007
        %v1011 = vor.u32 %v1009, %v1010
        %v1012 = vshll.u32 2475754826, %v1006
        %v1013 = vshrl.u32 2131351028, %v1007
        %v1014 = vor.u32 %v1012, %v1013
        %v1015 = vshll.u32 2131351028, %v1006
        %v1016 = vshrl.u32 2102212464, %v1007
        %v1017 = vor.u32 %v1015, %v1016
        %v1018 = vshll.u32 2102212464, %v1006
        %v1019 = vshrl.u32 920167782, %v1007
        %v1020 = vor.u32 %v1018, %v1019
        %v1021 = vshll.u32 920167782, %v1006
        %v1022 = vshrl.u32 1326507024, %v1007
        %v1023 = vor.u32 %v1021, %v1022
        %vm1024 = vcmp.lt.s32.totalorder %v1005, 1
        %vm1025 = vcmp.lt.s32.totalorder %v1005, 2
        %vm1026 = vcmp.lt.s32.totalorder %v1005, 3
        %vm1027 = vcmp.lt.s32.totalorder %v1005, 4
        %v1028 = vsel %vm1024, %v1008, %v1011
        %v1029 = vsel %vm1027, %v1017, 2102212464
        %v1030 = vsel %vm1026, %v1014, %v1029
        %v1031 = vsel %vm1025, %v1028, %v1030
        %v1032 = vsel %vm1024, %v1011, %v1014
        %v1033 = vsel %vm1027, %v1020, 920167782
        %v1034 = vsel %vm1026, %v1017, %v1033
        %v1035 = vsel %vm1025, %v1032, %v1034
        %v1036 = vsel %vm1024, %v1014, %v1017
        %v1037 = vsel %vm1027, %v1023, 1326507024
        %v1038 = vsel %vm1026, %v1020, %v1037
        %v1039 = vsel %vm1025, %v1036, %v1038
        %v1040 = vshll.u32 %v1000, 8
        %v1041 = vand.u32 %v1040, 65535
        %v1042 = vshrl.u32 %v1040, 16
        %v1043 = vand.u32 %v1039, 65535
        %v1044 = vshrl.u32 %v1039, 16
        %v1045 = vmul.u32 %v1041, %v1043
        %v1046 = vmul.u32 %v1041, %v1044
        %v1047 = vmul.u32 %v1042, %v1043
        %v1048 = vmul.u32 %v1042, %v1044
        %v1049 = vshll.u32 %v1046, 16
        %v1050 = vshrl.u32 %v1046, 16
        %v1051 = vshll.u32 %v1047, 16
        %v1052 = vshrl.u32 %v1047, 16
        %vm1053 = vc.u32 %v1045, %v1049
        %v1054 = vsel %vm1053, 1, 0
        %v1055 = vadd.s32 %v1045, %v1049
        %v1056 = vadd.s32 %v1048, %v1054
        %vm1057 = vc.u32 %v1055, %v1051
        %v1058 = vsel %vm1057, 1, 0
        %v1059 = vadd.s32 %v1055, %v1051
        %v1060 = vadd.s32 %v1056, %v1058
        %v1061 = vadd.s32 %v1060, %v1050
        %v1062 = vadd.s32 %v1061, %v1052
        %v1063 = vand.u32 %v1040, 65535
        %v1064 = vshrl.u32 %v1040, 16
        %v1065 = vand.u32 %v1035, 65535
        %v1066 = vshrl.u32 %v1035, 16
        %v1067 = vmul.u32 %v1063, %v1065
        %v1068 = vmul.u32 %v1063, %v1066
        %v1069 = vmul.u32 %v1064, %v1065
        %v1070 = vmul.u32 %v1064, %v1066
        %v1071 = vshll.u32 %v1068, 16
        %v1072 = vshrl.u32 %v1068, 16
        %v1073 = vshll.u32 %v1069, 16
        %v1074 = vshrl.u32 %v1069, 16
        %vm1075 = vc.u32 %v1067, %v1071
        %v1076 = vsel %vm1075, 1, 0
        %v1077 = vadd.s32 %v1067, %v1071
        %v1078 = vadd.s32 %v1070, %v1076
        %vm1079 = vc.u32 %v1077, %v1073
        %v1080 = vsel %vm1079, 1, 0
        %v1081 = vadd.s32 %v1077, %v1073
        %v1082 = vadd.s32 %v1078, %v1080
        %v1083 = vadd.s32 %v1082, %v1072
        %v1084 = vadd.s32 %v1083, %v1074
        %v1085 = vmul.u32 %v1040, %v1031
        %v1086 = vadd.s32 %v1062, %v1081
        %vm1087 = vc.u32 %v1062, %v1081
        %v1088 = vadd.s32 %v1084, 1
        %v1089 = vsel %vm1087, %v1088, %v1084
        %v1090 = vadd.s32 %v1085, %v1089
        %v1091 = vadd.s32 %v1090, 536870912
        %v1092 = vshrl.u32 %v1091, 30
        %v1093 = vshll.u32 %v1092, 30
        %v1094 = vsub.s32 %v1090, %v1093
        %vm1095 = vcmp.lt.s32.totalorder %v1094, 0
        %v1096 = vsub.s32 0, %v1094
        %v1097 = vsel %vm1095, %v1096, %v1094
        %v1098 = vclz %v1097
        %v1099 = vsub.s32 %v1098, 2
        %vm1100 = vcmp.gt.s32.totalorder 0, %v1099
        %v1101 = vsel %vm1100, 0, %v1099
        %v1102 = vsub.s32 32, %v1101
        %v1103 = vshll.u32 %v1094, %v1101
        %v1104 = vshrl.u32 %v1086, %v1102
        %v1105 = vor.u32 %v1103, %v1104
        %v1106 = vsub.s32 4294967266, %v1101
        %v1107 = vadd.s32 %v1106, 127
        %v1108 = vshll.u32 %v1107, 23
        %v1109 = vor.u32 4788187, %v1108
        %v1110 = vand.u32 2147483647, %v1109
        %v1112 = vcvt.s32.f32 %v1105
        %v1113 = vmul.f32 %v1112, %v1110
        %v1114 = vxor.u32 %v1113, 2147483648
        %v1115 = vsel %vm994, %v1114, %v1113
        %v1116 = vsub.s32 4, %v1092
        %v1117 = vsel %vm994, %v1116, %v1092
        %v1118 = vsel %vm993, %v364, %v1115
        %v1119 = vsel %vm993, 0, %v1117
        %v1120 = vmul.f32 %v1118, %v1118
        %v1121 = vmul.f32 %v1120, -0.001358992
        %v1122 = vadd.f32 %v1121, 0.041655596
        %v1123 = vmul.f32 %v1120, %v1122
        %v1124 = vadd.f32 %v1123, -0.4999988
        %v1125 = vmul.f32 %v1120, %v1124
        %v1126 = vadd.f32 1.0, %v1125
        %v1127 = vmul.f32 %v1118, %v1118
        %v1128 = vmul.f32 %v1127, -0.00019511016
        %v1129 = vadd.f32 %v1128, 0.008332121
        %v1130 = vmul.f32 %v1127, %v1129
        %v1131 = vadd.f32 %v1130, -0.16666654
        %v1132 = vmul.f32 %v1127, %v1131
        %v1133 = vadd.f32 %v1132, 1.0
        %v1134 = vmul.f32 %v1133, %v1118
        %vm1135 = vweird.f32 %v364
        %v1136 = vand.u32 %v1119, 3
        %vm1137 = vcmp.lt.s32.totalorder %v1136, 2
        %vm1138 = vcmp.eq.s32.totalorder %v1136, 0
        %v1139 = vxor.u32 %v1134, 2147483648
        %v1140 = vsel %vm1138, %v1126, %v1139
        %vm1141 = vcmp.eq.s32.totalorder %v1136, 2
        %v1142 = vxor.u32 %v1126, 2147483648
        %v1143 = vsel %vm1141, %v1142, %v1134
        %v1144 = vsel %vm1137, %v1140, %v1143
        %v1145 = vsel %vm1135, nan, %v1144
        %v1146 = vand.u32 2147483647, %v365
        %vm1147 = vcmp.le.f32.partialorder %v1146, 0.7853982
        %vm1148 = vcmp.lt.s32.totalorder %v365, 0
        %v1149 = vand.u32 %v365, 2139095040
        %v1150 = vshrl.u32 %v1149, 23
        %v1151 = vsub.s32 %v1150, 127
        %v1152 = vand.u32 2147483647, %v365
        %v1153 = vand.u32 %v1152, 8388607
        %v1154 = vor.u32 %v1153, 8388608
        %v1155 = vsub.s32 0, %v1154
        %v1156 = vadd.s32 %v1151, 1
        %vm1157 = vcmp.gt.s32.totalorder %v1156, 0
        %v1158 = vsel %vm1157, %v1156, 0
        %v1159 = vshrl.u32 %v1158, 5
        %v1160 = vand.u32 %v1158, 31
        %v1161 = vsub.s32 32, %v1160
        %v1162 = vshrl.u32 683565275, %v1161
        %v1163 = vshll.u32 683565275, %v1160
        %v1164 = vshrl.u32 2475754826, %v1161
        %v1165 = vor.u32 %v1163, %v1164
        %v1166 = vshll.u32 2475754826, %v1160
        %v1167 = vshrl.u32 2131351028, %v1161
        %v1168 = vor.u32 %v1166, %v1167
        %v1169 = vshll.u32 2131351028, %v1160
        %v1170 = vshrl.u32 2102212464, %v1161
        %v1171 = vor.u32 %v1169, %v1170
        %v1172 = vshll.u32 2102212464, %v1160
        %v1173 = vshrl.u32 920167782, %v1161
        %v1174 = vor.u32 %v1172, %v1173
        %v1175 = vshll.u32 920167782, %v1160
        %v1176 = vshrl.u32 1326507024, %v1161
        %v1177 = vor.u32 %v1175, %v1176
        %vm1178 = vcmp.lt.s32.totalorder %v1159, 1
        %vm1179 = vcmp.lt.s32.totalorder %v1159, 2
        %vm1180 = vcmp.lt.s32.totalorder %v1159, 3
        %vm1181 = vcmp.lt.s32.totalorder %v1159, 4
        %v1182 = vsel %vm1178, %v1162, %v1165
        %v1183 = vsel %vm1181, %v1171, 2102212464
        %v1184 = vsel %vm1180, %v1168, %v1183
        %v1185 = vsel %vm1179, %v1182, %v1184
        %v1186 = vsel %vm1178, %v1165, %v1168
        %v1187 = vsel %vm1181, %v1174, 920167782
        %v1188 = vsel %vm1180, %v1171, %v1187
        %v1189 = vsel %vm1179, %v1186, %v1188
        %v1190 = vsel %vm1178, %v1168, %v1171
        %v1191 = vsel %vm1181, %v1177, 1326507024
        %v1192 = vsel %vm1180, %v1174, %v1191
        %v1193 = vsel %vm1179, %v1190, %v1192
        %v1194 = vshll.u32 %v1154, 8
        %v1195 = vand.u32 %v1194, 65535
        %v1196 = vshrl.u32 %v1194, 16
        %v1197 = vand.u32 %v1193, 65535
        %v1198 = vshrl.u32 %v1193, 16
        %v1199 = vmul.u32 %v1195, %v1197
        %v1200 = vmul.u32 %v1195, %v1198
        %v1201 = vmul.u32 %v1196, %v1197
        %v1202 = vmul.u32 %v1196, %v1198
        %v1203 = vshll.u32 %v1200, 16
        %v1204 = vshrl.u32 %v1200, 16
        %v1205 = vshll.u32 %v1201, 16
        %v1206 = vshrl.u32 %v1201, 16
        %vm1207 = vc.u32 %v1199, %v1203
        %v1208 = vsel %vm1207, 1, 0
        %v1209 = vadd.s32 %v1199, %v1203
        %v1210 = vadd.s32 %v1202, %v1208
        %vm1211 = vc.u32 %v1209, %v1205
        %v1212 = vsel %vm1211, 1, 0
        %v1213 = vadd.s32 %v1209, %v1205
        %v1214 = vadd.s32 %v1210, %v1212
        %v1215 = vadd.s32 %v1214, %v1204
        %v1216 = vadd.s32 %v1215, %v1206
        %v1217 = vand.u32 %v1194, 65535
        %v1218 = vshrl.u32 %v1194, 16
        %v1219 = vand.u32 %v1189, 65535
        %v1220 = vshrl.u32 %v1189, 16
        %v1221 = vmul.u32 %v1217, %v1219
        %v1222 = vmul.u32 %v1217, %v1220
        %v1223 = vmul.u32 %v1218, %v1219
        %v1224 = vmul.u32 %v1218, %v1220
        %v1225 = vshll.u32 %v1222, 16
        %v1226 = vshrl.u32 %v1222, 16
        %v1227 = vshll.u32 %v1223, 16
        %v1228 = vshrl.u32 %v1223, 16
        %vm1229 = vc.u32 %v1221, %v1225
        %v1230 = vsel %vm1229, 1, 0
        %v1231 = vadd.s32 %v1221, %v1225
        %v1232 = vadd.s32 %v1224, %v1230
        %vm1233 = vc.u32 %v1231, %v1227
        %v1234 = vsel %vm1233, 1, 0
        %v1235 = vadd.s32 %v1231, %v1227
        %v1236 = vadd.s32 %v1232, %v1234
        %v1237 = vadd.s32 %v1236, %v1226
        %v1238 = vadd.s32 %v1237, %v1228
        %v1239 = vmul.u32 %v1194, %v1185
        %v1240 = vadd.s32 %v1216, %v1235
        %vm1241 = vc.u32 %v1216, %v1235
        %v1242 = vadd.s32 %v1238, 1
        %v1243 = vsel %vm1241, %v1242, %v1238
        %v1244 = vadd.s32 %v1239, %v1243
        %v1245 = vadd.s32 %v1244, 536870912
        %v1246 = vshrl.u32 %v1245, 30
        %v1247 = vshll.u32 %v1246, 30
        %v1248 = vsub.s32 %v1244, %v1247
        %vm1249 = vcmp.lt.s32.totalorder %v1248, 0
        %v1250 = vsub.s32 0, %v1248
        %v1251 = vsel %vm1249, %v1250, %v1248
        %v1252 = vclz %v1251
        %v1253 = vsub.s32 %v1252, 2
        %vm1254 = vcmp.gt.s32.totalorder 0, %v1253
        %v1255 = vsel %vm1254, 0, %v1253
        %v1256 = vsub.s32 32, %v1255
        %v1257 = vshll.u32 %v1248, %v1255
        %v1258 = vshrl.u32 %v1240, %v1256
        %v1259 = vor.u32 %v1257, %v1258
        %v1260 = vsub.s32 4294967266, %v1255
        %v1261 = vadd.s32 %v1260, 127
        %v1262 = vshll.u32 %v1261, 23
        %v1263 = vor.u32 4788187, %v1262
        %v1264 = vand.u32 2147483647, %v1263
        %v1266 = vcvt.s32.f32 %v1259
        %v1267 = vmul.f32 %v1266, %v1264
        %v1268 = vxor.u32 %v1267, 2147483648
        %v1269 = vsel %vm1148, %v1268, %v1267
        %v1270 = vsub.s32 4, %v1246
        %v1271 = vsel %vm1148, %v1270, %v1246
        %v1272 = vsel %vm1147, %v365, %v1269
        %v1273 = vsel %vm1147, 0, %v1271
        %v1274 = vmul.f32 %v1272, %v1272
        %v1275 = vmul.f32 %v1274, -0.001358992
        %v1276 = vadd.f32 %v1275, 0.041655596
        %v1277 = vmul.f32 %v1274, %v1276
        %v1278 = vadd.f32 %v1277, -0.4999988
        %v1279 = vmul.f32 %v1274, %v1278
        %v1280 = vadd.f32 1.0, %v1279
        %v1281 = vmul.f32 %v1272, %v1272
        %v1282 = vmul.f32 %v1281, -0.00019511016
        %v1283 = vadd.f32 %v1282, 0.008332121
        %v1284 = vmul.f32 %v1281, %v1283
        %v1285 = vadd.f32 %v1284, -0.16666654
        %v1286 = vmul.f32 %v1281, %v1285
        %v1287 = vadd.f32 %v1286, 1.0
        %v1288 = vmul.f32 %v1287, %v1272
        %vm1289 = vweird.f32 %v365
        %v1290 = vand.u32 %v1273, 3
        %vm1291 = vcmp.lt.s32.totalorder %v1290, 2
        %vm1292 = vcmp.eq.s32.totalorder %v1290, 0
        %v1293 = vxor.u32 %v1288, 2147483648
        %v1294 = vsel %vm1292, %v1280, %v1293
        %vm1295 = vcmp.eq.s32.totalorder %v1290, 2
        %v1296 = vxor.u32 %v1280, 2147483648
        %v1297 = vsel %vm1295, %v1296, %v1288
        %v1298 = vsel %vm1291, %v1294, %v1297
        %v1299 = vsel %vm1289, nan, %v1298
        %v1300 = vand.u32 2147483647, %v366
        %vm1301 = vcmp.le.f32.partialorder %v1300, 0.7853982
        %vm1302 = vcmp.lt.s32.totalorder %v366, 0
        %v1303 = vand.u32 %v366, 2139095040
        %v1304 = vshrl.u32 %v1303, 23
        %v1305 = vsub.s32 %v1304, 127
        %v1306 = vand.u32 2147483647, %v366
        %v1307 = vand.u32 %v1306, 8388607
        %v1308 = vor.u32 %v1307, 8388608
        %v1309 = vsub.s32 0, %v1308
        %v1310 = vadd.s32 %v1305, 1
        %vm1311 = vcmp.gt.s32.totalorder %v1310, 0
        %v1312 = vsel %vm1311, %v1310, 0
        %v1313 = vshrl.u32 %v1312, 5
        %v1314 = vand.u32 %v1312, 31
        %v1315 = vsub.s32 32, %v1314
        %v1316 = vshrl.u32 683565275, %v1315
        %v1317 = vshll.u32 683565275, %v1314
        %v1318 = vshrl.u32 2475754826, %v1315
        %v1319 = vor.u32 %v1317, %v1318
        %v1320 = vshll.u32 2475754826, %v1314
        %v1321 = vshrl.u32 2131351028, %v1315
        %v1322 = vor.u32 %v1320, %v1321
        %v1323 = vshll.u32 2131351028, %v1314
        %v1324 = vshrl.u32 2102212464, %v1315
        %v1325 = vor.u32 %v1323, %v1324
        %v1326 = vshll.u32 2102212464, %v1314
        %v1327 = vshrl.u32 920167782, %v1315
        %v1328 = vor.u32 %v1326, %v1327
        %v1329 = vshll.u32 920167782, %v1314
        %v1330 = vshrl.u32 1326507024, %v1315
        %v1331 = vor.u32 %v1329, %v1330
        %vm1332 = vcmp.lt.s32.totalorder %v1313, 1
        %vm1333 = vcmp.lt.s32.totalorder %v1313, 2
        %vm1334 = vcmp.lt.s32.totalorder %v1313, 3
        %vm1335 = vcmp.lt.s32.totalorder %v1313, 4
        %v1336 = vsel %vm1332, %v1316, %v1319
        %v1337 = vsel %vm1335, %v1325, 2102212464
        %v1338 = vsel %vm1334, %v1322, %v1337
        %v1339 = vsel %vm1333, %v1336, %v1338
        %v1340 = vsel %vm1332, %v1319, %v1322
        %v1341 = vsel %vm1335, %v1328, 920167782
        %v1342 = vsel %vm1334, %v1325, %v1341
        %v1343 = vsel %vm1333, %v1340, %v1342
        %v1344 = vsel %vm1332, %v1322, %v1325
        %v1345 = vsel %vm1335, %v1331, 1326507024
        %v1346 = vsel %vm1334, %v1328, %v1345
        %v1347 = vsel %vm1333, %v1344, %v1346
        %v1348 = vshll.u32 %v1308, 8
        %v1349 = vand.u32 %v1348, 65535
        %v1350 = vshrl.u32 %v1348, 16
        %v1351 = vand.u32 %v1347, 65535
        %v1352 = vshrl.u32 %v1347, 16
        %v1353 = vmul.u32 %v1349, %v1351
        %v1354 = vmul.u32 %v1349, %v1352
        %v1355 = vmul.u32 %v1350, %v1351
        %v1356 = vmul.u32 %v1350, %v1352
        %v1357 = vshll.u32 %v1354, 16
        %v1358 = vshrl.u32 %v1354, 16
        %v1359 = vshll.u32 %v1355, 16
        %v1360 = vshrl.u32 %v1355, 16
        %vm1361 = vc.u32 %v1353, %v1357
        %v1362 = vsel %vm1361, 1, 0
        %v1363 = vadd.s32 %v1353, %v1357
        %v1364 = vadd.s32 %v1356, %v1362
        %vm1365 = vc.u32 %v1363, %v1359
        %v1366 = vsel %vm1365, 1, 0
        %v1367 = vadd.s32 %v1363, %v1359
        %v1368 = vadd.s32 %v1364, %v1366
        %v1369 = vadd.s32 %v1368, %v1358
        %v1370 = vadd.s32 %v1369, %v1360
        %v1371 = vand.u32 %v1348, 65535
        %v1372 = vshrl.u32 %v1348, 16
        %v1373 = vand.u32 %v1343, 65535
        %v1374 = vshrl.u32 %v1343, 16
        %v1375 = vmul.u32 %v1371, %v1373
        %v1376 = vmul.u32 %v1371, %v1374
        %v1377 = vmul.u32 %v1372, %v1373
        %v1378 = vmul.u32 %v1372, %v1374
        %v1379 = vshll.u32 %v1376, 16
        %v1380 = vshrl.u32 %v1376, 16
        %v1381 = vshll.u32 %v1377, 16
        %v1382 = vshrl.u32 %v1377, 16
        %vm1383 = vc.u32 %v1375, %v1379
        %v1384 = vsel %vm1383, 1, 0
        %v1385 = vadd.s32 %v1375, %v1379
        %v1386 = vadd.s32 %v1378, %v1384
        %vm1387 = vc.u32 %v1385, %v1381
        %v1388 = vsel %vm1387, 1, 0
        %v1389 = vadd.s32 %v1385, %v1381
        %v1390 = vadd.s32 %v1386, %v1388
        %v1391 = vadd.s32 %v1390, %v1380
        %v1392 = vadd.s32 %v1391, %v1382
        %v1393 = vmul.u32 %v1348, %v1339
        %v1394 = vadd.s32 %v1370, %v1389
        %vm1395 = vc.u32 %v1370, %v1389
        %v1396 = vadd.s32 %v1392, 1
        %v1397 = vsel %vm1395, %v1396, %v1392
        %v1398 = vadd.s32 %v1393, %v1397
        %v1399 = vadd.s32 %v1398, 536870912
        %v1400 = vshrl.u32 %v1399, 30
        %v1401 = vshll.u32 %v1400, 30
        %v1402 = vsub.s32 %v1398, %v1401
        %vm1403 = vcmp.lt.s32.totalorder %v1402, 0
        %v1404 = vsub.s32 0, %v1402
        %v1405 = vsel %vm1403, %v1404, %v1402
        %v1406 = vclz %v1405
        %v1407 = vsub.s32 %v1406, 2
        %vm1408 = vcmp.gt.s32.totalorder 0, %v1407
        %v1409 = vsel %vm1408, 0, %v1407
        %v1410 = vsub.s32 32, %v1409
        %v1411 = vshll.u32 %v1402, %v1409
        %v1412 = vshrl.u32 %v1394, %v1410
        %v1413 = vor.u32 %v1411, %v1412
        %v1414 = vsub.s32 4294967266, %v1409
        %v1415 = vadd.s32 %v1414, 127
        %v1416 = vshll.u32 %v1415, 23
        %v1417 = vor.u32 4788187, %v1416
        %v1418 = vand.u32 2147483647, %v1417
        %v1420 = vcvt.s32.f32 %v1413
        %v1421 = vmul.f32 %v1420, %v1418
        %v1422 = vxor.u32 %v1421, 2147483648
        %v1423 = vsel %vm1302, %v1422, %v1421
        %v1424 = vsub.s32 4, %v1400
        %v1425 = vsel %vm1302, %v1424, %v1400
        %v1426 = vsel %vm1301, %v366, %v1423
        %v1427 = vsel %vm1301, 0, %v1425
        %v1428 = vmul.f32 %v1426, %v1426
        %v1429 = vmul.f32 %v1428, -0.001358992
        %v1430 = vadd.f32 %v1429, 0.041655596
        %v1431 = vmul.f32 %v1428, %v1430
        %v1432 = vadd.f32 %v1431, -0.4999988
        %v1433 = vmul.f32 %v1428, %v1432
        %v1434 = vadd.f32 1.0, %v1433
        %v1435 = vmul.f32 %v1426, %v1426
        %v1436 = vmul.f32 %v1435, -0.00019511016
        %v1437 = vadd.f32 %v1436, 0.008332121
        %v1438 = vmul.f32 %v1435, %v1437
        %v1439 = vadd.f32 %v1438, -0.16666654
        %v1440 = vmul.f32 %v1435, %v1439
        %v1441 = vadd.f32 %v1440, 1.0
        %v1442 = vmul.f32 %v1441, %v1426
        %vm1443 = vweird.f32 %v366
        %v1444 = vand.u32 %v1427, 3
        %vm1445 = vcmp.lt.s32.totalorder %v1444, 2
        %vm1446 = vcmp.eq.s32.totalorder %v1444, 0
        %v1447 = vxor.u32 %v1442, 2147483648
        %v1448 = vsel %vm1446, %v1434, %v1447
        %vm1449 = vcmp.eq.s32.totalorder %v1444, 2
        %v1450 = vxor.u32 %v1434, 2147483648
        %v1451 = vsel %vm1449, %v1450, %v1442
        %v1452 = vsel %vm1445, %v1448, %v1451
        %v1453 = vsel %vm1443, nan, %v1452
        %v1454 = vand.u32 2147483647, %v367
        %vm1455 = vcmp.le.f32.partialorder %v1454, 0.7853982
        %vm1456 = vcmp.lt.s32.totalorder %v367, 0
        %v1457 = vand.u32 %v367, 2139095040
        %v1458 = vshrl.u32 %v1457, 23
        %v1459 = vsub.s32 %v1458, 127
        %v1460 = vand.u32 2147483647, %v367
        %v1461 = vand.u32 %v1460, 8388607
        %v1462 = vor.u32 %v1461, 8388608
        %v1463 = vsub.s32 0, %v1462
        %v1464 = vadd.s32 %v1459, 1
        %vm1465 = vcmp.gt.s32.totalorder %v1464, 0
        %v1466 = vsel %vm1465, %v1464, 0
        %v1467 = vshrl.u32 %v1466, 5
        %v1468 = vand.u32 %v1466, 31
        %v1469 = vsub.s32 32, %v1468
        %v1470 = vshrl.u32 683565275, %v1469
        %v1471 = vshll.u32 683565275, %v1468
        %v1472 = vshrl.u32 2475754826, %v1469
        %v1473 = vor.u32 %v1471, %v1472
        %v1474 = vshll.u32 2475754826, %v1468
        %v1475 = vshrl.u32 2131351028, %v1469
        %v1476 = vor.u32 %v1474, %v1475
        %v1477 = vshll.u32 2131351028, %v1468
        %v1478 = vshrl.u32 2102212464, %v1469
        %v1479 = vor.u32 %v1477, %v1478
        %v1480 = vshll.u32 2102212464, %v1468
        %v1481 = vshrl.u32 920167782, %v1469
        %v1482 = vor.u32 %v1480, %v1481
        %v1483 = vshll.u32 920167782, %v1468
        %v1484 = vshrl.u32 1326507024, %v1469
        %v1485 = vor.u32 %v1483, %v1484
        %vm1486 = vcmp.lt.s32.totalorder %v1467, 1
        %vm1487 = vcmp.lt.s32.totalorder %v1467, 2
        %vm1488 = vcmp.lt.s32.totalorder %v1467, 3
        %vm1489 = vcmp.lt.s32.totalorder %v1467, 4
        %v1490 = vsel %vm1486, %v1470, %v1473
        %v1491 = vsel %vm1489, %v1479, 2102212464
        %v1492 = vsel %vm1488, %v1476, %v1491
        %v1493 = vsel %vm1487, %v1490, %v1492
        %v1494 = vsel %vm1486, %v1473, %v1476
        %v1495 = vsel %vm1489, %v1482, 920167782
        %v1496 = vsel %vm1488, %v1479, %v1495
        %v1497 = vsel %vm1487, %v1494, %v1496
        %v1498 = vsel %vm1486, %v1476, %v1479
        %v1499 = vsel %vm1489, %v1485, 1326507024
        %v1500 = vsel %vm1488, %v1482, %v1499
        %v1501 = vsel %vm1487, %v1498, %v1500
        %v1502 = vshll.u32 %v1462, 8
        %v1503 = vand.u32 %v1502, 65535
        %v1504 = vshrl.u32 %v1502, 16
        %v1505 = vand.u32 %v1501, 65535
        %v1506 = vshrl.u32 %v1501, 16
        %v1507 = vmul.u32 %v1503, %v1505
        %v1508 = vmul.u32 %v1503, %v1506
        %v1509 = vmul.u32 %v1504, %v1505
        %v1510 = vmul.u32 %v1504, %v1506
        %v1511 = vshll.u32 %v1508, 16
        %v1512 = vshrl.u32 %v1508, 16
        %v1513 = vshll.u32 %v1509, 16
        %v1514 = vshrl.u32 %v1509, 16
        %vm1515 = vc.u32 %v1507, %v1511
        %v1516 = vsel %vm1515, 1, 0
        %v1517 = vadd.s32 %v1507, %v1511
        %v1518 = vadd.s32 %v1510, %v1516
        %vm1519 = vc.u32 %v1517, %v1513
        %v1520 = vsel %vm1519, 1, 0
        %v1521 = vadd.s32 %v1517, %v1513
        %v1522 = vadd.s32 %v1518, %v1520
        %v1523 = vadd.s32 %v1522, %v1512
        %v1524 = vadd.s32 %v1523, %v1514
        %v1525 = vand.u32 %v1502, 65535
        %v1526 = vshrl.u32 %v1502, 16
        %v1527 = vand.u32 %v1497, 65535
        %v1528 = vshrl.u32 %v1497, 16
        %v1529 = vmul.u32 %v1525, %v1527
        %v1530 = vmul.u32 %v1525, %v1528
        %v1531 = vmul.u32 %v1526, %v1527
        %v1532 = vmul.u32 %v1526, %v1528
        %v1533 = vshll.u32 %v1530, 16
        %v1534 = vshrl.u32 %v1530, 16
        %v1535 = vshll.u32 %v1531, 16
        %v1536 = vshrl.u32 %v1531, 16
        %vm1537 = vc.u32 %v1529, %v1533
        %v1538 = vsel %vm1537, 1, 0
        %v1539 = vadd.s32 %v1529, %v1533
        %v1540 = vadd.s32 %v1532, %v1538
        %vm1541 = vc.u32 %v1539, %v1535
        %v1542 = vsel %vm1541, 1, 0
        %v1543 = vadd.s32 %v1539, %v1535
        %v1544 = vadd.s32 %v1540, %v1542
        %v1545 = vadd.s32 %v1544, %v1534
        %v1546 = vadd.s32 %v1545, %v1536
        %v1547 = vmul.u32 %v1502, %v1493
        %v1548 = vadd.s32 %v1524, %v1543
        %vm1549 = vc.u32 %v1524, %v1543
        %v1550 = vadd.s32 %v1546, 1
        %v1551 = vsel %vm1549, %v1550, %v1546
        %v1552 = vadd.s32 %v1547, %v1551
        %v1553 = vadd.s32 %v1552, 536870912
        %v1554 = vshrl.u32 %v1553, 30
        %v1555 = vshll.u32 %v1554, 30
        %v1556 = vsub.s32 %v1552, %v1555
        %vm1557 = vcmp.lt.s32.totalorder %v1556, 0
        %v1558 = vsub.s32 0, %v1556
        %v1559 = vsel %vm1557, %v1558, %v1556
        %v1560 = vclz %v1559
        %v1561 = vsub.s32 %v1560, 2
        %vm1562 = vcmp.gt.s32.totalorder 0, %v1561
        %v1563 = vsel %vm1562, 0, %v1561
        %v1564 = vsub.s32 32, %v1563
        %v1565 = vshll.u32 %v1556, %v1563
        %v1566 = vshrl.u32 %v1548, %v1564
        %v1567 = vor.u32 %v1565, %v1566
        %v1568 = vsub.s32 4294967266, %v1563
        %v1569 = vadd.s32 %v1568, 127
        %v1570 = vshll.u32 %v1569, 23
        %v1571 = vor.u32 4788187, %v1570
        %v1572 = vand.u32 2147483647, %v1571
        %v1574 = vcvt.s32.f32 %v1567
        %v1575 = vmul.f32 %v1574, %v1572
        %v1576 = vxor.u32 %v1575, 2147483648
        %v1577 = vsel %vm1456, %v1576, %v1575
        %v1578 = vsub.s32 4, %v1554
        %v1579 = vsel %vm1456, %v1578, %v1554
        %v1580 = vsel %vm1455, %v367, %v1577
        %v1581 = vsel %vm1455, 0, %v1579
        %v1582 = vmul.f32 %v1580, %v1580
        %v1583 = vmul.f32 %v1582, -0.001358992
        %v1584 = vadd.f32 %v1583, 0.041655596
        %v1585 = vmul.f32 %v1582, %v1584
        %v1586 = vadd.f32 %v1585, -0.4999988
        %v1587 = vmul.f32 %v1582, %v1586
        %v1588 = vadd.f32 1.0, %v1587
        %v1589 = vmul.f32 %v1580, %v1580
        %v1590 = vmul.f32 %v1589, -0.00019511016
        %v1591 = vadd.f32 %v1590, 0.008332121
        %v1592 = vmul.f32 %v1589, %v1591
        %v1593 = vadd.f32 %v1592, -0.16666654
        %v1594 = vmul.f32 %v1589, %v1593
        %v1595 = vadd.f32 %v1594, 1.0
        %v1596 = vmul.f32 %v1595, %v1580
        %vm1597 = vweird.f32 %v367
        %v1598 = vand.u32 %v1581, 3
        %vm1599 = vcmp.lt.s32.totalorder %v1598, 2
        %vm1600 = vcmp.eq.s32.totalorder %v1598, 0
        %v1601 = vxor.u32 %v1596, 2147483648
        %v1602 = vsel %vm1600, %v1588, %v1601
        %vm1603 = vcmp.eq.s32.totalorder %v1598, 2
        %v1604 = vxor.u32 %v1588, 2147483648
        %v1605 = vsel %vm1603, %v1604, %v1596
        %v1606 = vsel %vm1599, %v1602, %v1605
        %v1607 = vsel %vm1597, nan, %v1606
        %v1608 = vand.u32 2147483647, %v368
        %vm1609 = vcmp.le.f32.partialorder %v1608, 0.7853982
        %vm1610 = vcmp.lt.s32.totalorder %v368, 0
        %v1611 = vand.u32 %v368, 2139095040
        %v1612 = vshrl.u32 %v1611, 23
        %v1613 = vsub.s32 %v1612, 127
        %v1614 = vand.u32 2147483647, %v368
        %v1615 = vand.u32 %v1614, 8388607
        %v1616 = vor.u32 %v1615, 8388608
        %v1617 = vsub.s32 0, %v1616
        %v1618 = vadd.s32 %v1613, 1
        %vm1619 = vcmp.gt.s32.totalorder %v1618, 0
        %v1620 = vsel %vm1619, %v1618, 0
        %v1621 = vshrl.u32 %v1620, 5
        %v1622 = vand.u32 %v1620, 31
        %v1623 = vsub.s32 32, %v1622
        %v1624 = vshrl.u32 683565275, %v1623
        %v1625 = vshll.u32 683565275, %v1622
        %v1626 = vshrl.u32 2475754826, %v1623
        %v1627 = vor.u32 %v1625, %v1626
        %v1628 = vshll.u32 2475754826, %v1622
        %v1629 = vshrl.u32 2131351028, %v1623
        %v1630 = vor.u32 %v1628, %v1629
        %v1631 = vshll.u32 2131351028, %v1622
        %v1632 = vshrl.u32 2102212464, %v1623
        %v1633 = vor.u32 %v1631, %v1632
        %v1634 = vshll.u32 2102212464, %v1622
        %v1635 = vshrl.u32 920167782, %v1623
        %v1636 = vor.u32 %v1634, %v1635
        %v1637 = vshll.u32 920167782, %v1622
        %v1638 = vshrl.u32 1326507024, %v1623
        %v1639 = vor.u32 %v1637, %v1638
        %vm1640 = vcmp.lt.s32.totalorder %v1621, 1
        %vm1641 = vcmp.lt.s32.totalorder %v1621, 2
        %vm1642 = vcmp.lt.s32.totalorder %v1621, 3
        %vm1643 = vcmp.lt.s32.totalorder %v1621, 4
        %v1644 = vsel %vm1640, %v1624, %v1627
        %v1645 = vsel %vm1643, %v1633, 2102212464
        %v1646 = vsel %vm1642, %v1630, %v1645
        %v1647 = vsel %vm1641, %v1644, %v1646
        %v1648 = vsel %vm1640, %v1627, %v1630
        %v1649 = vsel %vm1643, %v1636, 920167782
        %v1650 = vsel %vm1642, %v1633, %v1649
        %v1651 = vsel %vm1641, %v1648, %v1650
        %v1652 = vsel %vm1640, %v1630, %v1633
        %v1653 = vsel %vm1643, %v1639, 1326507024
        %v1654 = vsel %vm1642, %v1636, %v1653
        %v1655 = vsel %vm1641, %v1652, %v1654
        %v1656 = vshll.u32 %v1616, 8
        %v1657 = vand.u32 %v1656, 65535
        %v1658 = vshrl.u32 %v1656, 16
        %v1659 = vand.u32 %v1655, 65535
        %v1660 = vshrl.u32 %v1655, 16
        %v1661 = vmul.u32 %v1657, %v1659
        %v1662 = vmul.u32 %v1657, %v1660
        %v1663 = vmul.u32 %v1658, %v1659
        %v1664 = vmul.u32 %v1658, %v1660
        %v1665 = vshll.u32 %v1662, 16
        %v1666 = vshrl.u32 %v1662, 16
        %v1667 = vshll.u32 %v1663, 16
        %v1668 = vshrl.u32 %v1663, 16
        %vm1669 = vc.u32 %v1661, %v1665
        %v1670 = vsel %vm1669, 1, 0
        %v1671 = vadd.s32 %v1661, %v1665
        %v1672 = vadd.s32 %v1664, %v1670
        %vm1673 = vc.u32 %v1671, %v1667
        %v1674 = vsel %vm1673, 1, 0
        %v1675 = vadd.s32 %v1671, %v1667
        %v1676 = vadd.s32 %v1672, %v1674
        %v1677 = vadd.s32 %v1676, %v1666
        %v1678 = vadd.s32 %v1677, %v1668
        %v1679 = vand.u32 %v1656, 65535
        %v1680 = vshrl.u32 %v1656, 16
        %v1681 = vand.u32 %v1651, 65535
        %v1682 = vshrl.u32 %v1651, 16
        %v1683 = vmul.u32 %v1679, %v1681
        %v1684 = vmul.u32 %v1679, %v1682
        %v1685 = vmul.u32 %v1680, %v1681
        %v1686 = vmul.u32 %v1680, %v1682
        %v1687 = vshll.u32 %v1684, 16
        %v1688 = vshrl.u32 %v1684, 16
        %v1689 = vshll.u32 %v1685, 16
        %v1690 = vshrl.u32 %v1685, 16
        %vm1691 = vc.u32 %v1683, %v1687
        %v1692 = vsel %vm1691, 1, 0
        %v1693 = vadd.s32 %v1683, %v1687
        %v1694 = vadd.s32 %v1686, %v1692
        %vm1695 = vc.u32 %v1693, %v1689
        %v1696 = vsel %vm1695, 1, 0
        %v1697 = vadd.s32 %v1693, %v1689
        %v1698 = vadd.s32 %v1694, %v1696
        %v1699 = vadd.s32 %v1698, %v1688
        %v1700 = vadd.s32 %v1699, %v1690
        %v1701 = vmul.u32 %v1656, %v1647
        %v1702 = vadd.s32 %v1678, %v1697
        %vm1703 = vc.u32 %v1678, %v1697
        %v1704 = vadd.s32 %v1700, 1
        %v1705 = vsel %vm1703, %v1704, %v1700
        %v1706 = vadd.s32 %v1701, %v1705
        %v1707 = vadd.s32 %v1706, 536870912
        %v1708 = vshrl.u32 %v1707, 30
        %v1709 = vshll.u32 %v1708, 30
        %v1710 = vsub.s32 %v1706, %v1709
        %vm1711 = vcmp.lt.s32.totalorder %v1710, 0
        %v1712 = vsub.s32 0, %v1710
        %v1713 = vsel %vm1711, %v1712, %v1710
        %v1714 = vclz %v1713
        %v1715 = vsub.s32 %v1714, 2
        %vm1716 = vcmp.gt.s32.totalorder 0, %v1715
        %v1717 = vsel %vm1716, 0, %v1715
        %v1718 = vsub.s32 32, %v1717
        %v1719 = vshll.u32 %v1710, %v1717
        %v1720 = vshrl.u32 %v1702, %v1718
        %v1721 = vor.u32 %v1719, %v1720
        %v1722 = vsub.s32 4294967266, %v1717
        %v1723 = vadd.s32 %v1722, 127
        %v1724 = vshll.u32 %v1723, 23
        %v1725 = vor.u32 4788187, %v1724
        %v1726 = vand.u32 2147483647, %v1725
        %v1728 = vcvt.s32.f32 %v1721
        %v1729 = vmul.f32 %v1728, %v1726
        %v1730 = vxor.u32 %v1729, 2147483648
        %v1731 = vsel %vm1610, %v1730, %v1729
        %v1732 = vsub.s32 4, %v1708
        %v1733 = vsel %vm1610, %v1732, %v1708
        %v1734 = vsel %vm1609, %v368, %v1731
        %v1735 = vsel %vm1609, 0, %v1733
        %v1736 = vmul.f32 %v1734, %v1734
        %v1737 = vmul.f32 %v1736, -0.001358992
        %v1738 = vadd.f32 %v1737, 0.041655596
        %v1739 = vmul.f32 %v1736, %v1738
        %v1740 = vadd.f32 %v1739, -0.4999988
        %v1741 = vmul.f32 %v1736, %v1740
        %v1742 = vadd.f32 1.0, %v1741
        %v1743 = vmul.f32 %v1734, %v1734
        %v1744 = vmul.f32 %v1743, -0.00019511016
        %v1745 = vadd.f32 %v1744, 0.008332121
        %v1746 = vmul.f32 %v1743, %v1745
        %v1747 = vadd.f32 %v1746, -0.16666654
        %v1748 = vmul.f32 %v1743, %v1747
        %v1749 = vadd.f32 %v1748, 1.0
        %v1750 = vmul.f32 %v1749, %v1734
        %vm1751 = vweird.f32 %v368
        %v1752 = vand.u32 %v1735, 3
        %vm1753 = vcmp.lt.s32.totalorder %v1752, 2
        %vm1754 = vcmp.eq.s32.totalorder %v1752, 0
        %v1755 = vxor.u32 %v1750, 2147483648
        %v1756 = vsel %vm1754, %v1742, %v1755
        %vm1757 = vcmp.eq.s32.totalorder %v1752, 2
        %v1758 = vxor.u32 %v1742, 2147483648
        %v1759 = vsel %vm1757, %v1758, %v1750
        %v1760 = vsel %vm1753, %v1756, %v1759
        %v1761 = vsel %vm1751, nan, %v1760
        %v1762 = vand.u32 2147483647, %v369
        %vm1763 = vcmp.le.f32.partialorder %v1762, 0.7853982
        %vm1764 = vcmp.lt.s32.totalorder %v369, 0
        %v1765 = vand.u32 %v369, 2139095040
        %v1766 = vshrl.u32 %v1765, 23
        %v1767 = vsub.s32 %v1766, 127
        %v1768 = vand.u32 2147483647, %v369
        %v1769 = vand.u32 %v1768, 8388607
        %v1770 = vor.u32 %v1769, 8388608
        %v1771 = vsub.s32 0, %v1770
        %v1772 = vadd.s32 %v1767, 1
        %vm1773 = vcmp.gt.s32.totalorder %v1772, 0
        %v1774 = vsel %vm1773, %v1772, 0
        %v1775 = vshrl.u32 %v1774, 5
        %v1776 = vand.u32 %v1774, 31
        %v1777 = vsub.s32 32, %v1776
        %v1778 = vshrl.u32 683565275, %v1777
        %v1779 = vshll.u32 683565275, %v1776
        %v1780 = vshrl.u32 2475754826, %v1777
        %v1781 = vor.u32 %v1779, %v1780
        %v1782 = vshll.u32 2475754826, %v1776
        %v1783 = vshrl.u32 2131351028, %v1777
        %v1784 = vor.u32 %v1782, %v1783
        %v1785 = vshll.u32 2131351028, %v1776
        %v1786 = vshrl.u32 2102212464, %v1777
        %v1787 = vor.u32 %v1785, %v1786
        %v1788 = vshll.u32 2102212464, %v1776
        %v1789 = vshrl.u32 920167782, %v1777
        %v1790 = vor.u32 %v1788, %v1789
        %v1791 = vshll.u32 920167782, %v1776
        %v1792 = vshrl.u32 1326507024, %v1777
        %v1793 = vor.u32 %v1791, %v1792
        %vm1794 = vcmp.lt.s32.totalorder %v1775, 1
        %vm1795 = vcmp.lt.s32.totalorder %v1775, 2
        %vm1796 = vcmp.lt.s32.totalorder %v1775, 3
        %vm1797 = vcmp.lt.s32.totalorder %v1775, 4
        %v1798 = vsel %vm1794, %v1778, %v1781
        %v1799 = vsel %vm1797, %v1787, 2102212464
        %v1800 = vsel %vm1796, %v1784, %v1799
        %v1801 = vsel %vm1795, %v1798, %v1800
        %v1802 = vsel %vm1794, %v1781, %v1784
        %v1803 = vsel %vm1797, %v1790, 920167782
        %v1804 = vsel %vm1796, %v1787, %v1803
        %v1805 = vsel %vm1795, %v1802, %v1804
        %v1806 = vsel %vm1794, %v1784, %v1787
        %v1807 = vsel %vm1797, %v1793, 1326507024
        %v1808 = vsel %vm1796, %v1790, %v1807
        %v1809 = vsel %vm1795, %v1806, %v1808
        %v1810 = vshll.u32 %v1770, 8
        %v1811 = vand.u32 %v1810, 65535
        %v1812 = vshrl.u32 %v1810, 16
        %v1813 = vand.u32 %v1809, 65535
        %v1814 = vshrl.u32 %v1809, 16
        %v1815 = vmul.u32 %v1811, %v1813
        %v1816 = vmul.u32 %v1811, %v1814
        %v1817 = vmul.u32 %v1812, %v1813
        %v1818 = vmul.u32 %v1812, %v1814
        %v1819 = vshll.u32 %v1816, 16
        %v1820 = vshrl.u32 %v1816, 16
        %v1821 = vshll.u32 %v1817, 16
        %v1822 = vshrl.u32 %v1817, 16
        %vm1823 = vc.u32 %v1815, %v1819
        %v1824 = vsel %vm1823, 1, 0
        %v1825 = vadd.s32 %v1815, %v1819
        %v1826 = vadd.s32 %v1818, %v1824
        %vm1827 = vc.u32 %v1825, %v1821
        %v1828 = vsel %vm1827, 1, 0
        %v1829 = vadd.s32 %v1825, %v1821
        %v1830 = vadd.s32 %v1826, %v1828
        %v1831 = vadd.s32 %v1830, %v1820
        %v1832 = vadd.s32 %v1831, %v1822
        %v1833 = vand.u32 %v1810, 65535
        %v1834 = vshrl.u32 %v1810, 16
        %v1835 = vand.u32 %v1805, 65535
        %v1836 = vshrl.u32 %v1805, 16
        %v1837 = vmul.u32 %v1833, %v1835
        %v1838 = vmul.u32 %v1833, %v1836
        %v1839 = vmul.u32 %v1834, %v1835
        %v1840 = vmul.u32 %v1834, %v1836
        %v1841 = vshll.u32 %v1838, 16
        %v1842 = vshrl.u32 %v1838, 16
        %v1843 = vshll.u32 %v1839, 16
        %v1844 = vshrl.u32 %v1839, 16
        %vm1845 = vc.u32 %v1837, %v1841
        %v1846 = vsel %vm1845, 1, 0
        %v1847 = vadd.s32 %v1837, %v1841
        %v1848 = vadd.s32 %v1840, %v1846
        %vm1849 = vc.u32 %v1847, %v1843
        %v1850 = vsel %vm1849, 1, 0
        %v1851 = vadd.s32 %v1847, %v1843
        %v1852 = vadd.s32 %v1848, %v1850
        %v1853 = vadd.s32 %v1852, %v1842
        %v1854 = vadd.s32 %v1853, %v1844
        %v1855 = vmul.u32 %v1810, %v1801
        %v1856 = vadd.s32 %v1832, %v1851
        %vm1857 = vc.u32 %v1832, %v1851
        %v1858 = vadd.s32 %v1854, 1
        %v1859 = vsel %vm1857, %v1858, %v1854
        %v1860 = vadd.s32 %v1855, %v1859
        %v1861 = vadd.s32 %v1860, 536870912
        %v1862 = vshrl.u32 %v1861, 30
        %v1863 = vshll.u32 %v1862, 30
        %v1864 = vsub.s32 %v1860, %v1863
        %vm1865 = vcmp.lt.s32.totalorder %v1864, 0
        %v1866 = vsub.s32 0, %v1864
        %v1867 = vsel %vm1865, %v1866, %v1864
        %v1868 = vclz %v1867
        %v1869 = vsub.s32 %v1868, 2
        %vm1870 = vcmp.gt.s32.totalorder 0, %v1869
        %v1871 = vsel %vm1870, 0, %v1869
        %v1872 = vsub.s32 32, %v1871
        %v1873 = vshll.u32 %v1864, %v1871
        %v1874 = vshrl.u32 %v1856, %v1872
        %v1875 = vor.u32 %v1873, %v1874
        %v1876 = vsub.s32 4294967266, %v1871
        %v1877 = vadd.s32 %v1876, 127
        %v1878 = vshll.u32 %v1877, 23
        %v1879 = vor.u32 4788187, %v1878
        %v1880 = vand.u32 2147483647, %v1879
        %v1882 = vcvt.s32.f32 %v1875
        %v1883 = vmul.f32 %v1882, %v1880
        %v1884 = vxor.u32 %v1883, 2147483648
        %v1885 = vsel %vm1764, %v1884, %v1883
        %v1886 = vsub.s32 4, %v1862
        %v1887 = vsel %vm1764, %v1886, %v1862
        %v1888 = vsel %vm1763, %v369, %v1885
        %v1889 = vsel %vm1763, 0, %v1887
        %v1890 = vmul.f32 %v1888, %v1888
        %v1891 = vmul.f32 %v1890, -0.001358992
        %v1892 = vadd.f32 %v1891, 0.041655596
        %v1893 = vmul.f32 %v1890, %v1892
        %v1894 = vadd.f32 %v1893, -0.4999988
        %v1895 = vmul.f32 %v1890, %v1894
        %v1896 = vadd.f32 1.0, %v1895
        %v1897 = vmul.f32 %v1888, %v1888
        %v1898 = vmul.f32 %v1897, -0.00019511016
        %v1899 = vadd.f32 %v1898, 0.008332121
        %v1900 = vmul.f32 %v1897, %v1899
        %v1901 = vadd.f32 %v1900, -0.16666654
        %v1902 = vmul.f32 %v1897, %v1901
        %v1903 = vadd.f32 %v1902, 1.0
        %v1904 = vmul.f32 %v1903, %v1888
        %vm1905 = vweird.f32 %v369
        %v1906 = vand.u32 %v1889, 3
        %vm1907 = vcmp.lt.s32.totalorder %v1906, 2
        %vm1908 = vcmp.eq.s32.totalorder %v1906, 0
        %v1909 = vxor.u32 %v1904, 2147483648
        %v1910 = vsel %vm1908, %v1896, %v1909
        %vm1911 = vcmp.eq.s32.totalorder %v1906, 2
        %v1912 = vxor.u32 %v1896, 2147483648
        %v1913 = vsel %vm1911, %v1912, %v1904
        %v1914 = vsel %vm1907, %v1910, %v1913
        %v1915 = vsel %vm1905, nan, %v1914
        %v1916 = vand.u32 2147483647, %v370
        %vm1917 = vcmp.le.f32.partialorder %v1916, 0.7853982
        %vm1918 = vcmp.lt.s32.totalorder %v370, 0
        %v1919 = vand.u32 %v370, 2139095040
        %v1920 = vshrl.u32 %v1919, 23
        %v1921 = vsub.s32 %v1920, 127
        %v1922 = vand.u32 2147483647, %v370
        %v1923 = vand.u32 %v1922, 8388607
        %v1924 = vor.u32 %v1923, 8388608
        %v1925 = vsub.s32 0, %v1924
        %v1926 = vadd.s32 %v1921, 1
        %vm1927 = vcmp.gt.s32.totalorder %v1926, 0
        %v1928 = vsel %vm1927, %v1926, 0
        %v1929 = vshrl.u32 %v1928, 5
        %v1930 = vand.u32 %v1928, 31
        %v1931 = vsub.s32 32, %v1930
        %v1932 = vshrl.u32 683565275, %v1931
        %v1933 = vshll.u32 683565275, %v1930
        %v1934 = vshrl.u32 2475754826, %v1931
        %v1935 = vor.u32 %v1933, %v1934
        %v1936 = vshll.u32 2475754826, %v1930
        %v1937 = vshrl.u32 2131351028, %v1931
        %v1938 = vor.u32 %v1936, %v1937
        %v1939 = vshll.u32 2131351028, %v1930
        %v1940 = vshrl.u32 2102212464, %v1931
        %v1941 = vor.u32 %v1939, %v1940
        %v1942 = vshll.u32 2102212464, %v1930
        %v1943 = vshrl.u32 920167782, %v1931
        %v1944 = vor.u32 %v1942, %v1943
        %v1945 = vshll.u32 920167782, %v1930
        %v1946 = vshrl.u32 1326507024, %v1931
        %v1947 = vor.u32 %v1945, %v1946
        %vm1948 = vcmp.lt.s32.totalorder %v1929, 1
        %vm1949 = vcmp.lt.s32.totalorder %v1929, 2
        %vm1950 = vcmp.lt.s32.totalorder %v1929, 3
        %vm1951 = vcmp.lt.s32.totalorder %v1929, 4
        %v1952 = vsel %vm1948, %v1932, %v1935
        %v1953 = vsel %vm1951, %v1941, 2102212464
        %v1954 = vsel %vm1950, %v1938, %v1953
        %v1955 = vsel %vm1949, %v1952, %v1954
        %v1956 = vsel %vm1948, %v1935, %v1938
        %v1957 = vsel %vm1951, %v1944, 920167782
        %v1958 = vsel %vm1950, %v1941, %v1957
        %v1959 = vsel %vm1949, %v1956, %v1958
        %v1960 = vsel %vm1948, %v1938, %v1941
        %v1961 = vsel %vm1951, %v1947, 1326507024
        %v1962 = vsel %vm1950, %v1944, %v1961
        %v1963 = vsel %vm1949, %v1960, %v1962
        %v1964 = vshll.u32 %v1924, 8
        %v1965 = vand.u32 %v1964, 65535
        %v1966 = vshrl.u32 %v1964, 16
        %v1967 = vand.u32 %v1963, 65535
        %v1968 = vshrl.u32 %v1963, 16
        %v1969 = vmul.u32 %v1965, %v1967
        %v1970 = vmul.u32 %v1965, %v1968
        %v1971 = vmul.u32 %v1966, %v1967
        %v1972 = vmul.u32 %v1966, %v1968
        %v1973 = vshll.u32 %v1970, 16
        %v1974 = vshrl.u32 %v1970, 16
        %v1975 = vshll.u32 %v1971, 16
        %v1976 = vshrl.u32 %v1971, 16
        %vm1977 = vc.u32 %v1969, %v1973
        %v1978 = vsel %vm1977, 1, 0
        %v1979 = vadd.s32 %v1969, %v1973
        %v1980 = vadd.s32 %v1972, %v1978
        %vm1981 = vc.u32 %v1979, %v1975
        %v1982 = vsel %vm1981, 1, 0
        %v1983 = vadd.s32 %v1979, %v1975
        %v1984 = vadd.s32 %v1980, %v1982
        %v1985 = vadd.s32 %v1984, %v1974
        %v1986 = vadd.s32 %v1985, %v1976
        %v1987 = vand.u32 %v1964, 65535
        %v1988 = vshrl.u32 %v1964, 16
        %v1989 = vand.u32 %v1959, 65535
        %v1990 = vshrl.u32 %v1959, 16
        %v1991 = vmul.u32 %v1987, %v1989
        %v1992 = vmul.u32 %v1987, %v1990
        %v1993 = vmul.u32 %v1988, %v1989
        %v1994 = vmul.u32 %v1988, %v1990
        %v1995 = vshll.u32 %v1992, 16
        %v1996 = vshrl.u32 %v1992, 16
        %v1997 = vshll.u32 %v1993, 16
        %v1998 = vshrl.u32 %v1993, 16
        %vm1999 = vc.u32 %v1991, %v1995
        %v2000 = vsel %vm1999, 1, 0
        %v2001 = vadd.s32 %v1991, %v1995
        %v2002 = vadd.s32 %v1994, %v2000
        %vm2003 = vc.u32 %v2001, %v1997
        %v2004 = vsel %vm2003, 1, 0
        %v2005 = vadd.s32 %v2001, %v1997
        %v2006 = vadd.s32 %v2002, %v2004
        %v2007 = vadd.s32 %v2006, %v1996
        %v2008 = vadd.s32 %v2007, %v1998
        %v2009 = vmul.u32 %v1964, %v1955
        %v2010 = vadd.s32 %v1986, %v2005
        %vm2011 = vc.u32 %v1986, %v2005
        %v2012 = vadd.s32 %v2008, 1
        %v2013 = vsel %vm2011, %v2012, %v2008
        %v2014 = vadd.s32 %v2009, %v2013
        %v2015 = vadd.s32 %v2014, 536870912
        %v2016 = vshrl.u32 %v2015, 30
        %v2017 = vshll.u32 %v2016, 30
        %v2018 = vsub.s32 %v2014, %v2017
        %vm2019 = vcmp.lt.s32.totalorder %v2018, 0
        %v2020 = vsub.s32 0, %v2018
        %v2021 = vsel %vm2019, %v2020, %v2018
        %v2022 = vclz %v2021
        %v2023 = vsub.s32 %v2022, 2
        %vm2024 = vcmp.gt.s32.totalorder 0, %v2023
        %v2025 = vsel %vm2024, 0, %v2023
        %v2026 = vsub.s32 32, %v2025
        %v2027 = vshll.u32 %v2018, %v2025
        %v2028 = vshrl.u32 %v2010, %v2026
        %v2029 = vor.u32 %v2027, %v2028
        %v2030 = vsub.s32 4294967266, %v2025
        %v2031 = vadd.s32 %v2030, 127
        %v2032 = vshll.u32 %v2031, 23
        %v2033 = vor.u32 4788187, %v2032
        %v2034 = vand.u32 2147483647, %v2033
        %v2036 = vcvt.s32.f32 %v2029
        %v2037 = vmul.f32 %v2036, %v2034
        %v2038 = vxor.u32 %v2037, 2147483648
        %v2039 = vsel %vm1918, %v2038, %v2037
        %v2040 = vsub.s32 4, %v2016
        %v2041 = vsel %vm1918, %v2040, %v2016
        %v2042 = vsel %vm1917, %v370, %v2039
        %v2043 = vsel %vm1917, 0, %v2041
        %v2044 = vmul.f32 %v2042, %v2042
        %v2045 = vmul.f32 %v2044, -0.001358992
        %v2046 = vadd.f32 %v2045, 0.041655596
        %v2047 = vmul.f32 %v2044, %v2046
        %v2048 = vadd.f32 %v2047, -0.4999988
        %v2049 = vmul.f32 %v2044, %v2048
        %v2050 = vadd.f32 1.0, %v2049
        %v2051 = vmul.f32 %v2042, %v2042
        %v2052 = vmul.f32 %v2051, -0.00019511016
        %v2053 = vadd.f32 %v2052, 0.008332121
        %v2054 = vmul.f32 %v2051, %v2053
        %v2055 = vadd.f32 %v2054, -0.16666654
        %v2056 = vmul.f32 %v2051, %v2055
        %v2057 = vadd.f32 %v2056, 1.0
        %v2058 = vmul.f32 %v2057, %v2042
        %vm2059 = vweird.f32 %v370
        %v2060 = vand.u32 %v2043, 3
        %vm2061 = vcmp.lt.s32.totalorder %v2060, 2
        %vm2062 = vcmp.eq.s32.totalorder %v2060, 0
        %v2063 = vxor.u32 %v2058, 2147483648
        %v2064 = vsel %vm2062, %v2050, %v2063
        %vm2065 = vcmp.eq.s32.totalorder %v2060, 2
        %v2066 = vxor.u32 %v2050, 2147483648
        %v2067 = vsel %vm2065, %v2066, %v2058
        %v2068 = vsel %vm2061, %v2064, %v2067
        %v2069 = vsel %vm2059, nan, %v2068
        %v2070 = vand.u32 2147483647, %v371
        %vm2071 = vcmp.le.f32.partialorder %v2070, 0.7853982
        %vm2072 = vcmp.lt.s32.totalorder %v371, 0
        %v2073 = vand.u32 %v371, 2139095040
        %v2074 = vshrl.u32 %v2073, 23
        %v2075 = vsub.s32 %v2074, 127
        %v2076 = vand.u32 2147483647, %v371
        %v2077 = vand.u32 %v2076, 8388607
        %v2078 = vor.u32 %v2077, 8388608
        %v2079 = vsub.s32 0, %v2078
        %v2080 = vadd.s32 %v2075, 1
        %vm2081 = vcmp.gt.s32.totalorder %v2080, 0
        %v2082 = vsel %vm2081, %v2080, 0
        %v2083 = vshrl.u32 %v2082, 5
        %v2084 = vand.u32 %v2082, 31
        %v2085 = vsub.s32 32, %v2084
        %v2086 = vshrl.u32 683565275, %v2085
        %v2087 = vshll.u32 683565275, %v2084
        %v2088 = vshrl.u32 2475754826, %v2085
        %v2089 = vor.u32 %v2087, %v2088
        %v2090 = vshll.u32 2475754826, %v2084
        %v2091 = vshrl.u32 2131351028, %v2085
        %v2092 = vor.u32 %v2090, %v2091
        %v2093 = vshll.u32 2131351028, %v2084
        %v2094 = vshrl.u32 2102212464, %v2085
        %v2095 = vor.u32 %v2093, %v2094
        %v2096 = vshll.u32 2102212464, %v2084
        %v2097 = vshrl.u32 920167782, %v2085
        %v2098 = vor.u32 %v2096, %v2097
        %v2099 = vshll.u32 920167782, %v2084
        %v2100 = vshrl.u32 1326507024, %v2085
        %v2101 = vor.u32 %v2099, %v2100
        %vm2102 = vcmp.lt.s32.totalorder %v2083, 1
        %vm2103 = vcmp.lt.s32.totalorder %v2083, 2
        %vm2104 = vcmp.lt.s32.totalorder %v2083, 3
        %vm2105 = vcmp.lt.s32.totalorder %v2083, 4
        %v2106 = vsel %vm2102, %v2086, %v2089
        %v2107 = vsel %vm2105, %v2095, 2102212464
        %v2108 = vsel %vm2104, %v2092, %v2107
        %v2109 = vsel %vm2103, %v2106, %v2108
        %v2110 = vsel %vm2102, %v2089, %v2092
        %v2111 = vsel %vm2105, %v2098, 920167782
        %v2112 = vsel %vm2104, %v2095, %v2111
        %v2113 = vsel %vm2103, %v2110, %v2112
        %v2114 = vsel %vm2102, %v2092, %v2095
        %v2115 = vsel %vm2105, %v2101, 1326507024
        %v2116 = vsel %vm2104, %v2098, %v2115
        %v2117 = vsel %vm2103, %v2114, %v2116
        %v2118 = vshll.u32 %v2078, 8
        %v2119 = vand.u32 %v2118, 65535
        %v2120 = vshrl.u32 %v2118, 16
        %v2121 = vand.u32 %v2117, 65535
        %v2122 = vshrl.u32 %v2117, 16
        %v2123 = vmul.u32 %v2119, %v2121
        %v2124 = vmul.u32 %v2119, %v2122
        %v2125 = vmul.u32 %v2120, %v2121
        %v2126 = vmul.u32 %v2120, %v2122
        %v2127 = vshll.u32 %v2124, 16
        %v2128 = vshrl.u32 %v2124, 16
        %v2129 = vshll.u32 %v2125, 16
        %v2130 = vshrl.u32 %v2125, 16
        %vm2131 = vc.u32 %v2123, %v2127
        %v2132 = vsel %vm2131, 1, 0
        %v2133 = vadd.s32 %v2123, %v2127
        %v2134 = vadd.s32 %v2126, %v2132
        %vm2135 = vc.u32 %v2133, %v2129
        %v2136 = vsel %vm2135, 1, 0
        %v2137 = vadd.s32 %v2133, %v2129
        %v2138 = vadd.s32 %v2134, %v2136
        %v2139 = vadd.s32 %v2138, %v2128
        %v2140 = vadd.s32 %v2139, %v2130
        %v2141 = vand.u32 %v2118, 65535
        %v2142 = vshrl.u32 %v2118, 16
        %v2143 = vand.u32 %v2113, 65535
        %v2144 = vshrl.u32 %v2113, 16
        %v2145 = vmul.u32 %v2141, %v2143
        %v2146 = vmul.u32 %v2141, %v2144
        %v2147 = vmul.u32 %v2142, %v2143
        %v2148 = vmul.u32 %v2142, %v2144
        %v2149 = vshll.u32 %v2146, 16
        %v2150 = vshrl.u32 %v2146, 16
        %v2151 = vshll.u32 %v2147, 16
        %v2152 = vshrl.u32 %v2147, 16
        %vm2153 = vc.u32 %v2145, %v2149
        %v2154 = vsel %vm2153, 1, 0
        %v2155 = vadd.s32 %v2145, %v2149
        %v2156 = vadd.s32 %v2148, %v2154
        %vm2157 = vc.u32 %v2155, %v2151
        %v2158 = vsel %vm2157, 1, 0
        %v2159 = vadd.s32 %v2155, %v2151
        %v2160 = vadd.s32 %v2156, %v2158
        %v2161 = vadd.s32 %v2160, %v2150
        %v2162 = vadd.s32 %v2161, %v2152
        %v2163 = vmul.u32 %v2118, %v2109
        %v2164 = vadd.s32 %v2140, %v2159
        %vm2165 = vc.u32 %v2140, %v2159
        %v2166 = vadd.s32 %v2162, 1
        %v2167 = vsel %vm2165, %v2166, %v2162
        %v2168 = vadd.s32 %v2163, %v2167
        %v2169 = vadd.s32 %v2168, 536870912
        %v2170 = vshrl.u32 %v2169, 30
        %v2171 = vshll.u32 %v2170, 30
        %v2172 = vsub.s32 %v2168, %v2171
        %vm2173 = vcmp.lt.s32.totalorder %v2172, 0
        %v2174 = vsub.s32 0, %v2172
        %v2175 = vsel %vm2173, %v2174, %v2172
        %v2176 = vclz %v2175
        %v2177 = vsub.s32 %v2176, 2
        %vm2178 = vcmp.gt.s32.totalorder 0, %v2177
        %v2179 = vsel %vm2178, 0, %v2177
        %v2180 = vsub.s32 32, %v2179
        %v2181 = vshll.u32 %v2172, %v2179
        %v2182 = vshrl.u32 %v2164, %v2180
        %v2183 = vor.u32 %v2181, %v2182
        %v2184 = vsub.s32 4294967266, %v2179
        %v2185 = vadd.s32 %v2184, 127
        %v2186 = vshll.u32 %v2185, 23
        %v2187 = vor.u32 4788187, %v2186
        %v2188 = vand.u32 2147483647, %v2187
        %v2190 = vcvt.s32.f32 %v2183
        %v2191 = vmul.f32 %v2190, %v2188
        %v2192 = vxor.u32 %v2191, 2147483648
        %v2193 = vsel %vm2072, %v2192, %v2191
        %v2194 = vsub.s32 4, %v2170
        %v2195 = vsel %vm2072, %v2194, %v2170
        %v2196 = vsel %vm2071, %v371, %v2193
        %v2197 = vsel %vm2071, 0, %v2195
        %v2198 = vmul.f32 %v2196, %v2196
        %v2199 = vmul.f32 %v2198, -0.001358992
        %v2200 = vadd.f32 %v2199, 0.041655596
        %v2201 = vmul.f32 %v2198, %v2200
        %v2202 = vadd.f32 %v2201, -0.4999988
        %v2203 = vmul.f32 %v2198, %v2202
        %v2204 = vadd.f32 1.0, %v2203
        %v2205 = vmul.f32 %v2196, %v2196
        %v2206 = vmul.f32 %v2205, -0.00019511016
        %v2207 = vadd.f32 %v2206, 0.008332121
        %v2208 = vmul.f32 %v2205, %v2207
        %v2209 = vadd.f32 %v2208, -0.16666654
        %v2210 = vmul.f32 %v2205, %v2209
        %v2211 = vadd.f32 %v2210, 1.0
        %v2212 = vmul.f32 %v2211, %v2196
        %vm2213 = vweird.f32 %v371
        %v2214 = vand.u32 %v2197, 3
        %vm2215 = vcmp.lt.s32.totalorder %v2214, 2
        %vm2216 = vcmp.eq.s32.totalorder %v2214, 0
        %v2217 = vxor.u32 %v2212, 2147483648
        %v2218 = vsel %vm2216, %v2204, %v2217
        %vm2219 = vcmp.eq.s32.totalorder %v2214, 2
        %v2220 = vxor.u32 %v2204, 2147483648
        %v2221 = vsel %vm2219, %v2220, %v2212
        %v2222 = vsel %vm2215, %v2218, %v2221
        %v2223 = vsel %vm2213, nan, %v2222
        %v2224 = vand.u32 2147483647, %v372
        %vm2225 = vcmp.le.f32.partialorder %v2224, 0.7853982
        %vm2226 = vcmp.lt.s32.totalorder %v372, 0
        %v2227 = vand.u32 %v372, 2139095040
        %v2228 = vshrl.u32 %v2227, 23
        %v2229 = vsub.s32 %v2228, 127
        %v2230 = vand.u32 2147483647, %v372
        %v2231 = vand.u32 %v2230, 8388607
        %v2232 = vor.u32 %v2231, 8388608
        %v2233 = vsub.s32 0, %v2232
        %v2234 = vadd.s32 %v2229, 1
        %vm2235 = vcmp.gt.s32.totalorder %v2234, 0
        %v2236 = vsel %vm2235, %v2234, 0
        %v2237 = vshrl.u32 %v2236, 5
        %v2238 = vand.u32 %v2236, 31
        %v2239 = vsub.s32 32, %v2238
        %v2240 = vshrl.u32 683565275, %v2239
        %v2241 = vshll.u32 683565275, %v2238
        %v2242 = vshrl.u32 2475754826, %v2239
        %v2243 = vor.u32 %v2241, %v2242
        %v2244 = vshll.u32 2475754826, %v2238
        %v2245 = vshrl.u32 2131351028, %v2239
        %v2246 = vor.u32 %v2244, %v2245
        %v2247 = vshll.u32 2131351028, %v2238
        %v2248 = vshrl.u32 2102212464, %v2239
        %v2249 = vor.u32 %v2247, %v2248
        %v2250 = vshll.u32 2102212464, %v2238
        %v2251 = vshrl.u32 920167782, %v2239
        %v2252 = vor.u32 %v2250, %v2251
        %v2253 = vshll.u32 920167782, %v2238
        %v2254 = vshrl.u32 1326507024, %v2239
        %v2255 = vor.u32 %v2253, %v2254
        %vm2256 = vcmp.lt.s32.totalorder %v2237, 1
        %vm2257 = vcmp.lt.s32.totalorder %v2237, 2
        %vm2258 = vcmp.lt.s32.totalorder %v2237, 3
        %vm2259 = vcmp.lt.s32.totalorder %v2237, 4
        %v2260 = vsel %vm2256, %v2240, %v2243
        %v2261 = vsel %vm2259, %v2249, 2102212464
        %v2262 = vsel %vm2258, %v2246, %v2261
        %v2263 = vsel %vm2257, %v2260, %v2262
        %v2264 = vsel %vm2256, %v2243, %v2246
        %v2265 = vsel %vm2259, %v2252, 920167782
        %v2266 = vsel %vm2258, %v2249, %v2265
        %v2267 = vsel %vm2257, %v2264, %v2266
        %v2268 = vsel %vm2256, %v2246, %v2249
        %v2269 = vsel %vm2259, %v2255, 1326507024
        %v2270 = vsel %vm2258, %v2252, %v2269
        %v2271 = vsel %vm2257, %v2268, %v2270
        %v2272 = vshll.u32 %v2232, 8
        %v2273 = vand.u32 %v2272, 65535
        %v2274 = vshrl.u32 %v2272, 16
        %v2275 = vand.u32 %v2271, 65535
        %v2276 = vshrl.u32 %v2271, 16
        %v2277 = vmul.u32 %v2273, %v2275
        %v2278 = vmul.u32 %v2273, %v2276
        %v2279 = vmul.u32 %v2274, %v2275
        %v2280 = vmul.u32 %v2274, %v2276
        %v2281 = vshll.u32 %v2278, 16
        %v2282 = vshrl.u32 %v2278, 16
        %v2283 = vshll.u32 %v2279, 16
        %v2284 = vshrl.u32 %v2279, 16
        %vm2285 = vc.u32 %v2277, %v2281
        %v2286 = vsel %vm2285, 1, 0
        %v2287 = vadd.s32 %v2277, %v2281
        %v2288 = vadd.s32 %v2280, %v2286
        %vm2289 = vc.u32 %v2287, %v2283
        %v2290 = vsel %vm2289, 1, 0
        %v2291 = vadd.s32 %v2287, %v2283
        %v2292 = vadd.s32 %v2288, %v2290
        %v2293 = vadd.s32 %v2292, %v2282
        %v2294 = vadd.s32 %v2293, %v2284
        %v2295 = vand.u32 %v2272, 65535
        %v2296 = vshrl.u32 %v2272, 16
        %v2297 = vand.u32 %v2267, 65535
        %v2298 = vshrl.u32 %v2267, 16
        %v2299 = vmul.u32 %v2295, %v2297
        %v2300 = vmul.u32 %v2295, %v2298
        %v2301 = vmul.u32 %v2296, %v2297
        %v2302 = vmul.u32 %v2296, %v2298
        %v2303 = vshll.u32 %v2300, 16
        %v2304 = vshrl.u32 %v2300, 16
        %v2305 = vshll.u32 %v2301, 16
        %v2306 = vshrl.u32 %v2301, 16
        %vm2307 = vc.u32 %v2299, %v2303
        %v2308 = vsel %vm2307, 1, 0
        %v2309 = vadd.s32 %v2299, %v2303
        %v2310 = vadd.s32 %v2302, %v2308
        %vm2311 = vc.u32 %v2309, %v2305
        %v2312 = vsel %vm2311, 1, 0
        %v2313 = vadd.s32 %v2309, %v2305
        %v2314 = vadd.s32 %v2310, %v2312
        %v2315 = vadd.s32 %v2314, %v2304
        %v2316 = vadd.s32 %v2315, %v2306
        %v2317 = vmul.u32 %v2272, %v2263
        %v2318 = vadd.s32 %v2294, %v2313
        %vm2319 = vc.u32 %v2294, %v2313
        %v2320 = vadd.s32 %v2316, 1
        %v2321 = vsel %vm2319, %v2320, %v2316
        %v2322 = vadd.s32 %v2317, %v2321
        %v2323 = vadd.s32 %v2322, 536870912
        %v2324 = vshrl.u32 %v2323, 30
        %v2325 = vshll.u32 %v2324, 30
        %v2326 = vsub.s32 %v2322, %v2325
        %vm2327 = vcmp.lt.s32.totalorder %v2326, 0
        %v2328 = vsub.s32 0, %v2326
        %v2329 = vsel %vm2327, %v2328, %v2326
        %v2330 = vclz %v2329
        %v2331 = vsub.s32 %v2330, 2
        %vm2332 = vcmp.gt.s32.totalorder 0, %v2331
        %v2333 = vsel %vm2332, 0, %v2331
        %v2334 = vsub.s32 32, %v2333
        %v2335 = vshll.u32 %v2326, %v2333
        %v2336 = vshrl.u32 %v2318, %v2334
        %v2337 = vor.u32 %v2335, %v2336
        %v2338 = vsub.s32 4294967266, %v2333
        %v2339 = vadd.s32 %v2338, 127
        %v2340 = vshll.u32 %v2339, 23
        %v2341 = vor.u32 4788187, %v2340
        %v2342 = vand.u32 2147483647, %v2341
        %v2344 = vcvt.s32.f32 %v2337
        %v2345 = vmul.f32 %v2344, %v2342
        %v2346 = vxor.u32 %v2345, 2147483648
        %v2347 = vsel %vm2226, %v2346, %v2345
        %v2348 = vsub.s32 4, %v2324
        %v2349 = vsel %vm2226, %v2348, %v2324
        %v2350 = vsel %vm2225, %v372, %v2347
        %v2351 = vsel %vm2225, 0, %v2349
        %v2352 = vmul.f32 %v2350, %v2350
        %v2353 = vmul.f32 %v2352, -0.001358992
        %v2354 = vadd.f32 %v2353, 0.041655596
        %v2355 = vmul.f32 %v2352, %v2354
        %v2356 = vadd.f32 %v2355, -0.4999988
        %v2357 = vmul.f32 %v2352, %v2356
        %v2358 = vadd.f32 1.0, %v2357
        %v2359 = vmul.f32 %v2350, %v2350
        %v2360 = vmul.f32 %v2359, -0.00019511016
        %v2361 = vadd.f32 %v2360, 0.008332121
        %v2362 = vmul.f32 %v2359, %v2361
        %v2363 = vadd.f32 %v2362, -0.16666654
        %v2364 = vmul.f32 %v2359, %v2363
        %v2365 = vadd.f32 %v2364, 1.0
        %v2366 = vmul.f32 %v2365, %v2350
        %vm2367 = vweird.f32 %v372
        %v2368 = vand.u32 %v2351, 3
        %vm2369 = vcmp.lt.s32.totalorder %v2368, 2
        %vm2370 = vcmp.eq.s32.totalorder %v2368, 0
        %v2371 = vxor.u32 %v2366, 2147483648
        %v2372 = vsel %vm2370, %v2358, %v2371
        %vm2373 = vcmp.eq.s32.totalorder %v2368, 2
        %v2374 = vxor.u32 %v2358, 2147483648
        %v2375 = vsel %vm2373, %v2374, %v2366
        %v2376 = vsel %vm2369, %v2372, %v2375
        %v2377 = vsel %vm2367, nan, %v2376
        %v2378 = vand.u32 2147483647, %v373
        %vm2379 = vcmp.le.f32.partialorder %v2378, 0.7853982
        %vm2380 = vcmp.lt.s32.totalorder %v373, 0
        %v2381 = vand.u32 %v373, 2139095040
        %v2382 = vshrl.u32 %v2381, 23
        %v2383 = vsub.s32 %v2382, 127
        %v2384 = vand.u32 2147483647, %v373
        %v2385 = vand.u32 %v2384, 8388607
        %v2386 = vor.u32 %v2385, 8388608
        %v2387 = vsub.s32 0, %v2386
        %v2388 = vadd.s32 %v2383, 1
        %vm2389 = vcmp.gt.s32.totalorder %v2388, 0
        %v2390 = vsel %vm2389, %v2388, 0
        %v2391 = vshrl.u32 %v2390, 5
        %v2392 = vand.u32 %v2390, 31
        %v2393 = vsub.s32 32, %v2392
        %v2394 = vshrl.u32 683565275, %v2393
        %v2395 = vshll.u32 683565275, %v2392
        %v2396 = vshrl.u32 2475754826, %v2393
        %v2397 = vor.u32 %v2395, %v2396
        %v2398 = vshll.u32 2475754826, %v2392
        %v2399 = vshrl.u32 2131351028, %v2393
        %v2400 = vor.u32 %v2398, %v2399
        %v2401 = vshll.u32 2131351028, %v2392
        %v2402 = vshrl.u32 2102212464, %v2393
        %v2403 = vor.u32 %v2401, %v2402
        %v2404 = vshll.u32 2102212464, %v2392
        %v2405 = vshrl.u32 920167782, %v2393
        %v2406 = vor.u32 %v2404, %v2405
        %v2407 = vshll.u32 920167782, %v2392
        %v2408 = vshrl.u32 1326507024, %v2393
        %v2409 = vor.u32 %v2407, %v2408
        %vm2410 = vcmp.lt.s32.totalorder %v2391, 1
        %vm2411 = vcmp.lt.s32.totalorder %v2391, 2
        %vm2412 = vcmp.lt.s32.totalorder %v2391, 3
        %vm2413 = vcmp.lt.s32.totalorder %v2391, 4
        %v2414 = vsel %vm2410, %v2394, %v2397
        %v2415 = vsel %vm2413, %v2403, 2102212464
        %v2416 = vsel %vm2412, %v2400, %v2415
        %v2417 = vsel %vm2411, %v2414, %v2416
        %v2418 = vsel %vm2410, %v2397, %v2400
        %v2419 = vsel %vm2413, %v2406, 920167782
        %v2420 = vsel %vm2412, %v2403, %v2419
        %v2421 = vsel %vm2411, %v2418, %v2420
        %v2422 = vsel %vm2410, %v2400, %v2403
        %v2423 = vsel %vm2413, %v2409, 1326507024
        %v2424 = vsel %vm2412, %v2406, %v2423
        %v2425 = vsel %vm2411, %v2422, %v2424
        %v2426 = vshll.u32 %v2386, 8
        %v2427 = vand.u32 %v2426, 65535
        %v2428 = vshrl.u32 %v2426, 16
        %v2429 = vand.u32 %v2425, 65535
        %v2430 = vshrl.u32 %v2425, 16
        %v2431 = vmul.u32 %v2427, %v2429
        %v2432 = vmul.u32 %v2427, %v2430
        %v2433 = vmul.u32 %v2428, %v2429
        %v2434 = vmul.u32 %v2428, %v2430
        %v2435 = vshll.u32 %v2432, 16
        %v2436 = vshrl.u32 %v2432, 16
        %v2437 = vshll.u32 %v2433, 16
        %v2438 = vshrl.u32 %v2433, 16
        %vm2439 = vc.u32 %v2431, %v2435
        %v2440 = vsel %vm2439, 1, 0
        %v2441 = vadd.s32 %v2431, %v2435
        %v2442 = vadd.s32 %v2434, %v2440
        %vm2443 = vc.u32 %v2441, %v2437
        %v2444 = vsel %vm2443, 1, 0
        %v2445 = vadd.s32 %v2441, %v2437
        %v2446 = vadd.s32 %v2442, %v2444
        %v2447 = vadd.s32 %v2446, %v2436
        %v2448 = vadd.s32 %v2447, %v2438
        %v2449 = vand.u32 %v2426, 65535
        %v2450 = vshrl.u32 %v2426, 16
        %v2451 = vand.u32 %v2421, 65535
        %v2452 = vshrl.u32 %v2421, 16
        %v2453 = vmul.u32 %v2449, %v2451
        %v2454 = vmul.u32 %v2449, %v2452
        %v2455 = vmul.u32 %v2450, %v2451
        %v2456 = vmul.u32 %v2450, %v2452
        %v2457 = vshll.u32 %v2454, 16
        %v2458 = vshrl.u32 %v2454, 16
        %v2459 = vshll.u32 %v2455, 16
        %v2460 = vshrl.u32 %v2455, 16
        %vm2461 = vc.u32 %v2453, %v2457
        %v2462 = vsel %vm2461, 1, 0
        %v2463 = vadd.s32 %v2453, %v2457
        %v2464 = vadd.s32 %v2456, %v2462
        %vm2465 = vc.u32 %v2463, %v2459
        %v2466 = vsel %vm2465, 1, 0
        %v2467 = vadd.s32 %v2463, %v2459
        %v2468 = vadd.s32 %v2464, %v2466
        %v2469 = vadd.s32 %v2468, %v2458
        %v2470 = vadd.s32 %v2469, %v2460
        %v2471 = vmul.u32 %v2426, %v2417
        %v2472 = vadd.s32 %v2448, %v2467
        %vm2473 = vc.u32 %v2448, %v2467
        %v2474 = vadd.s32 %v2470, 1
        %v2475 = vsel %vm2473, %v2474, %v2470
        %v2476 = vadd.s32 %v2471, %v2475
        %v2477 = vadd.s32 %v2476, 536870912
        %v2478 = vshrl.u32 %v2477, 30
        %v2479 = vshll.u32 %v2478, 30
        %v2480 = vsub.s32 %v2476, %v2479
        %vm2481 = vcmp.lt.s32.totalorder %v2480, 0
        %v2482 = vsub.s32 0, %v2480
        %v2483 = vsel %vm2481, %v2482, %v2480
        %v2484 = vclz %v2483
        %v2485 = vsub.s32 %v2484, 2
        %vm2486 = vcmp.gt.s32.totalorder 0, %v2485
        %v2487 = vsel %vm2486, 0, %v2485
        %v2488 = vsub.s32 32, %v2487
        %v2489 = vshll.u32 %v2480, %v2487
        %v2490 = vshrl.u32 %v2472, %v2488
        %v2491 = vor.u32 %v2489, %v2490
        %v2492 = vsub.s32 4294967266, %v2487
        %v2493 = vadd.s32 %v2492, 127
        %v2494 = vshll.u32 %v2493, 23
        %v2495 = vor.u32 4788187, %v2494
        %v2496 = vand.u32 2147483647, %v2495
        %v2498 = vcvt.s32.f32 %v2491
        %v2499 = vmul.f32 %v2498, %v2496
        %v2500 = vxor.u32 %v2499, 2147483648
        %v2501 = vsel %vm2380, %v2500, %v2499
        %v2502 = vsub.s32 4, %v2478
        %v2503 = vsel %vm2380, %v2502, %v2478
        %v2504 = vsel %vm2379, %v373, %v2501
        %v2505 = vsel %vm2379, 0, %v2503
        %v2506 = vmul.f32 %v2504, %v2504
        %v2507 = vmul.f32 %v2506, -0.001358992
        %v2508 = vadd.f32 %v2507, 0.041655596
        %v2509 = vmul.f32 %v2506, %v2508
        %v2510 = vadd.f32 %v2509, -0.4999988
        %v2511 = vmul.f32 %v2506, %v2510
        %v2512 = vadd.f32 1.0, %v2511
        %v2513 = vmul.f32 %v2504, %v2504
        %v2514 = vmul.f32 %v2513, -0.00019511016
        %v2515 = vadd.f32 %v2514, 0.008332121
        %v2516 = vmul.f32 %v2513, %v2515
        %v2517 = vadd.f32 %v2516, -0.16666654
        %v2518 = vmul.f32 %v2513, %v2517
        %v2519 = vadd.f32 %v2518, 1.0
        %v2520 = vmul.f32 %v2519, %v2504
        %vm2521 = vweird.f32 %v373
        %v2522 = vand.u32 %v2505, 3
        %vm2523 = vcmp.lt.s32.totalorder %v2522, 2
        %vm2524 = vcmp.eq.s32.totalorder %v2522, 0
        %v2525 = vxor.u32 %v2520, 2147483648
        %v2526 = vsel %vm2524, %v2512, %v2525
        %vm2527 = vcmp.eq.s32.totalorder %v2522, 2
        %v2528 = vxor.u32 %v2512, 2147483648
        %v2529 = vsel %vm2527, %v2528, %v2520
        %v2530 = vsel %vm2523, %v2526, %v2529
        %v2531 = vsel %vm2521, nan, %v2530
        %v2532 = vand.u32 2147483647, %v374
        %vm2533 = vcmp.le.f32.partialorder %v2532, 0.7853982
        %vm2534 = vcmp.lt.s32.totalorder %v374, 0
        %v2535 = vand.u32 %v374, 2139095040
        %v2536 = vshrl.u32 %v2535, 23
        %v2537 = vsub.s32 %v2536, 127
        %v2538 = vand.u32 2147483647, %v374
        %v2539 = vand.u32 %v2538, 8388607
        %v2540 = vor.u32 %v2539, 8388608
        %v2541 = vsub.s32 0, %v2540
        %v2542 = vadd.s32 %v2537, 1
        %vm2543 = vcmp.gt.s32.totalorder %v2542, 0
        %v2544 = vsel %vm2543, %v2542, 0
        %v2545 = vshrl.u32 %v2544, 5
        %v2546 = vand.u32 %v2544, 31
        %v2547 = vsub.s32 32, %v2546
        %v2548 = vshrl.u32 683565275, %v2547
        %v2549 = vshll.u32 683565275, %v2546
        %v2550 = vshrl.u32 2475754826, %v2547
        %v2551 = vor.u32 %v2549, %v2550
        %v2552 = vshll.u32 2475754826, %v2546
        %v2553 = vshrl.u32 2131351028, %v2547
        %v2554 = vor.u32 %v2552, %v2553
        %v2555 = vshll.u32 2131351028, %v2546
        %v2556 = vshrl.u32 2102212464, %v2547
        %v2557 = vor.u32 %v2555, %v2556
        %v2558 = vshll.u32 2102212464, %v2546
        %v2559 = vshrl.u32 920167782, %v2547
        %v2560 = vor.u32 %v2558, %v2559
        %v2561 = vshll.u32 920167782, %v2546
        %v2562 = vshrl.u32 1326507024, %v2547
        %v2563 = vor.u32 %v2561, %v2562
        %vm2564 = vcmp.lt.s32.totalorder %v2545, 1
        %vm2565 = vcmp.lt.s32.totalorder %v2545, 2
        %vm2566 = vcmp.lt.s32.totalorder %v2545, 3
        %vm2567 = vcmp.lt.s32.totalorder %v2545, 4
        %v2568 = vsel %vm2564, %v2548, %v2551
        %v2569 = vsel %vm2567, %v2557, 2102212464
        %v2570 = vsel %vm2566, %v2554, %v2569
        %v2571 = vsel %vm2565, %v2568, %v2570
        %v2572 = vsel %vm2564, %v2551, %v2554
        %v2573 = vsel %vm2567, %v2560, 920167782
        %v2574 = vsel %vm2566, %v2557, %v2573
        %v2575 = vsel %vm2565, %v2572, %v2574
        %v2576 = vsel %vm2564, %v2554, %v2557
        %v2577 = vsel %vm2567, %v2563, 1326507024
        %v2578 = vsel %vm2566, %v2560, %v2577
        %v2579 = vsel %vm2565, %v2576, %v2578
        %v2580 = vshll.u32 %v2540, 8
        %v2581 = vand.u32 %v2580, 65535
        %v2582 = vshrl.u32 %v2580, 16
        %v2583 = vand.u32 %v2579, 65535
        %v2584 = vshrl.u32 %v2579, 16
        %v2585 = vmul.u32 %v2581, %v2583
        %v2586 = vmul.u32 %v2581, %v2584
        %v2587 = vmul.u32 %v2582, %v2583
        %v2588 = vmul.u32 %v2582, %v2584
        %v2589 = vshll.u32 %v2586, 16
        %v2590 = vshrl.u32 %v2586, 16
        %v2591 = vshll.u32 %v2587, 16
        %v2592 = vshrl.u32 %v2587, 16
        %vm2593 = vc.u32 %v2585, %v2589
        %v2594 = vsel %vm2593, 1, 0
        %v2595 = vadd.s32 %v2585, %v2589
        %v2596 = vadd.s32 %v2588, %v2594
        %vm2597 = vc.u32 %v2595, %v2591
        %v2598 = vsel %vm2597, 1, 0
        %v2599 = vadd.s32 %v2595, %v2591
        %v2600 = vadd.s32 %v2596, %v2598
        %v2601 = vadd.s32 %v2600, %v2590
        %v2602 = vadd.s32 %v2601, %v2592
        %v2603 = vand.u32 %v2580, 65535
        %v2604 = vshrl.u32 %v2580, 16
        %v2605 = vand.u32 %v2575, 65535
        %v2606 = vshrl.u32 %v2575, 16
        %v2607 = vmul.u32 %v2603, %v2605
        %v2608 = vmul.u32 %v2603, %v2606
        %v2609 = vmul.u32 %v2604, %v2605
        %v2610 = vmul.u32 %v2604, %v2606
        %v2611 = vshll.u32 %v2608, 16
        %v2612 = vshrl.u32 %v2608, 16
        %v2613 = vshll.u32 %v2609, 16
        %v2614 = vshrl.u32 %v2609, 16
        %vm2615 = vc.u32 %v2607, %v2611
        %v2616 = vsel %vm2615, 1, 0
        %v2617 = vadd.s32 %v2607, %v2611
        %v2618 = vadd.s32 %v2610, %v2616
        %vm2619 = vc.u32 %v2617, %v2613
        %v2620 = vsel %vm2619, 1, 0
        %v2621 = vadd.s32 %v2617, %v2613
        %v2622 = vadd.s32 %v2618, %v2620
        %v2623 = vadd.s32 %v2622, %v2612
        %v2624 = vadd.s32 %v2623, %v2614
        %v2625 = vmul.u32 %v2580, %v2571
        %v2626 = vadd.s32 %v2602, %v2621
        %vm2627 = vc.u32 %v2602, %v2621
        %v2628 = vadd.s32 %v2624, 1
        %v2629 = vsel %vm2627, %v2628, %v2624
        %v2630 = vadd.s32 %v2625, %v2629
        %v2631 = vadd.s32 %v2630, 536870912
        %v2632 = vshrl.u32 %v2631, 30
        %v2633 = vshll.u32 %v2632, 30
        %v2634 = vsub.s32 %v2630, %v2633
        %vm2635 = vcmp.lt.s32.totalorder %v2634, 0
        %v2636 = vsub.s32 0, %v2634
        %v2637 = vsel %vm2635, %v2636, %v2634
        %v2638 = vclz %v2637
        %v2639 = vsub.s32 %v2638, 2
        %vm2640 = vcmp.gt.s32.totalorder 0, %v2639
        %v2641 = vsel %vm2640, 0, %v2639
        %v2642 = vsub.s32 32, %v2641
        %v2643 = vshll.u32 %v2634, %v2641
        %v2644 = vshrl.u32 %v2626, %v2642
        %v2645 = vor.u32 %v2643, %v2644
        %v2646 = vsub.s32 4294967266, %v2641
        %v2647 = vadd.s32 %v2646, 127
        %v2648 = vshll.u32 %v2647, 23
        %v2649 = vor.u32 4788187, %v2648
        %v2650 = vand.u32 2147483647, %v2649
        %v2652 = vcvt.s32.f32 %v2645
        %v2653 = vmul.f32 %v2652, %v2650
        %v2654 = vxor.u32 %v2653, 2147483648
        %v2655 = vsel %vm2534, %v2654, %v2653
        %v2656 = vsub.s32 4, %v2632
        %v2657 = vsel %vm2534, %v2656, %v2632
        %v2658 = vsel %vm2533, %v374, %v2655
        %v2659 = vsel %vm2533, 0, %v2657
        %v2660 = vmul.f32 %v2658, %v2658
        %v2661 = vmul.f32 %v2660, -0.001358992
        %v2662 = vadd.f32 %v2661, 0.041655596
        %v2663 = vmul.f32 %v2660, %v2662
        %v2664 = vadd.f32 %v2663, -0.4999988
        %v2665 = vmul.f32 %v2660, %v2664
        %v2666 = vadd.f32 1.0, %v2665
        %v2667 = vmul.f32 %v2658, %v2658
        %v2668 = vmul.f32 %v2667, -0.00019511016
        %v2669 = vadd.f32 %v2668, 0.008332121
        %v2670 = vmul.f32 %v2667, %v2669
        %v2671 = vadd.f32 %v2670, -0.16666654
        %v2672 = vmul.f32 %v2667, %v2671
        %v2673 = vadd.f32 %v2672, 1.0
        %v2674 = vmul.f32 %v2673, %v2658
        %vm2675 = vweird.f32 %v374
        %v2676 = vand.u32 %v2659, 3
        %vm2677 = vcmp.lt.s32.totalorder %v2676, 2
        %vm2678 = vcmp.eq.s32.totalorder %v2676, 0
        %v2679 = vxor.u32 %v2674, 2147483648
        %v2680 = vsel %vm2678, %v2666, %v2679
        %vm2681 = vcmp.eq.s32.totalorder %v2676, 2
        %v2682 = vxor.u32 %v2666, 2147483648
        %v2683 = vsel %vm2681, %v2682, %v2674
        %v2684 = vsel %vm2677, %v2680, %v2683
        %v2685 = vsel %vm2675, nan, %v2684
        %v2686 = vand.u32 2147483647, %v375
        %vm2687 = vcmp.le.f32.partialorder %v2686, 0.7853982
        %vm2688 = vcmp.lt.s32.totalorder %v375, 0
        %v2689 = vand.u32 %v375, 2139095040
        %v2690 = vshrl.u32 %v2689, 23
        %v2691 = vsub.s32 %v2690, 127
        %v2692 = vand.u32 2147483647, %v375
        %v2693 = vand.u32 %v2692, 8388607
        %v2694 = vor.u32 %v2693, 8388608
        %v2695 = vsub.s32 0, %v2694
        %v2696 = vadd.s32 %v2691, 1
        %vm2697 = vcmp.gt.s32.totalorder %v2696, 0
        %v2698 = vsel %vm2697, %v2696, 0
        %v2699 = vshrl.u32 %v2698, 5
        %v2700 = vand.u32 %v2698, 31
        %v2701 = vsub.s32 32, %v2700
        %v2702 = vshrl.u32 683565275, %v2701
        %v2703 = vshll.u32 683565275, %v2700
        %v2704 = vshrl.u32 2475754826, %v2701
        %v2705 = vor.u32 %v2703, %v2704
        %v2706 = vshll.u32 2475754826, %v2700
        %v2707 = vshrl.u32 2131351028, %v2701
        %v2708 = vor.u32 %v2706, %v2707
        %v2709 = vshll.u32 2131351028, %v2700
        %v2710 = vshrl.u32 2102212464, %v2701
        %v2711 = vor.u32 %v2709, %v2710
        %v2712 = vshll.u32 2102212464, %v2700
        %v2713 = vshrl.u32 920167782, %v2701
        %v2714 = vor.u32 %v2712, %v2713
        %v2715 = vshll.u32 920167782, %v2700
        %v2716 = vshrl.u32 1326507024, %v2701
        %v2717 = vor.u32 %v2715, %v2716
        %vm2718 = vcmp.lt.s32.totalorder %v2699, 1
        %vm2719 = vcmp.lt.s32.totalorder %v2699, 2
        %vm2720 = vcmp.lt.s32.totalorder %v2699, 3
        %vm2721 = vcmp.lt.s32.totalorder %v2699, 4
        %v2722 = vsel %vm2718, %v2702, %v2705
        %v2723 = vsel %vm2721, %v2711, 2102212464
        %v2724 = vsel %vm2720, %v2708, %v2723
        %v2725 = vsel %vm2719, %v2722, %v2724
        %v2726 = vsel %vm2718, %v2705, %v2708
        %v2727 = vsel %vm2721, %v2714, 920167782
        %v2728 = vsel %vm2720, %v2711, %v2727
        %v2729 = vsel %vm2719, %v2726, %v2728
        %v2730 = vsel %vm2718, %v2708, %v2711
        %v2731 = vsel %vm2721, %v2717, 1326507024
        %v2732 = vsel %vm2720, %v2714, %v2731
        %v2733 = vsel %vm2719, %v2730, %v2732
        %v2734 = vshll.u32 %v2694, 8
        %v2735 = vand.u32 %v2734, 65535
        %v2736 = vshrl.u32 %v2734, 16
        %v2737 = vand.u32 %v2733, 65535
        %v2738 = vshrl.u32 %v2733, 16
        %v2739 = vmul.u32 %v2735, %v2737
        %v2740 = vmul.u32 %v2735, %v2738
        %v2741 = vmul.u32 %v2736, %v2737
        %v2742 = vmul.u32 %v2736, %v2738
        %v2743 = vshll.u32 %v2740, 16
        %v2744 = vshrl.u32 %v2740, 16
        %v2745 = vshll.u32 %v2741, 16
        %v2746 = vshrl.u32 %v2741, 16
        %vm2747 = vc.u32 %v2739, %v2743
        %v2748 = vsel %vm2747, 1, 0
        %v2749 = vadd.s32 %v2739, %v2743
        %v2750 = vadd.s32 %v2742, %v2748
        %vm2751 = vc.u32 %v2749, %v2745
        %v2752 = vsel %vm2751, 1, 0
        %v2753 = vadd.s32 %v2749, %v2745
        %v2754 = vadd.s32 %v2750, %v2752
        %v2755 = vadd.s32 %v2754, %v2744
        %v2756 = vadd.s32 %v2755, %v2746
        %v2757 = vand.u32 %v2734, 65535
        %v2758 = vshrl.u32 %v2734, 16
        %v2759 = vand.u32 %v2729, 65535
        %v2760 = vshrl.u32 %v2729, 16
        %v2761 = vmul.u32 %v2757, %v2759
        %v2762 = vmul.u32 %v2757, %v2760
        %v2763 = vmul.u32 %v2758, %v2759
        %v2764 = vmul.u32 %v2758, %v2760
        %v2765 = vshll.u32 %v2762, 16
        %v2766 = vshrl.u32 %v2762, 16
        %v2767 = vshll.u32 %v2763, 16
        %v2768 = vshrl.u32 %v2763, 16
        %vm2769 = vc.u32 %v2761, %v2765
        %v2770 = vsel %vm2769, 1, 0
        %v2771 = vadd.s32 %v2761, %v2765
        %v2772 = vadd.s32 %v2764, %v2770
        %vm2773 = vc.u32 %v2771, %v2767
        %v2774 = vsel %vm2773, 1, 0
        %v2775 = vadd.s32 %v2771, %v2767
        %v2776 = vadd.s32 %v2772, %v2774
        %v2777 = vadd.s32 %v2776, %v2766
        %v2778 = vadd.s32 %v2777, %v2768
        %v2779 = vmul.u32 %v2734, %v2725
        %v2780 = vadd.s32 %v2756, %v2775
        %vm2781 = vc.u32 %v2756, %v2775
        %v2782 = vadd.s32 %v2778, 1
        %v2783 = vsel %vm2781, %v2782, %v2778
        %v2784 = vadd.s32 %v2779, %v2783
        %v2785 = vadd.s32 %v2784, 536870912
        %v2786 = vshrl.u32 %v2785, 30
        %v2787 = vshll.u32 %v2786, 30
        %v2788 = vsub.s32 %v2784, %v2787
        %vm2789 = vcmp.lt.s32.totalorder %v2788, 0
        %v2790 = vsub.s32 0, %v2788
        %v2791 = vsel %vm2789, %v2790, %v2788
        %v2792 = vclz %v2791
        %v2793 = vsub.s32 %v2792, 2
        %vm2794 = vcmp.gt.s32.totalorder 0, %v2793
        %v2795 = vsel %vm2794, 0, %v2793
        %v2796 = vsub.s32 32, %v2795
        %v2797 = vshll.u32 %v2788, %v2795
        %v2798 = vshrl.u32 %v2780, %v2796
        %v2799 = vor.u32 %v2797, %v2798
        %v2800 = vsub.s32 4294967266, %v2795
        %v2801 = vadd.s32 %v2800, 127
        %v2802 = vshll.u32 %v2801, 23
        %v2803 = vor.u32 4788187, %v2802
        %v2804 = vand.u32 2147483647, %v2803
        %v2806 = vcvt.s32.f32 %v2799
        %v2807 = vmul.f32 %v2806, %v2804
        %v2808 = vxor.u32 %v2807, 2147483648
        %v2809 = vsel %vm2688, %v2808, %v2807
        %v2810 = vsub.s32 4, %v2786
        %v2811 = vsel %vm2688, %v2810, %v2786
        %v2812 = vsel %vm2687, %v375, %v2809
        %v2813 = vsel %vm2687, 0, %v2811
        %v2814 = vmul.f32 %v2812, %v2812
        %v2815 = vmul.f32 %v2814, -0.001358992
        %v2816 = vadd.f32 %v2815, 0.041655596
        %v2817 = vmul.f32 %v2814, %v2816
        %v2818 = vadd.f32 %v2817, -0.4999988
        %v2819 = vmul.f32 %v2814, %v2818
        %v2820 = vadd.f32 1.0, %v2819
        %v2821 = vmul.f32 %v2812, %v2812
        %v2822 = vmul.f32 %v2821, -0.00019511016
        %v2823 = vadd.f32 %v2822, 0.008332121
        %v2824 = vmul.f32 %v2821, %v2823
        %v2825 = vadd.f32 %v2824, -0.16666654
        %v2826 = vmul.f32 %v2821, %v2825
        %v2827 = vadd.f32 %v2826, 1.0
        %v2828 = vmul.f32 %v2827, %v2812
        %vm2829 = vweird.f32 %v375
        %v2830 = vand.u32 %v2813, 3
        %vm2831 = vcmp.lt.s32.totalorder %v2830, 2
        %vm2832 = vcmp.eq.s32.totalorder %v2830, 0
        %v2833 = vxor.u32 %v2828, 2147483648
        %v2834 = vsel %vm2832, %v2820, %v2833
        %vm2835 = vcmp.eq.s32.totalorder %v2830, 2
        %v2836 = vxor.u32 %v2820, 2147483648
        %v2837 = vsel %vm2835, %v2836, %v2828
        %v2838 = vsel %vm2831, %v2834, %v2837
        %v2839 = vsel %vm2829, nan, %v2838
        %v2840 = vand.u32 2147483647, %v360
        %vm2841 = vcmp.le.f32.partialorder %v2840, 0.7853982
        %vm2842 = vcmp.lt.s32.totalorder %v360, 0
        %v2843 = vand.u32 %v360, 2139095040
        %v2844 = vshrl.u32 %v2843, 23
        %v2845 = vsub.s32 %v2844, 127
        %v2846 = vand.u32 2147483647, %v360
        %v2847 = vand.u32 %v2846, 8388607
        %v2848 = vor.u32 %v2847, 8388608
        %v2849 = vsub.s32 0, %v2848
        %v2850 = vadd.s32 %v2845, 1
        %vm2851 = vcmp.gt.s32.totalorder %v2850, 0
        %v2852 = vsel %vm2851, %v2850, 0
        %v2853 = vshrl.u32 %v2852, 5
        %v2854 = vand.u32 %v2852, 31
        %v2855 = vsub.s32 32, %v2854
        %v2856 = vshrl.u32 683565275, %v2855
        %v2857 = vshll.u32 683565275, %v2854
        %v2858 = vshrl.u32 2475754826, %v2855
        %v2859 = vor.u32 %v2857, %v2858
        %v2860 = vshll.u32 2475754826, %v2854
        %v2861 = vshrl.u32 2131351028, %v2855
        %v2862 = vor.u32 %v2860, %v2861
        %v2863 = vshll.u32 2131351028, %v2854
        %v2864 = vshrl.u32 2102212464, %v2855
        %v2865 = vor.u32 %v2863, %v2864
        %v2866 = vshll.u32 2102212464, %v2854
        %v2867 = vshrl.u32 920167782, %v2855
        %v2868 = vor.u32 %v2866, %v2867
        %v2869 = vshll.u32 920167782, %v2854
        %v2870 = vshrl.u32 1326507024, %v2855
        %v2871 = vor.u32 %v2869, %v2870
        %vm2872 = vcmp.lt.s32.totalorder %v2853, 1
        %vm2873 = vcmp.lt.s32.totalorder %v2853, 2
        %vm2874 = vcmp.lt.s32.totalorder %v2853, 3
        %vm2875 = vcmp.lt.s32.totalorder %v2853, 4
        %v2876 = vsel %vm2872, %v2856, %v2859
        %v2877 = vsel %vm2875, %v2865, 2102212464
        %v2878 = vsel %vm2874, %v2862, %v2877
        %v2879 = vsel %vm2873, %v2876, %v2878
        %v2880 = vsel %vm2872, %v2859, %v2862
        %v2881 = vsel %vm2875, %v2868, 920167782
        %v2882 = vsel %vm2874, %v2865, %v2881
        %v2883 = vsel %vm2873, %v2880, %v2882
        %v2884 = vsel %vm2872, %v2862, %v2865
        %v2885 = vsel %vm2875, %v2871, 1326507024
        %v2886 = vsel %vm2874, %v2868, %v2885
        %v2887 = vsel %vm2873, %v2884, %v2886
        %v2888 = vshll.u32 %v2848, 8
        %v2889 = vand.u32 %v2888, 65535
        %v2890 = vshrl.u32 %v2888, 16
        %v2891 = vand.u32 %v2887, 65535
        %v2892 = vshrl.u32 %v2887, 16
        %v2893 = vmul.u32 %v2889, %v2891
        %v2894 = vmul.u32 %v2889, %v2892
        %v2895 = vmul.u32 %v2890, %v2891
        %v2896 = vmul.u32 %v2890, %v2892
        %v2897 = vshll.u32 %v2894, 16
        %v2898 = vshrl.u32 %v2894, 16
        %v2899 = vshll.u32 %v2895, 16
        %v2900 = vshrl.u32 %v2895, 16
        %vm2901 = vc.u32 %v2893, %v2897
        %v2902 = vsel %vm2901, 1, 0
        %v2903 = vadd.s32 %v2893, %v2897
        %v2904 = vadd.s32 %v2896, %v2902
        %vm2905 = vc.u32 %v2903, %v2899
        %v2906 = vsel %vm2905, 1, 0
        %v2907 = vadd.s32 %v2903, %v2899
        %v2908 = vadd.s32 %v2904, %v2906
        %v2909 = vadd.s32 %v2908, %v2898
        %v2910 = vadd.s32 %v2909, %v2900
        %v2911 = vand.u32 %v2888, 65535
        %v2912 = vshrl.u32 %v2888, 16
        %v2913 = vand.u32 %v2883, 65535
        %v2914 = vshrl.u32 %v2883, 16
        %v2915 = vmul.u32 %v2911, %v2913
        %v2916 = vmul.u32 %v2911, %v2914
        %v2917 = vmul.u32 %v2912, %v2913
        %v2918 = vmul.u32 %v2912, %v2914
        %v2919 = vshll.u32 %v2916, 16
        %v2920 = vshrl.u32 %v2916, 16
        %v2921 = vshll.u32 %v2917, 16
        %v2922 = vshrl.u32 %v2917, 16
        %vm2923 = vc.u32 %v2915, %v2919
        %v2924 = vsel %vm2923, 1, 0
        %v2925 = vadd.s32 %v2915, %v2919
        %v2926 = vadd.s32 %v2918, %v2924
        %vm2927 = vc.u32 %v2925, %v2921
        %v2928 = vsel %vm2927, 1, 0
        %v2929 = vadd.s32 %v2925, %v2921
        %v2930 = vadd.s32 %v2926, %v2928
        %v2931 = vadd.s32 %v2930, %v2920
        %v2932 = vadd.s32 %v2931, %v2922
        %v2933 = vmul.u32 %v2888, %v2879
        %v2934 = vadd.s32 %v2910, %v2929
        %vm2935 = vc.u32 %v2910, %v2929
        %v2936 = vadd.s32 %v2932, 1
        %v2937 = vsel %vm2935, %v2936, %v2932
        %v2938 = vadd.s32 %v2933, %v2937
        %v2939 = vadd.s32 %v2938, 536870912
        %v2940 = vshrl.u32 %v2939, 30
        %v2941 = vshll.u32 %v2940, 30
        %v2942 = vsub.s32 %v2938, %v2941
        %vm2943 = vcmp.lt.s32.totalorder %v2942, 0
        %v2944 = vsub.s32 0, %v2942
        %v2945 = vsel %vm2943, %v2944, %v2942
        %v2946 = vclz %v2945
        %v2947 = vsub.s32 %v2946, 2
        %vm2948 = vcmp.gt.s32.totalorder 0, %v2947
        %v2949 = vsel %vm2948, 0, %v2947
        %v2950 = vsub.s32 32, %v2949
        %v2951 = vshll.u32 %v2942, %v2949
        %v2952 = vshrl.u32 %v2934, %v2950
        %v2953 = vor.u32 %v2951, %v2952
        %v2954 = vsub.s32 4294967266, %v2949
        %v2955 = vadd.s32 %v2954, 127
        %v2956 = vshll.u32 %v2955, 23
        %v2957 = vor.u32 4788187, %v2956
        %v2958 = vand.u32 2147483647, %v2957
        %v2960 = vcvt.s32.f32 %v2953
        %v2961 = vmul.f32 %v2960, %v2958
        %v2962 = vxor.u32 %v2961, 2147483648
        %v2963 = vsel %vm2842, %v2962, %v2961
        %v2964 = vsub.s32 4, %v2940
        %v2965 = vsel %vm2842, %v2964, %v2940
        %v2966 = vsel %vm2841, %v360, %v2963
        %v2967 = vsel %vm2841, 0, %v2965
        %v2968 = vmul.f32 %v2966, %v2966
        %v2969 = vmul.f32 %v2968, -0.001358992
        %v2970 = vadd.f32 %v2969, 0.041655596
        %v2971 = vmul.f32 %v2968, %v2970
        %v2972 = vadd.f32 %v2971, -0.4999988
        %v2973 = vmul.f32 %v2968, %v2972
        %v2974 = vadd.f32 1.0, %v2973
        %v2975 = vmul.f32 %v2966, %v2966
        %v2976 = vmul.f32 %v2975, -0.00019511016
        %v2977 = vadd.f32 %v2976, 0.008332121
        %v2978 = vmul.f32 %v2975, %v2977
        %v2979 = vadd.f32 %v2978, -0.16666654
        %v2980 = vmul.f32 %v2975, %v2979
        %v2981 = vadd.f32 %v2980, 1.0
        %v2982 = vmul.f32 %v2981, %v2966
        %vm2983 = vweird.f32 %v360
        %v2984 = vadd.s32 %v2967, 3
        %v2985 = vand.u32 %v2984, 3
        %vm2986 = vcmp.lt.s32.totalorder %v2985, 2
        %vm2987 = vcmp.eq.s32.totalorder %v2985, 0
        %v2988 = vxor.u32 %v2982, 2147483648
        %v2989 = vsel %vm2987, %v2974, %v2988
        %vm2990 = vcmp.eq.s32.totalorder %v2985, 2
        %v2991 = vxor.u32 %v2974, 2147483648
        %v2992 = vsel %vm2990, %v2991, %v2982
        %v2993 = vsel %vm2986, %v2989, %v2992
        %v2994 = vsel %vm2983, nan, %v2993
        %v2995 = vand.u32 2147483647, %v361
        %vm2996 = vcmp.le.f32.partialorder %v2995, 0.7853982
        %vm2997 = vcmp.lt.s32.totalorder %v361, 0
        %v2998 = vand.u32 %v361, 2139095040
        %v2999 = vshrl.u32 %v2998, 23
        %v3000 = vsub.s32 %v2999, 127
        %v3001 = vand.u32 2147483647, %v361
        %v3002 = vand.u32 %v3001, 8388607
        %v3003 = vor.u32 %v3002, 8388608
        %v3004 = vsub.s32 0, %v3003
        %v3005 = vadd.s32 %v3000, 1
        %vm3006 = vcmp.gt.s32.totalorder %v3005, 0
        %v3007 = vsel %vm3006, %v3005, 0
        %v3008 = vshrl.u32 %v3007, 5
        %v3009 = vand.u32 %v3007, 31
        %v3010 = vsub.s32 32, %v3009
        %v3011 = vshrl.u32 683565275, %v3010
        %v3012 = vshll.u32 683565275, %v3009
        %v3013 = vshrl.u32 2475754826, %v3010
        %v3014 = vor.u32 %v3012, %v3013
        %v3015 = vshll.u32 2475754826, %v3009
        %v3016 = vshrl.u32 2131351028, %v3010
        %v3017 = vor.u32 %v3015, %v3016
        %v3018 = vshll.u32 2131351028, %v3009
        %v3019 = vshrl.u32 2102212464, %v3010
        %v3020 = vor.u32 %v3018, %v3019
        %v3021 = vshll.u32 2102212464, %v3009
        %v3022 = vshrl.u32 920167782, %v3010
        %v3023 = vor.u32 %v3021, %v3022
        %v3024 = vshll.u32 920167782, %v3009
        %v3025 = vshrl.u32 1326507024, %v3010
        %v3026 = vor.u32 %v3024, %v3025
        %vm3027 = vcmp.lt.s32.totalorder %v3008, 1
        %vm3028 = vcmp.lt.s32.totalorder %v3008, 2
        %vm3029 = vcmp.lt.s32.totalorder %v3008, 3
        %vm3030 = vcmp.lt.s32.totalorder %v3008, 4
        %v3031 = vsel %vm3027, %v3011, %v3014
        %v3032 = vsel %vm3030, %v3020, 2102212464
        %v3033 = vsel %vm3029, %v3017, %v3032
        %v3034 = vsel %vm3028, %v3031, %v3033
        %v3035 = vsel %vm3027, %v3014, %v3017
        %v3036 = vsel %vm3030, %v3023, 920167782
        %v3037 = vsel %vm3029, %v3020, %v3036
        %v3038 = vsel %vm3028, %v3035, %v3037
        %v3039 = vsel %vm3027, %v3017, %v3020
        %v3040 = vsel %vm3030, %v3026, 1326507024
        %v3041 = vsel %vm3029, %v3023, %v3040
        %v3042 = vsel %vm3028, %v3039, %v3041
        %v3043 = vshll.u32 %v3003, 8
        %v3044 = vand.u32 %v3043, 65535
        %v3045 = vshrl.u32 %v3043, 16
        %v3046 = vand.u32 %v3042, 65535
        %v3047 = vshrl.u32 %v3042, 16
        %v3048 = vmul.u32 %v3044, %v3046
        %v3049 = vmul.u32 %v3044, %v3047
        %v3050 = vmul.u32 %v3045, %v3046
        %v3051 = vmul.u32 %v3045, %v3047
        %v3052 = vshll.u32 %v3049, 16
        %v3053 = vshrl.u32 %v3049, 16
        %v3054 = vshll.u32 %v3050, 16
        %v3055 = vshrl.u32 %v3050, 16
        %vm3056 = vc.u32 %v3048, %v3052
        %v3057 = vsel %vm3056, 1, 0
        %v3058 = vadd.s32 %v3048, %v3052
        %v3059 = vadd.s32 %v3051, %v3057
        %vm3060 = vc.u32 %v3058, %v3054
        %v3061 = vsel %vm3060, 1, 0
        %v3062 = vadd.s32 %v3058, %v3054
        %v3063 = vadd.s32 %v3059, %v3061
        %v3064 = vadd.s32 %v3063, %v3053
        %v3065 = vadd.s32 %v3064, %v3055
        %v3066 = vand.u32 %v3043, 65535
        %v3067 = vshrl.u32 %v3043, 16
        %v3068 = vand.u32 %v3038, 65535
        %v3069 = vshrl.u32 %v3038, 16
        %v3070 = vmul.u32 %v3066, %v3068
        %v3071 = vmul.u32 %v3066, %v3069
        %v3072 = vmul.u32 %v3067, %v3068
        %v3073 = vmul.u32 %v3067, %v3069
        %v3074 = vshll.u32 %v3071, 16
        %v3075 = vshrl.u32 %v3071, 16
        %v3076 = vshll.u32 %v3072, 16
        %v3077 = vshrl.u32 %v3072, 16
        %vm3078 = vc.u32 %v3070, %v3074
        %v3079 = vsel %vm3078, 1, 0
        %v3080 = vadd.s32 %v3070, %v3074
        %v3081 = vadd.s32 %v3073, %v3079
        %vm3082 = vc.u32 %v3080, %v3076
        %v3083 = vsel %vm3082, 1, 0
        %v3084 = vadd.s32 %v3080, %v3076
        %v3085 = vadd.s32 %v3081, %v3083
        %v3086 = vadd.s32 %v3085, %v3075
        %v3087 = vadd.s32 %v3086, %v3077
        %v3088 = vmul.u32 %v3043, %v3034
        %v3089 = vadd.s32 %v3065, %v3084
        %vm3090 = vc.u32 %v3065, %v3084
        %v3091 = vadd.s32 %v3087, 1
        %v3092 = vsel %vm3090, %v3091, %v3087
        %v3093 = vadd.s32 %v3088, %v3092
        %v3094 = vadd.s32 %v3093, 536870912
        %v3095 = vshrl.u32 %v3094, 30
        %v3096 = vshll.u32 %v3095, 30
        %v3097 = vsub.s32 %v3093, %v3096
        %vm3098 = vcmp.lt.s32.totalorder %v3097, 0
        %v3099 = vsub.s32 0, %v3097
        %v3100 = vsel %vm3098, %v3099, %v3097
        %v3101 = vclz %v3100
        %v3102 = vsub.s32 %v3101, 2
        %vm3103 = vcmp.gt.s32.totalorder 0, %v3102
        %v3104 = vsel %vm3103, 0, %v3102
        %v3105 = vsub.s32 32, %v3104
        %v3106 = vshll.u32 %v3097, %v3104
        %v3107 = vshrl.u32 %v3089, %v3105
        %v3108 = vor.u32 %v3106, %v3107
        %v3109 = vsub.s32 4294967266, %v3104
        %v3110 = vadd.s32 %v3109, 127
        %v3111 = vshll.u32 %v3110, 23
        %v3112 = vor.u32 4788187, %v3111
        %v3113 = vand.u32 2147483647, %v3112
        %v3115 = vcvt.s32.f32 %v3108
        %v3116 = vmul.f32 %v3115, %v3113
        %v3117 = vxor.u32 %v3116, 2147483648
        %v3118 = vsel %vm2997, %v3117, %v3116
        %v3119 = vsub.s32 4, %v3095
        %v3120 = vsel %vm2997, %v3119, %v3095
        %v3121 = vsel %vm2996, %v361, %v3118
        %v3122 = vsel %vm2996, 0, %v3120
        %v3123 = vmul.f32 %v3121, %v3121
        %v3124 = vmul.f32 %v3123, -0.001358992
        %v3125 = vadd.f32 %v3124, 0.041655596
        %v3126 = vmul.f32 %v3123, %v3125
        %v3127 = vadd.f32 %v3126, -0.4999988
        %v3128 = vmul.f32 %v3123, %v3127
        %v3129 = vadd.f32 1.0, %v3128
        %v3130 = vmul.f32 %v3121, %v3121
        %v3131 = vmul.f32 %v3130, -0.00019511016
        %v3132 = vadd.f32 %v3131, 0.008332121
        %v3133 = vmul.f32 %v3130, %v3132
        %v3134 = vadd.f32 %v3133, -0.16666654
        %v3135 = vmul.f32 %v3130, %v3134
        %v3136 = vadd.f32 %v3135, 1.0
        %v3137 = vmul.f32 %v3136, %v3121
        %vm3138 = vweird.f32 %v361
        %v3139 = vadd.s32 %v3122, 3
        %v3140 = vand.u32 %v3139, 3
        %vm3141 = vcmp.lt.s32.totalorder %v3140, 2
        %vm3142 = vcmp.eq.s32.totalorder %v3140, 0
        %v3143 = vxor.u32 %v3137, 2147483648
        %v3144 = vsel %vm3142, %v3129, %v3143
        %vm3145 = vcmp.eq.s32.totalorder %v3140, 2
        %v3146 = vxor.u32 %v3129, 2147483648
        %v3147 = vsel %vm3145, %v3146, %v3137
        %v3148 = vsel %vm3141, %v3144, %v3147
        %v3149 = vsel %vm3138, nan, %v3148
        %v3150 = vand.u32 2147483647, %v362
        %vm3151 = vcmp.le.f32.partialorder %v3150, 0.7853982
        %vm3152 = vcmp.lt.s32.totalorder %v362, 0
        %v3153 = vand.u32 %v362, 2139095040
        %v3154 = vshrl.u32 %v3153, 23
        %v3155 = vsub.s32 %v3154, 127
        %v3156 = vand.u32 2147483647, %v362
        %v3157 = vand.u32 %v3156, 8388607
        %v3158 = vor.u32 %v3157, 8388608
        %v3159 = vsub.s32 0, %v3158
        %v3160 = vadd.s32 %v3155, 1
        %vm3161 = vcmp.gt.s32.totalorder %v3160, 0
        %v3162 = vsel %vm3161, %v3160, 0
        %v3163 = vshrl.u32 %v3162, 5
        %v3164 = vand.u32 %v3162, 31
        %v3165 = vsub.s32 32, %v3164
        %v3166 = vshrl.u32 683565275, %v3165
        %v3167 = vshll.u32 683565275, %v3164
        %v3168 = vshrl.u32 2475754826, %v3165
        %v3169 = vor.u32 %v3167, %v3168
        %v3170 = vshll.u32 2475754826, %v3164
        %v3171 = vshrl.u32 2131351028, %v3165
        %v3172 = vor.u32 %v3170, %v3171
        %v3173 = vshll.u32 2131351028, %v3164
        %v3174 = vshrl.u32 2102212464, %v3165
        %v3175 = vor.u32 %v3173, %v3174
        %v3176 = vshll.u32 2102212464, %v3164
        %v3177 = vshrl.u32 920167782, %v3165
        %v3178 = vor.u32 %v3176, %v3177
        %v3179 = vshll.u32 920167782, %v3164
        %v3180 = vshrl.u32 1326507024, %v3165
        %v3181 = vor.u32 %v3179, %v3180
        %vm3182 = vcmp.lt.s32.totalorder %v3163, 1
        %vm3183 = vcmp.lt.s32.totalorder %v3163, 2
        %vm3184 = vcmp.lt.s32.totalorder %v3163, 3
        %vm3185 = vcmp.lt.s32.totalorder %v3163, 4
        %v3186 = vsel %vm3182, %v3166, %v3169
        %v3187 = vsel %vm3185, %v3175, 2102212464
        %v3188 = vsel %vm3184, %v3172, %v3187
        %v3189 = vsel %vm3183, %v3186, %v3188
        %v3190 = vsel %vm3182, %v3169, %v3172
        %v3191 = vsel %vm3185, %v3178, 920167782
        %v3192 = vsel %vm3184, %v3175, %v3191
        %v3193 = vsel %vm3183, %v3190, %v3192
        %v3194 = vsel %vm3182, %v3172, %v3175
        %v3195 = vsel %vm3185, %v3181, 1326507024
        %v3196 = vsel %vm3184, %v3178, %v3195
        %v3197 = vsel %vm3183, %v3194, %v3196
        %v3198 = vshll.u32 %v3158, 8
        %v3199 = vand.u32 %v3198, 65535
        %v3200 = vshrl.u32 %v3198, 16
        %v3201 = vand.u32 %v3197, 65535
        %v3202 = vshrl.u32 %v3197, 16
        %v3203 = vmul.u32 %v3199, %v3201
        %v3204 = vmul.u32 %v3199, %v3202
        %v3205 = vmul.u32 %v3200, %v3201
        %v3206 = vmul.u32 %v3200, %v3202
        %v3207 = vshll.u32 %v3204, 16
        %v3208 = vshrl.u32 %v3204, 16
        %v3209 = vshll.u32 %v3205, 16
        %v3210 = vshrl.u32 %v3205, 16
        %vm3211 = vc.u32 %v3203, %v3207
        %v3212 = vsel %vm3211, 1, 0
        %v3213 = vadd.s32 %v3203, %v3207
        %v3214 = vadd.s32 %v3206, %v3212
        %vm3215 = vc.u32 %v3213, %v3209
        %v3216 = vsel %vm3215, 1, 0
        %v3217 = vadd.s32 %v3213, %v3209
        %v3218 = vadd.s32 %v3214, %v3216
        %v3219 = vadd.s32 %v3218, %v3208
        %v3220 = vadd.s32 %v3219, %v3210
        %v3221 = vand.u32 %v3198, 65535
        %v3222 = vshrl.u32 %v3198, 16
        %v3223 = vand.u32 %v3193, 65535
        %v3224 = vshrl.u32 %v3193, 16
        %v3225 = vmul.u32 %v3221, %v3223
        %v3226 = vmul.u32 %v3221, %v3224
        %v3227 = vmul.u32 %v3222, %v3223
        %v3228 = vmul.u32 %v3222, %v3224
        %v3229 = vshll.u32 %v3226, 16
        %v3230 = vshrl.u32 %v3226, 16
        %v3231 = vshll.u32 %v3227, 16
        %v3232 = vshrl.u32 %v3227, 16
        %vm3233 = vc.u32 %v3225, %v3229
        %v3234 = vsel %vm3233, 1, 0
        %v3235 = vadd.s32 %v3225, %v3229
        %v3236 = vadd.s32 %v3228, %v3234
        %vm3237 = vc.u32 %v3235, %v3231
        %v3238 = vsel %vm3237, 1, 0
        %v3239 = vadd.s32 %v3235, %v3231
        %v3240 = vadd.s32 %v3236, %v3238
        %v3241 = vadd.s32 %v3240, %v3230
        %v3242 = vadd.s32 %v3241, %v3232
        %v3243 = vmul.u32 %v3198, %v3189
        %v3244 = vadd.s32 %v3220, %v3239
        %vm3245 = vc.u32 %v3220, %v3239
        %v3246 = vadd.s32 %v3242, 1
        %v3247 = vsel %vm3245, %v3246, %v3242
        %v3248 = vadd.s32 %v3243, %v3247
        %v3249 = vadd.s32 %v3248, 536870912
        %v3250 = vshrl.u32 %v3249, 30
        %v3251 = vshll.u32 %v3250, 30
        %v3252 = vsub.s32 %v3248, %v3251
        %vm3253 = vcmp.lt.s32.totalorder %v3252, 0
        %v3254 = vsub.s32 0, %v3252
        %v3255 = vsel %vm3253, %v3254, %v3252
        %v3256 = vclz %v3255
        %v3257 = vsub.s32 %v3256, 2
        %vm3258 = vcmp.gt.s32.totalorder 0, %v3257
        %v3259 = vsel %vm3258, 0, %v3257
        %v3260 = vsub.s32 32, %v3259
        %v3261 = vshll.u32 %v3252, %v3259
        %v3262 = vshrl.u32 %v3244, %v3260
        %v3263 = vor.u32 %v3261, %v3262
        %v3264 = vsub.s32 4294967266, %v3259
        %v3265 = vadd.s32 %v3264, 127
        %v3266 = vshll.u32 %v3265, 23
        %v3267 = vor.u32 4788187, %v3266
        %v3268 = vand.u32 2147483647, %v3267
        %v3270 = vcvt.s32.f32 %v3263
        %v3271 = vmul.f32 %v3270, %v3268
        %v3272 = vxor.u32 %v3271, 2147483648
        %v3273 = vsel %vm3152, %v3272, %v3271
        %v3274 = vsub.s32 4, %v3250
        %v3275 = vsel %vm3152, %v3274, %v3250
        %v3276 = vsel %vm3151, %v362, %v3273
        %v3277 = vsel %vm3151, 0, %v3275
        %v3278 = vmul.f32 %v3276, %v3276
        %v3279 = vmul.f32 %v3278, -0.001358992
        %v3280 = vadd.f32 %v3279, 0.041655596
        %v3281 = vmul.f32 %v3278, %v3280
        %v3282 = vadd.f32 %v3281, -0.4999988
        %v3283 = vmul.f32 %v3278, %v3282
        %v3284 = vadd.f32 1.0, %v3283
        %v3285 = vmul.f32 %v3276, %v3276
        %v3286 = vmul.f32 %v3285, -0.00019511016
        %v3287 = vadd.f32 %v3286, 0.008332121
        %v3288 = vmul.f32 %v3285, %v3287
        %v3289 = vadd.f32 %v3288, -0.16666654
        %v3290 = vmul.f32 %v3285, %v3289
        %v3291 = vadd.f32 %v3290, 1.0
        %v3292 = vmul.f32 %v3291, %v3276
        %vm3293 = vweird.f32 %v362
        %v3294 = vadd.s32 %v3277, 3
        %v3295 = vand.u32 %v3294, 3
        %vm3296 = vcmp.lt.s32.totalorder %v3295, 2
        %vm3297 = vcmp.eq.s32.totalorder %v3295, 0
        %v3298 = vxor.u32 %v3292, 2147483648
        %v3299 = vsel %vm3297, %v3284, %v3298
        %vm3300 = vcmp.eq.s32.totalorder %v3295, 2
        %v3301 = vxor.u32 %v3284, 2147483648
        %v3302 = vsel %vm3300, %v3301, %v3292
        %v3303 = vsel %vm3296, %v3299, %v3302
        %v3304 = vsel %vm3293, nan, %v3303
        %v3305 = vand.u32 2147483647, %v363
        %vm3306 = vcmp.le.f32.partialorder %v3305, 0.7853982
        %vm3307 = vcmp.lt.s32.totalorder %v363, 0
        %v3308 = vand.u32 %v363, 2139095040
        %v3309 = vshrl.u32 %v3308, 23
        %v3310 = vsub.s32 %v3309, 127
        %v3311 = vand.u32 2147483647, %v363
        %v3312 = vand.u32 %v3311, 8388607
        %v3313 = vor.u32 %v3312, 8388608
        %v3314 = vsub.s32 0, %v3313
        %v3315 = vadd.s32 %v3310, 1
        %vm3316 = vcmp.gt.s32.totalorder %v3315, 0
        %v3317 = vsel %vm3316, %v3315, 0
        %v3318 = vshrl.u32 %v3317, 5
        %v3319 = vand.u32 %v3317, 31
        %v3320 = vsub.s32 32, %v3319
        %v3321 = vshrl.u32 683565275, %v3320
        %v3322 = vshll.u32 683565275, %v3319
        %v3323 = vshrl.u32 2475754826, %v3320
        %v3324 = vor.u32 %v3322, %v3323
        %v3325 = vshll.u32 2475754826, %v3319
        %v3326 = vshrl.u32 2131351028, %v3320
        %v3327 = vor.u32 %v3325, %v3326
        %v3328 = vshll.u32 2131351028, %v3319
        %v3329 = vshrl.u32 2102212464, %v3320
        %v3330 = vor.u32 %v3328, %v3329
        %v3331 = vshll.u32 2102212464, %v3319
        %v3332 = vshrl.u32 920167782, %v3320
        %v3333 = vor.u32 %v3331, %v3332
        %v3334 = vshll.u32 920167782, %v3319
        %v3335 = vshrl.u32 1326507024, %v3320
        %v3336 = vor.u32 %v3334, %v3335
        %vm3337 = vcmp.lt.s32.totalorder %v3318, 1
        %vm3338 = vcmp.lt.s32.totalorder %v3318, 2
        %vm3339 = vcmp.lt.s32.totalorder %v3318, 3
        %vm3340 = vcmp.lt.s32.totalorder %v3318, 4
        %v3341 = vsel %vm3337, %v3321, %v3324
        %v3342 = vsel %vm3340, %v3330, 2102212464
        %v3343 = vsel %vm3339, %v3327, %v3342
        %v3344 = vsel %vm3338, %v3341, %v3343
        %v3345 = vsel %vm3337, %v3324, %v3327
        %v3346 = vsel %vm3340, %v3333, 920167782
        %v3347 = vsel %vm3339, %v3330, %v3346
        %v3348 = vsel %vm3338, %v3345, %v3347
        %v3349 = vsel %vm3337, %v3327, %v3330
        %v3350 = vsel %vm3340, %v3336, 1326507024
        %v3351 = vsel %vm3339, %v3333, %v3350
        %v3352 = vsel %vm3338, %v3349, %v3351
        %v3353 = vshll.u32 %v3313, 8
        %v3354 = vand.u32 %v3353, 65535
        %v3355 = vshrl.u32 %v3353, 16
        %v3356 = vand.u32 %v3352, 65535
        %v3357 = vshrl.u32 %v3352, 16
        %v3358 = vmul.u32 %v3354, %v3356
        %v3359 = vmul.u32 %v3354, %v3357
        %v3360 = vmul.u32 %v3355, %v3356
        %v3361 = vmul.u32 %v3355, %v3357
        %v3362 = vshll.u32 %v3359, 16
        %v3363 = vshrl.u32 %v3359, 16
        %v3364 = vshll.u32 %v3360, 16
        %v3365 = vshrl.u32 %v3360, 16
        %vm3366 = vc.u32 %v3358, %v3362
        %v3367 = vsel %vm3366, 1, 0
        %v3368 = vadd.s32 %v3358, %v3362
        %v3369 = vadd.s32 %v3361, %v3367
        %vm3370 = vc.u32 %v3368, %v3364
        %v3371 = vsel %vm3370, 1, 0
        %v3372 = vadd.s32 %v3368, %v3364
        %v3373 = vadd.s32 %v3369, %v3371
        %v3374 = vadd.s32 %v3373, %v3363
        %v3375 = vadd.s32 %v3374, %v3365
        %v3376 = vand.u32 %v3353, 65535
        %v3377 = vshrl.u32 %v3353, 16
        %v3378 = vand.u32 %v3348, 65535
        %v3379 = vshrl.u32 %v3348, 16
        %v3380 = vmul.u32 %v3376, %v3378
        %v3381 = vmul.u32 %v3376, %v3379
        %v3382 = vmul.u32 %v3377, %v3378
        %v3383 = vmul.u32 %v3377, %v3379
        %v3384 = vshll.u32 %v3381, 16
        %v3385 = vshrl.u32 %v3381, 16
        %v3386 = vshll.u32 %v3382, 16
        %v3387 = vshrl.u32 %v3382, 16
        %vm3388 = vc.u32 %v3380, %v3384
        %v3389 = vsel %vm3388, 1, 0
        %v3390 = vadd.s32 %v3380, %v3384
        %v3391 = vadd.s32 %v3383, %v3389
        %vm3392 = vc.u32 %v3390, %v3386
        %v3393 = vsel %vm3392, 1, 0
        %v3394 = vadd.s32 %v3390, %v3386
        %v3395 = vadd.s32 %v3391, %v3393
        %v3396 = vadd.s32 %v3395, %v3385
        %v3397 = vadd.s32 %v3396, %v3387
        %v3398 = vmul.u32 %v3353, %v3344
        %v3399 = vadd.s32 %v3375, %v3394
        %vm3400 = vc.u32 %v3375, %v3394
        %v3401 = vadd.s32 %v3397, 1
        %v3402 = vsel %vm3400, %v3401, %v3397
        %v3403 = vadd.s32 %v3398, %v3402
        %v3404 = vadd.s32 %v3403, 536870912
        %v3405 = vshrl.u32 %v3404, 30
        %v3406 = vshll.u32 %v3405, 30
        %v3407 = vsub.s32 %v3403, %v3406
        %vm3408 = vcmp.lt.s32.totalorder %v3407, 0
        %v3409 = vsub.s32 0, %v3407
        %v3410 = vsel %vm3408, %v3409, %v3407
        %v3411 = vclz %v3410
        %v3412 = vsub.s32 %v3411, 2
        %vm3413 = vcmp.gt.s32.totalorder 0, %v3412
        %v3414 = vsel %vm3413, 0, %v3412
        %v3415 = vsub.s32 32, %v3414
        %v3416 = vshll.u32 %v3407, %v3414
        %v3417 = vshrl.u32 %v3399, %v3415
        %v3418 = vor.u32 %v3416, %v3417
        %v3419 = vsub.s32 4294967266, %v3414
        %v3420 = vadd.s32 %v3419, 127
        %v3421 = vshll.u32 %v3420, 23
        %v3422 = vor.u32 4788187, %v3421
        %v3423 = vand.u32 2147483647, %v3422
        %v3425 = vcvt.s32.f32 %v3418
        %v3426 = vmul.f32 %v3425, %v3423
        %v3427 = vxor.u32 %v3426, 2147483648
        %v3428 = vsel %vm3307, %v3427, %v3426
        %v3429 = vsub.s32 4, %v3405
        %v3430 = vsel %vm3307, %v3429, %v3405
        %v3431 = vsel %vm3306, %v363, %v3428
        %v3432 = vsel %vm3306, 0, %v3430
        %v3433 = vmul.f32 %v3431, %v3431
        %v3434 = vmul.f32 %v3433, -0.001358992
        %v3435 = vadd.f32 %v3434, 0.041655596
        %v3436 = vmul.f32 %v3433, %v3435
        %v3437 = vadd.f32 %v3436, -0.4999988
        %v3438 = vmul.f32 %v3433, %v3437
        %v3439 = vadd.f32 1.0, %v3438
        %v3440 = vmul.f32 %v3431, %v3431
        %v3441 = vmul.f32 %v3440, -0.00019511016
        %v3442 = vadd.f32 %v3441, 0.008332121
        %v3443 = vmul.f32 %v3440, %v3442
        %v3444 = vadd.f32 %v3443, -0.16666654
        %v3445 = vmul.f32 %v3440, %v3444
        %v3446 = vadd.f32 %v3445, 1.0
        %v3447 = vmul.f32 %v3446, %v3431
        %vm3448 = vweird.f32 %v363
        %v3449 = vadd.s32 %v3432, 3
        %v3450 = vand.u32 %v3449, 3
        %vm3451 = vcmp.lt.s32.totalorder %v3450, 2
        %vm3452 = vcmp.eq.s32.totalorder %v3450, 0
        %v3453 = vxor.u32 %v3447, 2147483648
        %v3454 = vsel %vm3452, %v3439, %v3453
        %vm3455 = vcmp.eq.s32.totalorder %v3450, 2
        %v3456 = vxor.u32 %v3439, 2147483648
        %v3457 = vsel %vm3455, %v3456, %v3447
        %v3458 = vsel %vm3451, %v3454, %v3457
        %v3459 = vsel %vm3448, nan, %v3458
        %v3460 = vand.u32 2147483647, %v364
        %vm3461 = vcmp.le.f32.partialorder %v3460, 0.7853982
        %vm3462 = vcmp.lt.s32.totalorder %v364, 0
        %v3463 = vand.u32 %v364, 2139095040
        %v3464 = vshrl.u32 %v3463, 23
        %v3465 = vsub.s32 %v3464, 127
        %v3466 = vand.u32 2147483647, %v364
        %v3467 = vand.u32 %v3466, 8388607
        %v3468 = vor.u32 %v3467, 8388608
        %v3469 = vsub.s32 0, %v3468
        %v3470 = vadd.s32 %v3465, 1
        %vm3471 = vcmp.gt.s32.totalorder %v3470, 0
        %v3472 = vsel %vm3471, %v3470, 0
        %v3473 = vshrl.u32 %v3472, 5
        %v3474 = vand.u32 %v3472, 31
        %v3475 = vsub.s32 32, %v3474
        %v3476 = vshrl.u32 683565275, %v3475
        %v3477 = vshll.u32 683565275, %v3474
        %v3478 = vshrl.u32 2475754826, %v3475
        %v3479 = vor.u32 %v3477, %v3478
        %v3480 = vshll.u32 2475754826, %v3474
        %v3481 = vshrl.u32 2131351028, %v3475
        %v3482 = vor.u32 %v3480, %v3481
        %v3483 = vshll.u32 2131351028, %v3474
        %v3484 = vshrl.u32 2102212464, %v3475
        %v3485 = vor.u32 %v3483, %v3484
        %v3486 = vshll.u32 2102212464, %v3474
        %v3487 = vshrl.u32 920167782, %v3475
        %v3488 = vor.u32 %v3486, %v3487
        %v3489 = vshll.u32 920167782, %v3474
        %v3490 = vshrl.u32 1326507024, %v3475
        %v3491 = vor.u32 %v3489, %v3490
        %vm3492 = vcmp.lt.s32.totalorder %v3473, 1
        %vm3493 = vcmp.lt.s32.totalorder %v3473, 2
        %vm3494 = vcmp.lt.s32.totalorder %v3473, 3
        %vm3495 = vcmp.lt.s32.totalorder %v3473, 4
        %v3496 = vsel %vm3492, %v3476, %v3479
        %v3497 = vsel %vm3495, %v3485, 2102212464
        %v3498 = vsel %vm3494, %v3482, %v3497
        %v3499 = vsel %vm3493, %v3496, %v3498
        %v3500 = vsel %vm3492, %v3479, %v3482
        %v3501 = vsel %vm3495, %v3488, 920167782
        %v3502 = vsel %vm3494, %v3485, %v3501
        %v3503 = vsel %vm3493, %v3500, %v3502
        %v3504 = vsel %vm3492, %v3482, %v3485
        %v3505 = vsel %vm3495, %v3491, 1326507024
        %v3506 = vsel %vm3494, %v3488, %v3505
        %v3507 = vsel %vm3493, %v3504, %v3506
        %v3508 = vshll.u32 %v3468, 8
        %v3509 = vand.u32 %v3508, 65535
        %v3510 = vshrl.u32 %v3508, 16
        %v3511 = vand.u32 %v3507, 65535
        %v3512 = vshrl.u32 %v3507, 16
        %v3513 = vmul.u32 %v3509, %v3511
        %v3514 = vmul.u32 %v3509, %v3512
        %v3515 = vmul.u32 %v3510, %v3511
        %v3516 = vmul.u32 %v3510, %v3512
        %v3517 = vshll.u32 %v3514, 16
        %v3518 = vshrl.u32 %v3514, 16
        %v3519 = vshll.u32 %v3515, 16
        %v3520 = vshrl.u32 %v3515, 16
        %vm3521 = vc.u32 %v3513, %v3517
        %v3522 = vsel %vm3521, 1, 0
        %v3523 = vadd.s32 %v3513, %v3517
        %v3524 = vadd.s32 %v3516, %v3522
        %vm3525 = vc.u32 %v3523, %v3519
        %v3526 = vsel %vm3525, 1, 0
        %v3527 = vadd.s32 %v3523, %v3519
        %v3528 = vadd.s32 %v3524, %v3526
        %v3529 = vadd.s32 %v3528, %v3518
        %v3530 = vadd.s32 %v3529, %v3520
        %v3531 = vand.u32 %v3508, 65535
        %v3532 = vshrl.u32 %v3508, 16
        %v3533 = vand.u32 %v3503, 65535
        %v3534 = vshrl.u32 %v3503, 16
        %v3535 = vmul.u32 %v3531, %v3533
        %v3536 = vmul.u32 %v3531, %v3534
        %v3537 = vmul.u32 %v3532, %v3533
        %v3538 = vmul.u32 %v3532, %v3534
        %v3539 = vshll.u32 %v3536, 16
        %v3540 = vshrl.u32 %v3536, 16
        %v3541 = vshll.u32 %v3537, 16
        %v3542 = vshrl.u32 %v3537, 16
        %vm3543 = vc.u32 %v3535, %v3539
        %v3544 = vsel %vm3543, 1, 0
        %v3545 = vadd.s32 %v3535, %v3539
        %v3546 = vadd.s32 %v3538, %v3544
        %vm3547 = vc.u32 %v3545, %v3541
        %v3548 = vsel %vm3547, 1, 0
        %v3549 = vadd.s32 %v3545, %v3541
        %v3550 = vadd.s32 %v3546, %v3548
        %v3551 = vadd.s32 %v3550, %v3540
        %v3552 = vadd.s32 %v3551, %v3542
        %v3553 = vmul.u32 %v3508, %v3499
        %v3554 = vadd.s32 %v3530, %v3549
        %vm3555 = vc.u32 %v3530, %v3549
        %v3556 = vadd.s32 %v3552, 1
        %v3557 = vsel %vm3555, %v3556, %v3552
        %v3558 = vadd.s32 %v3553, %v3557
        %v3559 = vadd.s32 %v3558, 536870912
        %v3560 = vshrl.u32 %v3559, 30
        %v3561 = vshll.u32 %v3560, 30
        %v3562 = vsub.s32 %v3558, %v3561
        %vm3563 = vcmp.lt.s32.totalorder %v3562, 0
        %v3564 = vsub.s32 0, %v3562
        %v3565 = vsel %vm3563, %v3564, %v3562
        %v3566 = vclz %v3565
        %v3567 = vsub.s32 %v3566, 2
        %vm3568 = vcmp.gt.s32.totalorder 0, %v3567
        %v3569 = vsel %vm3568, 0, %v3567
        %v3570 = vsub.s32 32, %v3569
        %v3571 = vshll.u32 %v3562, %v3569
        %v3572 = vshrl.u32 %v3554, %v3570
        %v3573 = vor.u32 %v3571, %v3572
        %v3574 = vsub.s32 4294967266, %v3569
        %v3575 = vadd.s32 %v3574, 127
        %v3576 = vshll.u32 %v3575, 23
        %v3577 = vor.u32 4788187, %v3576
        %v3578 = vand.u32 2147483647, %v3577
        %v3580 = vcvt.s32.f32 %v3573
        %v3581 = vmul.f32 %v3580, %v3578
        %v3582 = vxor.u32 %v3581, 2147483648
        %v3583 = vsel %vm3462, %v3582, %v3581
        %v3584 = vsub.s32 4, %v3560
        %v3585 = vsel %vm3462, %v3584, %v3560
        %v3586 = vsel %vm3461, %v364, %v3583
        %v3587 = vsel %vm3461, 0, %v3585
        %v3588 = vmul.f32 %v3586, %v3586
        %v3589 = vmul.f32 %v3588, -0.001358992
        %v3590 = vadd.f32 %v3589, 0.041655596
        %v3591 = vmul.f32 %v3588, %v3590
        %v3592 = vadd.f32 %v3591, -0.4999988
        %v3593 = vmul.f32 %v3588, %v3592
        %v3594 = vadd.f32 1.0, %v3593
        %v3595 = vmul.f32 %v3586, %v3586
        %v3596 = vmul.f32 %v3595, -0.00019511016
        %v3597 = vadd.f32 %v3596, 0.008332121
        %v3598 = vmul.f32 %v3595, %v3597
        %v3599 = vadd.f32 %v3598, -0.16666654
        %v3600 = vmul.f32 %v3595, %v3599
        %v3601 = vadd.f32 %v3600, 1.0
        %v3602 = vmul.f32 %v3601, %v3586
        %vm3603 = vweird.f32 %v364
        %v3604 = vadd.s32 %v3587, 3
        %v3605 = vand.u32 %v3604, 3
        %vm3606 = vcmp.lt.s32.totalorder %v3605, 2
        %vm3607 = vcmp.eq.s32.totalorder %v3605, 0
        %v3608 = vxor.u32 %v3602, 2147483648
        %v3609 = vsel %vm3607, %v3594, %v3608
        %vm3610 = vcmp.eq.s32.totalorder %v3605, 2
        %v3611 = vxor.u32 %v3594, 2147483648
        %v3612 = vsel %vm3610, %v3611, %v3602
        %v3613 = vsel %vm3606, %v3609, %v3612
        %v3614 = vsel %vm3603, nan, %v3613
        %v3615 = vand.u32 2147483647, %v365
        %vm3616 = vcmp.le.f32.partialorder %v3615, 0.7853982
        %vm3617 = vcmp.lt.s32.totalorder %v365, 0
        %v3618 = vand.u32 %v365, 2139095040
        %v3619 = vshrl.u32 %v3618, 23
        %v3620 = vsub.s32 %v3619, 127
        %v3621 = vand.u32 2147483647, %v365
        %v3622 = vand.u32 %v3621, 8388607
        %v3623 = vor.u32 %v3622, 8388608
        %v3624 = vsub.s32 0, %v3623
        %v3625 = vadd.s32 %v3620, 1
        %vm3626 = vcmp.gt.s32.totalorder %v3625, 0
        %v3627 = vsel %vm3626, %v3625, 0
        %v3628 = vshrl.u32 %v3627, 5
        %v3629 = vand.u32 %v3627, 31
        %v3630 = vsub.s32 32, %v3629
        %v3631 = vshrl.u32 683565275, %v3630
        %v3632 = vshll.u32 683565275, %v3629
        %v3633 = vshrl.u32 2475754826, %v3630
        %v3634 = vor.u32 %v3632, %v3633
        %v3635 = vshll.u32 2475754826, %v3629
        %v3636 = vshrl.u32 2131351028, %v3630
        %v3637 = vor.u32 %v3635, %v3636
        %v3638 = vshll.u32 2131351028, %v3629
        %v3639 = vshrl.u32 2102212464, %v3630
        %v3640 = vor.u32 %v3638, %v3639
        %v3641 = vshll.u32 2102212464, %v3629
        %v3642 = vshrl.u32 920167782, %v3630
        %v3643 = vor.u32 %v3641, %v3642
        %v3644 = vshll.u32 920167782, %v3629
        %v3645 = vshrl.u32 1326507024, %v3630
        %v3646 = vor.u32 %v3644, %v3645
        %vm3647 = vcmp.lt.s32.totalorder %v3628, 1
        %vm3648 = vcmp.lt.s32.totalorder %v3628, 2
        %vm3649 = vcmp.lt.s32.totalorder %v3628, 3
        %vm3650 = vcmp.lt.s32.totalorder %v3628, 4
        %v3651 = vsel %vm3647, %v3631, %v3634
        %v3652 = vsel %vm3650, %v3640, 2102212464
        %v3653 = vsel %vm3649, %v3637, %v3652
        %v3654 = vsel %vm3648, %v3651, %v3653
        %v3655 = vsel %vm3647, %v3634, %v3637
        %v3656 = vsel %vm3650, %v3643, 920167782
        %v3657 = vsel %vm3649, %v3640, %v3656
        %v3658 = vsel %vm3648, %v3655, %v3657
        %v3659 = vsel %vm3647, %v3637, %v3640
        %v3660 = vsel %vm3650, %v3646, 1326507024
        %v3661 = vsel %vm3649, %v3643, %v3660
        %v3662 = vsel %vm3648, %v3659, %v3661
        %v3663 = vshll.u32 %v3623, 8
        %v3664 = vand.u32 %v3663, 65535
        %v3665 = vshrl.u32 %v3663, 16
        %v3666 = vand.u32 %v3662, 65535
        %v3667 = vshrl.u32 %v3662, 16
        %v3668 = vmul.u32 %v3664, %v3666
        %v3669 = vmul.u32 %v3664, %v3667
        %v3670 = vmul.u32 %v3665, %v3666
        %v3671 = vmul.u32 %v3665, %v3667
        %v3672 = vshll.u32 %v3669, 16
        %v3673 = vshrl.u32 %v3669, 16
        %v3674 = vshll.u32 %v3670, 16
        %v3675 = vshrl.u32 %v3670, 16
        %vm3676 = vc.u32 %v3668, %v3672
        %v3677 = vsel %vm3676, 1, 0
        %v3678 = vadd.s32 %v3668, %v3672
        %v3679 = vadd.s32 %v3671, %v3677
        %vm3680 = vc.u32 %v3678, %v3674
        %v3681 = vsel %vm3680, 1, 0
        %v3682 = vadd.s32 %v3678, %v3674
        %v3683 = vadd.s32 %v3679, %v3681
        %v3684 = vadd.s32 %v3683, %v3673
        %v3685 = vadd.s32 %v3684, %v3675
        %v3686 = vand.u32 %v3663, 65535
        %v3687 = vshrl.u32 %v3663, 16
        %v3688 = vand.u32 %v3658, 65535
        %v3689 = vshrl.u32 %v3658, 16
        %v3690 = vmul.u32 %v3686, %v3688
        %v3691 = vmul.u32 %v3686, %v3689
        %v3692 = vmul.u32 %v3687, %v3688
        %v3693 = vmul.u32 %v3687, %v3689
        %v3694 = vshll.u32 %v3691, 16
        %v3695 = vshrl.u32 %v3691, 16
        %v3696 = vshll.u32 %v3692, 16
        %v3697 = vshrl.u32 %v3692, 16
        %vm3698 = vc.u32 %v3690, %v3694
        %v3699 = vsel %vm3698, 1, 0
        %v3700 = vadd.s32 %v3690, %v3694
        %v3701 = vadd.s32 %v3693, %v3699
        %vm3702 = vc.u32 %v3700, %v3696
        %v3703 = vsel %vm3702, 1, 0
        %v3704 = vadd.s32 %v3700, %v3696
        %v3705 = vadd.s32 %v3701, %v3703
        %v3706 = vadd.s32 %v3705, %v3695
        %v3707 = vadd.s32 %v3706, %v3697
        %v3708 = vmul.u32 %v3663, %v3654
        %v3709 = vadd.s32 %v3685, %v3704
        %vm3710 = vc.u32 %v3685, %v3704
        %v3711 = vadd.s32 %v3707, 1
        %v3712 = vsel %vm3710, %v3711, %v3707
        %v3713 = vadd.s32 %v3708, %v3712
        %v3714 = vadd.s32 %v3713, 536870912
        %v3715 = vshrl.u32 %v3714, 30
        %v3716 = vshll.u32 %v3715, 30
        %v3717 = vsub.s32 %v3713, %v3716
        %vm3718 = vcmp.lt.s32.totalorder %v3717, 0
        %v3719 = vsub.s32 0, %v3717
        %v3720 = vsel %vm3718, %v3719, %v3717
        %v3721 = vclz %v3720
        %v3722 = vsub.s32 %v3721, 2
        %vm3723 = vcmp.gt.s32.totalorder 0, %v3722
        %v3724 = vsel %vm3723, 0, %v3722
        %v3725 = vsub.s32 32, %v3724
        %v3726 = vshll.u32 %v3717, %v3724
        %v3727 = vshrl.u32 %v3709, %v3725
        %v3728 = vor.u32 %v3726, %v3727
        %v3729 = vsub.s32 4294967266, %v3724
        %v3730 = vadd.s32 %v3729, 127
        %v3731 = vshll.u32 %v3730, 23
        %v3732 = vor.u32 4788187, %v3731
        %v3733 = vand.u32 2147483647, %v3732
        %v3735 = vcvt.s32.f32 %v3728
        %v3736 = vmul.f32 %v3735, %v3733
        %v3737 = vxor.u32 %v3736, 2147483648
        %v3738 = vsel %vm3617, %v3737, %v3736
        %v3739 = vsub.s32 4, %v3715
        %v3740 = vsel %vm3617, %v3739, %v3715
        %v3741 = vsel %vm3616, %v365, %v3738
        %v3742 = vsel %vm3616, 0, %v3740
        %v3743 = vmul.f32 %v3741, %v3741
        %v3744 = vmul.f32 %v3743, -0.001358992
        %v3745 = vadd.f32 %v3744, 0.041655596
        %v3746 = vmul.f32 %v3743, %v3745
        %v3747 = vadd.f32 %v3746, -0.4999988
        %v3748 = vmul.f32 %v3743, %v3747
        %v3749 = vadd.f32 1.0, %v3748
        %v3750 = vmul.f32 %v3741, %v3741
        %v3751 = vmul.f32 %v3750, -0.00019511016
        %v3752 = vadd.f32 %v3751, 0.008332121
        %v3753 = vmul.f32 %v3750, %v3752
        %v3754 = vadd.f32 %v3753, -0.16666654
        %v3755 = vmul.f32 %v3750, %v3754
        %v3756 = vadd.f32 %v3755, 1.0
        %v3757 = vmul.f32 %v3756, %v3741
        %vm3758 = vweird.f32 %v365
        %v3759 = vadd.s32 %v3742, 3
        %v3760 = vand.u32 %v3759, 3
        %vm3761 = vcmp.lt.s32.totalorder %v3760, 2
        %vm3762 = vcmp.eq.s32.totalorder %v3760, 0
        %v3763 = vxor.u32 %v3757, 2147483648
        %v3764 = vsel %vm3762, %v3749, %v3763
        %vm3765 = vcmp.eq.s32.totalorder %v3760, 2
        %v3766 = vxor.u32 %v3749, 2147483648
        %v3767 = vsel %vm3765, %v3766, %v3757
        %v3768 = vsel %vm3761, %v3764, %v3767
        %v3769 = vsel %vm3758, nan, %v3768
        %v3770 = vand.u32 2147483647, %v366
        %vm3771 = vcmp.le.f32.partialorder %v3770, 0.7853982
        %vm3772 = vcmp.lt.s32.totalorder %v366, 0
        %v3773 = vand.u32 %v366, 2139095040
        %v3774 = vshrl.u32 %v3773, 23
        %v3775 = vsub.s32 %v3774, 127
        %v3776 = vand.u32 2147483647, %v366
        %v3777 = vand.u32 %v3776, 8388607
        %v3778 = vor.u32 %v3777, 8388608
        %v3779 = vsub.s32 0, %v3778
        %v3780 = vadd.s32 %v3775, 1
        %vm3781 = vcmp.gt.s32.totalorder %v3780, 0
        %v3782 = vsel %vm3781, %v3780, 0
        %v3783 = vshrl.u32 %v3782, 5
        %v3784 = vand.u32 %v3782, 31
        %v3785 = vsub.s32 32, %v3784
        %v3786 = vshrl.u32 683565275, %v3785
        %v3787 = vshll.u32 683565275, %v3784
        %v3788 = vshrl.u32 2475754826, %v3785
        %v3789 = vor.u32 %v3787, %v3788
        %v3790 = vshll.u32 2475754826, %v3784
        %v3791 = vshrl.u32 2131351028, %v3785
        %v3792 = vor.u32 %v3790, %v3791
        %v3793 = vshll.u32 2131351028, %v3784
        %v3794 = vshrl.u32 2102212464, %v3785
        %v3795 = vor.u32 %v3793, %v3794
        %v3796 = vshll.u32 2102212464, %v3784
        %v3797 = vshrl.u32 920167782, %v3785
        %v3798 = vor.u32 %v3796, %v3797
        %v3799 = vshll.u32 920167782, %v3784
        %v3800 = vshrl.u32 1326507024, %v3785
        %v3801 = vor.u32 %v3799, %v3800
        %vm3802 = vcmp.lt.s32.totalorder %v3783, 1
        %vm3803 = vcmp.lt.s32.totalorder %v3783, 2
        %vm3804 = vcmp.lt.s32.totalorder %v3783, 3
        %vm3805 = vcmp.lt.s32.totalorder %v3783, 4
        %v3806 = vsel %vm3802, %v3786, %v3789
        %v3807 = vsel %vm3805, %v3795, 2102212464
        %v3808 = vsel %vm3804, %v3792, %v3807
        %v3809 = vsel %vm3803, %v3806, %v3808
        %v3810 = vsel %vm3802, %v3789, %v3792
        %v3811 = vsel %vm3805, %v3798, 920167782
        %v3812 = vsel %vm3804, %v3795, %v3811
        %v3813 = vsel %vm3803, %v3810, %v3812
        %v3814 = vsel %vm3802, %v3792, %v3795
        %v3815 = vsel %vm3805, %v3801, 1326507024
        %v3816 = vsel %vm3804, %v3798, %v3815
        %v3817 = vsel %vm3803, %v3814, %v3816
        %v3818 = vshll.u32 %v3778, 8
        %v3819 = vand.u32 %v3818, 65535
        %v3820 = vshrl.u32 %v3818, 16
        %v3821 = vand.u32 %v3817, 65535
        %v3822 = vshrl.u32 %v3817, 16
        %v3823 = vmul.u32 %v3819, %v3821
        %v3824 = vmul.u32 %v3819, %v3822
        %v3825 = vmul.u32 %v3820, %v3821
        %v3826 = vmul.u32 %v3820, %v3822
        %v3827 = vshll.u32 %v3824, 16
        %v3828 = vshrl.u32 %v3824, 16
        %v3829 = vshll.u32 %v3825, 16
        %v3830 = vshrl.u32 %v3825, 16
        %vm3831 = vc.u32 %v3823, %v3827
        %v3832 = vsel %vm3831, 1, 0
        %v3833 = vadd.s32 %v3823, %v3827
        %v3834 = vadd.s32 %v3826, %v3832
        %vm3835 = vc.u32 %v3833, %v3829
        %v3836 = vsel %vm3835, 1, 0
        %v3837 = vadd.s32 %v3833, %v3829
        %v3838 = vadd.s32 %v3834, %v3836
        %v3839 = vadd.s32 %v3838, %v3828
        %v3840 = vadd.s32 %v3839, %v3830
        %v3841 = vand.u32 %v3818, 65535
        %v3842 = vshrl.u32 %v3818, 16
        %v3843 = vand.u32 %v3813, 65535
        %v3844 = vshrl.u32 %v3813, 16
        %v3845 = vmul.u32 %v3841, %v3843
        %v3846 = vmul.u32 %v3841, %v3844
        %v3847 = vmul.u32 %v3842, %v3843
        %v3848 = vmul.u32 %v3842, %v3844
        %v3849 = vshll.u32 %v3846, 16
        %v3850 = vshrl.u32 %v3846, 16
        %v3851 = vshll.u32 %v3847, 16
        %v3852 = vshrl.u32 %v3847, 16
        %vm3853 = vc.u32 %v3845, %v3849
        %v3854 = vsel %vm3853, 1, 0
        %v3855 = vadd.s32 %v3845, %v3849
        %v3856 = vadd.s32 %v3848, %v3854
        %vm3857 = vc.u32 %v3855, %v3851
        %v3858 = vsel %vm3857, 1, 0
        %v3859 = vadd.s32 %v3855, %v3851
        %v3860 = vadd.s32 %v3856, %v3858
        %v3861 = vadd.s32 %v3860, %v3850
        %v3862 = vadd.s32 %v3861, %v3852
        %v3863 = vmul.u32 %v3818, %v3809
        %v3864 = vadd.s32 %v3840, %v3859
        %vm3865 = vc.u32 %v3840, %v3859
        %v3866 = vadd.s32 %v3862, 1
        %v3867 = vsel %vm3865, %v3866, %v3862
        %v3868 = vadd.s32 %v3863, %v3867
        %v3869 = vadd.s32 %v3868, 536870912
        %v3870 = vshrl.u32 %v3869, 30
        %v3871 = vshll.u32 %v3870, 30
        %v3872 = vsub.s32 %v3868, %v3871
        %vm3873 = vcmp.lt.s32.totalorder %v3872, 0
        %v3874 = vsub.s32 0, %v3872
        %v3875 = vsel %vm3873, %v3874, %v3872
        %v3876 = vclz %v3875
        %v3877 = vsub.s32 %v3876, 2
        %vm3878 = vcmp.gt.s32.totalorder 0, %v3877
        %v3879 = vsel %vm3878, 0, %v3877
        %v3880 = vsub.s32 32, %v3879
        %v3881 = vshll.u32 %v3872, %v3879
        %v3882 = vshrl.u32 %v3864, %v3880
        %v3883 = vor.u32 %v3881, %v3882
        %v3884 = vsub.s32 4294967266, %v3879
        %v3885 = vadd.s32 %v3884, 127
        %v3886 = vshll.u32 %v3885, 23
        %v3887 = vor.u32 4788187, %v3886
        %v3888 = vand.u32 2147483647, %v3887
        %v3890 = vcvt.s32.f32 %v3883
        %v3891 = vmul.f32 %v3890, %v3888
        %v3892 = vxor.u32 %v3891, 2147483648
        %v3893 = vsel %vm3772, %v3892, %v3891
        %v3894 = vsub.s32 4, %v3870
        %v3895 = vsel %vm3772, %v3894, %v3870
        %v3896 = vsel %vm3771, %v366, %v3893
        %v3897 = vsel %vm3771, 0, %v3895
        %v3898 = vmul.f32 %v3896, %v3896
        %v3899 = vmul.f32 %v3898, -0.001358992
        %v3900 = vadd.f32 %v3899, 0.041655596
        %v3901 = vmul.f32 %v3898, %v3900
        %v3902 = vadd.f32 %v3901, -0.4999988
        %v3903 = vmul.f32 %v3898, %v3902
        %v3904 = vadd.f32 1.0, %v3903
        %v3905 = vmul.f32 %v3896, %v3896
        %v3906 = vmul.f32 %v3905, -0.00019511016
        %v3907 = vadd.f32 %v3906, 0.008332121
        %v3908 = vmul.f32 %v3905, %v3907
        %v3909 = vadd.f32 %v3908, -0.16666654
        %v3910 = vmul.f32 %v3905, %v3909
        %v3911 = vadd.f32 %v3910, 1.0
        %v3912 = vmul.f32 %v3911, %v3896
        %vm3913 = vweird.f32 %v366
        %v3914 = vadd.s32 %v3897, 3
        %v3915 = vand.u32 %v3914, 3
        %vm3916 = vcmp.lt.s32.totalorder %v3915, 2
        %vm3917 = vcmp.eq.s32.totalorder %v3915, 0
        %v3918 = vxor.u32 %v3912, 2147483648
        %v3919 = vsel %vm3917, %v3904, %v3918
        %vm3920 = vcmp.eq.s32.totalorder %v3915, 2
        %v3921 = vxor.u32 %v3904, 2147483648
        %v3922 = vsel %vm3920, %v3921, %v3912
        %v3923 = vsel %vm3916, %v3919, %v3922
        %v3924 = vsel %vm3913, nan, %v3923
        %v3925 = vand.u32 2147483647, %v367
        %vm3926 = vcmp.le.f32.partialorder %v3925, 0.7853982
        %vm3927 = vcmp.lt.s32.totalorder %v367, 0
        %v3928 = vand.u32 %v367, 2139095040
        %v3929 = vshrl.u32 %v3928, 23
        %v3930 = vsub.s32 %v3929, 127
        %v3931 = vand.u32 2147483647, %v367
        %v3932 = vand.u32 %v3931, 8388607
        %v3933 = vor.u32 %v3932, 8388608
        %v3934 = vsub.s32 0, %v3933
        %v3935 = vadd.s32 %v3930, 1
        %vm3936 = vcmp.gt.s32.totalorder %v3935, 0
        %v3937 = vsel %vm3936, %v3935, 0
        %v3938 = vshrl.u32 %v3937, 5
        %v3939 = vand.u32 %v3937, 31
        %v3940 = vsub.s32 32, %v3939
        %v3941 = vshrl.u32 683565275, %v3940
        %v3942 = vshll.u32 683565275, %v3939
        %v3943 = vshrl.u32 2475754826, %v3940
        %v3944 = vor.u32 %v3942, %v3943
        %v3945 = vshll.u32 2475754826, %v3939
        %v3946 = vshrl.u32 2131351028, %v3940
        %v3947 = vor.u32 %v3945, %v3946
        %v3948 = vshll.u32 2131351028, %v3939
        %v3949 = vshrl.u32 2102212464, %v3940
        %v3950 = vor.u32 %v3948, %v3949
        %v3951 = vshll.u32 2102212464, %v3939
        %v3952 = vshrl.u32 920167782, %v3940
        %v3953 = vor.u32 %v3951, %v3952
        %v3954 = vshll.u32 920167782, %v3939
        %v3955 = vshrl.u32 1326507024, %v3940
        %v3956 = vor.u32 %v3954, %v3955
        %vm3957 = vcmp.lt.s32.totalorder %v3938, 1
        %vm3958 = vcmp.lt.s32.totalorder %v3938, 2
        %vm3959 = vcmp.lt.s32.totalorder %v3938, 3
        %vm3960 = vcmp.lt.s32.totalorder %v3938, 4
        %v3961 = vsel %vm3957, %v3941, %v3944
        %v3962 = vsel %vm3960, %v3950, 2102212464
        %v3963 = vsel %vm3959, %v3947, %v3962
        %v3964 = vsel %vm3958, %v3961, %v3963
        %v3965 = vsel %vm3957, %v3944, %v3947
        %v3966 = vsel %vm3960, %v3953, 920167782
        %v3967 = vsel %vm3959, %v3950, %v3966
        %v3968 = vsel %vm3958, %v3965, %v3967
        %v3969 = vsel %vm3957, %v3947, %v3950
        %v3970 = vsel %vm3960, %v3956, 1326507024
        %v3971 = vsel %vm3959, %v3953, %v3970
        %v3972 = vsel %vm3958, %v3969, %v3971
        %v3973 = vshll.u32 %v3933, 8
        %v3974 = vand.u32 %v3973, 65535
        %v3975 = vshrl.u32 %v3973, 16
        %v3976 = vand.u32 %v3972, 65535
        %v3977 = vshrl.u32 %v3972, 16
        %v3978 = vmul.u32 %v3974, %v3976
        %v3979 = vmul.u32 %v3974, %v3977
        %v3980 = vmul.u32 %v3975, %v3976
        %v3981 = vmul.u32 %v3975, %v3977
        %v3982 = vshll.u32 %v3979, 16
        %v3983 = vshrl.u32 %v3979, 16
        %v3984 = vshll.u32 %v3980, 16
        %v3985 = vshrl.u32 %v3980, 16
        %vm3986 = vc.u32 %v3978, %v3982
        %v3987 = vsel %vm3986, 1, 0
        %v3988 = vadd.s32 %v3978, %v3982
        %v3989 = vadd.s32 %v3981, %v3987
        %vm3990 = vc.u32 %v3988, %v3984
        %v3991 = vsel %vm3990, 1, 0
        %v3992 = vadd.s32 %v3988, %v3984
        %v3993 = vadd.s32 %v3989, %v3991
        %v3994 = vadd.s32 %v3993, %v3983
        %v3995 = vadd.s32 %v3994, %v3985
        %v3996 = vand.u32 %v3973, 65535
        %v3997 = vshrl.u32 %v3973, 16
        %v3998 = vand.u32 %v3968, 65535
        %v3999 = vshrl.u32 %v3968, 16
        %v4000 = vmul.u32 %v3996, %v3998
        %v4001 = vmul.u32 %v3996, %v3999
        %v4002 = vmul.u32 %v3997, %v3998
        %v4003 = vmul.u32 %v3997, %v3999
        %v4004 = vshll.u32 %v4001, 16
        %v4005 = vshrl.u32 %v4001, 16
        %v4006 = vshll.u32 %v4002, 16
        %v4007 = vshrl.u32 %v4002, 16
        %vm4008 = vc.u32 %v4000, %v4004
        %v4009 = vsel %vm4008, 1, 0
        %v4010 = vadd.s32 %v4000, %v4004
        %v4011 = vadd.s32 %v4003, %v4009
        %vm4012 = vc.u32 %v4010, %v4006
        %v4013 = vsel %vm4012, 1, 0
        %v4014 = vadd.s32 %v4010, %v4006
        %v4015 = vadd.s32 %v4011, %v4013
        %v4016 = vadd.s32 %v4015, %v4005
        %v4017 = vadd.s32 %v4016, %v4007
        %v4018 = vmul.u32 %v3973, %v3964
        %v4019 = vadd.s32 %v3995, %v4014
        %vm4020 = vc.u32 %v3995, %v4014
        %v4021 = vadd.s32 %v4017, 1
        %v4022 = vsel %vm4020, %v4021, %v4017
        %v4023 = vadd.s32 %v4018, %v4022
        %v4024 = vadd.s32 %v4023, 536870912
        %v4025 = vshrl.u32 %v4024, 30
        %v4026 = vshll.u32 %v4025, 30
        %v4027 = vsub.s32 %v4023, %v4026
        %vm4028 = vcmp.lt.s32.totalorder %v4027, 0
        %v4029 = vsub.s32 0, %v4027
        %v4030 = vsel %vm4028, %v4029, %v4027
        %v4031 = vclz %v4030
        %v4032 = vsub.s32 %v4031, 2
        %vm4033 = vcmp.gt.s32.totalorder 0, %v4032
        %v4034 = vsel %vm4033, 0, %v4032
        %v4035 = vsub.s32 32, %v4034
        %v4036 = vshll.u32 %v4027, %v4034
        %v4037 = vshrl.u32 %v4019, %v4035
        %v4038 = vor.u32 %v4036, %v4037
        %v4039 = vsub.s32 4294967266, %v4034
        %v4040 = vadd.s32 %v4039, 127
        %v4041 = vshll.u32 %v4040, 23
        %v4042 = vor.u32 4788187, %v4041
        %v4043 = vand.u32 2147483647, %v4042
        %v4045 = vcvt.s32.f32 %v4038
        %v4046 = vmul.f32 %v4045, %v4043
        %v4047 = vxor.u32 %v4046, 2147483648
        %v4048 = vsel %vm3927, %v4047, %v4046
        %v4049 = vsub.s32 4, %v4025
        %v4050 = vsel %vm3927, %v4049, %v4025
        %v4051 = vsel %vm3926, %v367, %v4048
        %v4052 = vsel %vm3926, 0, %v4050
        %v4053 = vmul.f32 %v4051, %v4051
        %v4054 = vmul.f32 %v4053, -0.001358992
        %v4055 = vadd.f32 %v4054, 0.041655596
        %v4056 = vmul.f32 %v4053, %v4055
        %v4057 = vadd.f32 %v4056, -0.4999988
        %v4058 = vmul.f32 %v4053, %v4057
        %v4059 = vadd.f32 1.0, %v4058
        %v4060 = vmul.f32 %v4051, %v4051
        %v4061 = vmul.f32 %v4060, -0.00019511016
        %v4062 = vadd.f32 %v4061, 0.008332121
        %v4063 = vmul.f32 %v4060, %v4062
        %v4064 = vadd.f32 %v4063, -0.16666654
        %v4065 = vmul.f32 %v4060, %v4064
        %v4066 = vadd.f32 %v4065, 1.0
        %v4067 = vmul.f32 %v4066, %v4051
        %vm4068 = vweird.f32 %v367
        %v4069 = vadd.s32 %v4052, 3
        %v4070 = vand.u32 %v4069, 3
        %vm4071 = vcmp.lt.s32.totalorder %v4070, 2
        %vm4072 = vcmp.eq.s32.totalorder %v4070, 0
        %v4073 = vxor.u32 %v4067, 2147483648
        %v4074 = vsel %vm4072, %v4059, %v4073
        %vm4075 = vcmp.eq.s32.totalorder %v4070, 2
        %v4076 = vxor.u32 %v4059, 2147483648
        %v4077 = vsel %vm4075, %v4076, %v4067
        %v4078 = vsel %vm4071, %v4074, %v4077
        %v4079 = vsel %vm4068, nan, %v4078
        %v4080 = vand.u32 2147483647, %v368
        %vm4081 = vcmp.le.f32.partialorder %v4080, 0.7853982
        %vm4082 = vcmp.lt.s32.totalorder %v368, 0
        %v4083 = vand.u32 %v368, 2139095040
        %v4084 = vshrl.u32 %v4083, 23
        %v4085 = vsub.s32 %v4084, 127
        %v4086 = vand.u32 2147483647, %v368
        %v4087 = vand.u32 %v4086, 8388607
        %v4088 = vor.u32 %v4087, 8388608
        %v4089 = vsub.s32 0, %v4088
        %v4090 = vadd.s32 %v4085, 1
        %vm4091 = vcmp.gt.s32.totalorder %v4090, 0
        %v4092 = vsel %vm4091, %v4090, 0
        %v4093 = vshrl.u32 %v4092, 5
        %v4094 = vand.u32 %v4092, 31
        %v4095 = vsub.s32 32, %v4094
        %v4096 = vshrl.u32 683565275, %v4095
        %v4097 = vshll.u32 683565275, %v4094
        %v4098 = vshrl.u32 2475754826, %v4095
        %v4099 = vor.u32 %v4097, %v4098
        %v4100 = vshll.u32 2475754826, %v4094
        %v4101 = vshrl.u32 2131351028, %v4095
        %v4102 = vor.u32 %v4100, %v4101
        %v4103 = vshll.u32 2131351028, %v4094
        %v4104 = vshrl.u32 2102212464, %v4095
        %v4105 = vor.u32 %v4103, %v4104
        %v4106 = vshll.u32 2102212464, %v4094
        %v4107 = vshrl.u32 920167782, %v4095
        %v4108 = vor.u32 %v4106, %v4107
        %v4109 = vshll.u32 920167782, %v4094
        %v4110 = vshrl.u32 1326507024, %v4095
        %v4111 = vor.u32 %v4109, %v4110
        %vm4112 = vcmp.lt.s32.totalorder %v4093, 1
        %vm4113 = vcmp.lt.s32.totalorder %v4093, 2
        %vm4114 = vcmp.lt.s32.totalorder %v4093, 3
        %vm4115 = vcmp.lt.s32.totalorder %v4093, 4
        %v4116 = vsel %vm4112, %v4096, %v4099
        %v4117 = vsel %vm4115, %v4105, 2102212464
        %v4118 = vsel %vm4114, %v4102, %v4117
        %v4119 = vsel %vm4113, %v4116, %v4118
        %v4120 = vsel %vm4112, %v4099, %v4102
        %v4121 = vsel %vm4115, %v4108, 920167782
        %v4122 = vsel %vm4114, %v4105, %v4121
        %v4123 = vsel %vm4113, %v4120, %v4122
        %v4124 = vsel %vm4112, %v4102, %v4105
        %v4125 = vsel %vm4115, %v4111, 1326507024
        %v4126 = vsel %vm4114, %v4108, %v4125
        %v4127 = vsel %vm4113, %v4124, %v4126
        %v4128 = vshll.u32 %v4088, 8
        %v4129 = vand.u32 %v4128, 65535
        %v4130 = vshrl.u32 %v4128, 16
        %v4131 = vand.u32 %v4127, 65535
        %v4132 = vshrl.u32 %v4127, 16
        %v4133 = vmul.u32 %v4129, %v4131
        %v4134 = vmul.u32 %v4129, %v4132
        %v4135 = vmul.u32 %v4130, %v4131
        %v4136 = vmul.u32 %v4130, %v4132
        %v4137 = vshll.u32 %v4134, 16
        %v4138 = vshrl.u32 %v4134, 16
        %v4139 = vshll.u32 %v4135, 16
        %v4140 = vshrl.u32 %v4135, 16
        %vm4141 = vc.u32 %v4133, %v4137
        %v4142 = vsel %vm4141, 1, 0
        %v4143 = vadd.s32 %v4133, %v4137
        %v4144 = vadd.s32 %v4136, %v4142
        %vm4145 = vc.u32 %v4143, %v4139
        %v4146 = vsel %vm4145, 1, 0
        %v4147 = vadd.s32 %v4143, %v4139
        %v4148 = vadd.s32 %v4144, %v4146
        %v4149 = vadd.s32 %v4148, %v4138
        %v4150 = vadd.s32 %v4149, %v4140
        %v4151 = vand.u32 %v4128, 65535
        %v4152 = vshrl.u32 %v4128, 16
        %v4153 = vand.u32 %v4123, 65535
        %v4154 = vshrl.u32 %v4123, 16
        %v4155 = vmul.u32 %v4151, %v4153
        %v4156 = vmul.u32 %v4151, %v4154
        %v4157 = vmul.u32 %v4152, %v4153
        %v4158 = vmul.u32 %v4152, %v4154
        %v4159 = vshll.u32 %v4156, 16
        %v4160 = vshrl.u32 %v4156, 16
        %v4161 = vshll.u32 %v4157, 16
        %v4162 = vshrl.u32 %v4157, 16
        %vm4163 = vc.u32 %v4155, %v4159
        %v4164 = vsel %vm4163, 1, 0
        %v4165 = vadd.s32 %v4155, %v4159
        %v4166 = vadd.s32 %v4158, %v4164
        %vm4167 = vc.u32 %v4165, %v4161
        %v4168 = vsel %vm4167, 1, 0
        %v4169 = vadd.s32 %v4165, %v4161
        %v4170 = vadd.s32 %v4166, %v4168
        %v4171 = vadd.s32 %v4170, %v4160
        %v4172 = vadd.s32 %v4171, %v4162
        %v4173 = vmul.u32 %v4128, %v4119
        %v4174 = vadd.s32 %v4150, %v4169
        %vm4175 = vc.u32 %v4150, %v4169
        %v4176 = vadd.s32 %v4172, 1
        %v4177 = vsel %vm4175, %v4176, %v4172
        %v4178 = vadd.s32 %v4173, %v4177
        %v4179 = vadd.s32 %v4178, 536870912
        %v4180 = vshrl.u32 %v4179, 30
        %v4181 = vshll.u32 %v4180, 30
        %v4182 = vsub.s32 %v4178, %v4181
        %vm4183 = vcmp.lt.s32.totalorder %v4182, 0
        %v4184 = vsub.s32 0, %v4182
        %v4185 = vsel %vm4183, %v4184, %v4182
        %v4186 = vclz %v4185
        %v4187 = vsub.s32 %v4186, 2
        %vm4188 = vcmp.gt.s32.totalorder 0, %v4187
        %v4189 = vsel %vm4188, 0, %v4187
        %v4190 = vsub.s32 32, %v4189
        %v4191 = vshll.u32 %v4182, %v4189
        %v4192 = vshrl.u32 %v4174, %v4190
        %v4193 = vor.u32 %v4191, %v4192
        %v4194 = vsub.s32 4294967266, %v4189
        %v4195 = vadd.s32 %v4194, 127
        %v4196 = vshll.u32 %v4195, 23
        %v4197 = vor.u32 4788187, %v4196
        %v4198 = vand.u32 2147483647, %v4197
        %v4200 = vcvt.s32.f32 %v4193
        %v4201 = vmul.f32 %v4200, %v4198
        %v4202 = vxor.u32 %v4201, 2147483648
        %v4203 = vsel %vm4082, %v4202, %v4201
        %v4204 = vsub.s32 4, %v4180
        %v4205 = vsel %vm4082, %v4204, %v4180
        %v4206 = vsel %vm4081, %v368, %v4203
        %v4207 = vsel %vm4081, 0, %v4205
        %v4208 = vmul.f32 %v4206, %v4206
        %v4209 = vmul.f32 %v4208, -0.001358992
        %v4210 = vadd.f32 %v4209, 0.041655596
        %v4211 = vmul.f32 %v4208, %v4210
        %v4212 = vadd.f32 %v4211, -0.4999988
        %v4213 = vmul.f32 %v4208, %v4212
        %v4214 = vadd.f32 1.0, %v4213
        %v4215 = vmul.f32 %v4206, %v4206
        %v4216 = vmul.f32 %v4215, -0.00019511016
        %v4217 = vadd.f32 %v4216, 0.008332121
        %v4218 = vmul.f32 %v4215, %v4217
        %v4219 = vadd.f32 %v4218, -0.16666654
        %v4220 = vmul.f32 %v4215, %v4219
        %v4221 = vadd.f32 %v4220, 1.0
        %v4222 = vmul.f32 %v4221, %v4206
        %vm4223 = vweird.f32 %v368
        %v4224 = vadd.s32 %v4207, 3
        %v4225 = vand.u32 %v4224, 3
        %vm4226 = vcmp.lt.s32.totalorder %v4225, 2
        %vm4227 = vcmp.eq.s32.totalorder %v4225, 0
        %v4228 = vxor.u32 %v4222, 2147483648
        %v4229 = vsel %vm4227, %v4214, %v4228
        %vm4230 = vcmp.eq.s32.totalorder %v4225, 2
        %v4231 = vxor.u32 %v4214, 2147483648
        %v4232 = vsel %vm4230, %v4231, %v4222
        %v4233 = vsel %vm4226, %v4229, %v4232
        %v4234 = vsel %vm4223, nan, %v4233
        %v4235 = vand.u32 2147483647, %v369
        %vm4236 = vcmp.le.f32.partialorder %v4235, 0.7853982
        %vm4237 = vcmp.lt.s32.totalorder %v369, 0
        %v4238 = vand.u32 %v369, 2139095040
        %v4239 = vshrl.u32 %v4238, 23
        %v4240 = vsub.s32 %v4239, 127
        %v4241 = vand.u32 2147483647, %v369
        %v4242 = vand.u32 %v4241, 8388607
        %v4243 = vor.u32 %v4242, 8388608
        %v4244 = vsub.s32 0, %v4243
        %v4245 = vadd.s32 %v4240, 1
        %vm4246 = vcmp.gt.s32.totalorder %v4245, 0
        %v4247 = vsel %vm4246, %v4245, 0
        %v4248 = vshrl.u32 %v4247, 5
        %v4249 = vand.u32 %v4247, 31
        %v4250 = vsub.s32 32, %v4249
        %v4251 = vshrl.u32 683565275, %v4250
        %v4252 = vshll.u32 683565275, %v4249
        %v4253 = vshrl.u32 2475754826, %v4250
        %v4254 = vor.u32 %v4252, %v4253
        %v4255 = vshll.u32 2475754826, %v4249
        %v4256 = vshrl.u32 2131351028, %v4250
        %v4257 = vor.u32 %v4255, %v4256
        %v4258 = vshll.u32 2131351028, %v4249
        %v4259 = vshrl.u32 2102212464, %v4250
        %v4260 = vor.u32 %v4258, %v4259
        %v4261 = vshll.u32 2102212464, %v4249
        %v4262 = vshrl.u32 920167782, %v4250
        %v4263 = vor.u32 %v4261, %v4262
        %v4264 = vshll.u32 920167782, %v4249
        %v4265 = vshrl.u32 1326507024, %v4250
        %v4266 = vor.u32 %v4264, %v4265
        %vm4267 = vcmp.lt.s32.totalorder %v4248, 1
        %vm4268 = vcmp.lt.s32.totalorder %v4248, 2
        %vm4269 = vcmp.lt.s32.totalorder %v4248, 3
        %vm4270 = vcmp.lt.s32.totalorder %v4248, 4
        %v4271 = vsel %vm4267, %v4251, %v4254
        %v4272 = vsel %vm4270, %v4260, 2102212464
        %v4273 = vsel %vm4269, %v4257, %v4272
        %v4274 = vsel %vm4268, %v4271, %v4273
        %v4275 = vsel %vm4267, %v4254, %v4257
        %v4276 = vsel %vm4270, %v4263, 920167782
        %v4277 = vsel %vm4269, %v4260, %v4276
        %v4278 = vsel %vm4268, %v4275, %v4277
        %v4279 = vsel %vm4267, %v4257, %v4260
        %v4280 = vsel %vm4270, %v4266, 1326507024
        %v4281 = vsel %vm4269, %v4263, %v4280
        %v4282 = vsel %vm4268, %v4279, %v4281
        %v4283 = vshll.u32 %v4243, 8
        %v4284 = vand.u32 %v4283, 65535
        %v4285 = vshrl.u32 %v4283, 16
        %v4286 = vand.u32 %v4282, 65535
        %v4287 = vshrl.u32 %v4282, 16
        %v4288 = vmul.u32 %v4284, %v4286
        %v4289 = vmul.u32 %v4284, %v4287
        %v4290 = vmul.u32 %v4285, %v4286
        %v4291 = vmul.u32 %v4285, %v4287
        %v4292 = vshll.u32 %v4289, 16
        %v4293 = vshrl.u32 %v4289, 16
        %v4294 = vshll.u32 %v4290, 16
        %v4295 = vshrl.u32 %v4290, 16
        %vm4296 = vc.u32 %v4288, %v4292
        %v4297 = vsel %vm4296, 1, 0
        %v4298 = vadd.s32 %v4288, %v4292
        %v4299 = vadd.s32 %v4291, %v4297
        %vm4300 = vc.u32 %v4298, %v4294
        %v4301 = vsel %vm4300, 1, 0
        %v4302 = vadd.s32 %v4298, %v4294
        %v4303 = vadd.s32 %v4299, %v4301
        %v4304 = vadd.s32 %v4303, %v4293
        %v4305 = vadd.s32 %v4304, %v4295
        %v4306 = vand.u32 %v4283, 65535
        %v4307 = vshrl.u32 %v4283, 16
        %v4308 = vand.u32 %v4278, 65535
        %v4309 = vshrl.u32 %v4278, 16
        %v4310 = vmul.u32 %v4306, %v4308
        %v4311 = vmul.u32 %v4306, %v4309
        %v4312 = vmul.u32 %v4307, %v4308
        %v4313 = vmul.u32 %v4307, %v4309
        %v4314 = vshll.u32 %v4311, 16
        %v4315 = vshrl.u32 %v4311, 16
        %v4316 = vshll.u32 %v4312, 16
        %v4317 = vshrl.u32 %v4312, 16
        %vm4318 = vc.u32 %v4310, %v4314
        %v4319 = vsel %vm4318, 1, 0
        %v4320 = vadd.s32 %v4310, %v4314
        %v4321 = vadd.s32 %v4313, %v4319
        %vm4322 = vc.u32 %v4320, %v4316
        %v4323 = vsel %vm4322, 1, 0
        %v4324 = vadd.s32 %v4320, %v4316
        %v4325 = vadd.s32 %v4321, %v4323
        %v4326 = vadd.s32 %v4325, %v4315
        %v4327 = vadd.s32 %v4326, %v4317
        %v4328 = vmul.u32 %v4283, %v4274
        %v4329 = vadd.s32 %v4305, %v4324
        %vm4330 = vc.u32 %v4305, %v4324
        %v4331 = vadd.s32 %v4327, 1
        %v4332 = vsel %vm4330, %v4331, %v4327
        %v4333 = vadd.s32 %v4328, %v4332
        %v4334 = vadd.s32 %v4333, 536870912
        %v4335 = vshrl.u32 %v4334, 30
        %v4336 = vshll.u32 %v4335, 30
        %v4337 = vsub.s32 %v4333, %v4336
        %vm4338 = vcmp.lt.s32.totalorder %v4337, 0
        %v4339 = vsub.s32 0, %v4337
        %v4340 = vsel %vm4338, %v4339, %v4337
        %v4341 = vclz %v4340
        %v4342 = vsub.s32 %v4341, 2
        %vm4343 = vcmp.gt.s32.totalorder 0, %v4342
        %v4344 = vsel %vm4343, 0, %v4342
        %v4345 = vsub.s32 32, %v4344
        %v4346 = vshll.u32 %v4337, %v4344
        %v4347 = vshrl.u32 %v4329, %v4345
        %v4348 = vor.u32 %v4346, %v4347
        %v4349 = vsub.s32 4294967266, %v4344
        %v4350 = vadd.s32 %v4349, 127
        %v4351 = vshll.u32 %v4350, 23
        %v4352 = vor.u32 4788187, %v4351
        %v4353 = vand.u32 2147483647, %v4352
        %v4355 = vcvt.s32.f32 %v4348
        %v4356 = vmul.f32 %v4355, %v4353
        %v4357 = vxor.u32 %v4356, 2147483648
        %v4358 = vsel %vm4237, %v4357, %v4356
        %v4359 = vsub.s32 4, %v4335
        %v4360 = vsel %vm4237, %v4359, %v4335
        %v4361 = vsel %vm4236, %v369, %v4358
        %v4362 = vsel %vm4236, 0, %v4360
        %v4363 = vmul.f32 %v4361, %v4361
        %v4364 = vmul.f32 %v4363, -0.001358992
        %v4365 = vadd.f32 %v4364, 0.041655596
        %v4366 = vmul.f32 %v4363, %v4365
        %v4367 = vadd.f32 %v4366, -0.4999988
        %v4368 = vmul.f32 %v4363, %v4367
        %v4369 = vadd.f32 1.0, %v4368
        %v4370 = vmul.f32 %v4361, %v4361
        %v4371 = vmul.f32 %v4370, -0.00019511016
        %v4372 = vadd.f32 %v4371, 0.008332121
        %v4373 = vmul.f32 %v4370, %v4372
        %v4374 = vadd.f32 %v4373, -0.16666654
        %v4375 = vmul.f32 %v4370, %v4374
        %v4376 = vadd.f32 %v4375, 1.0
        %v4377 = vmul.f32 %v4376, %v4361
        %vm4378 = vweird.f32 %v369
        %v4379 = vadd.s32 %v4362, 3
        %v4380 = vand.u32 %v4379, 3
        %vm4381 = vcmp.lt.s32.totalorder %v4380, 2
        %vm4382 = vcmp.eq.s32.totalorder %v4380, 0
        %v4383 = vxor.u32 %v4377, 2147483648
        %v4384 = vsel %vm4382, %v4369, %v4383
        %vm4385 = vcmp.eq.s32.totalorder %v4380, 2
        %v4386 = vxor.u32 %v4369, 2147483648
        %v4387 = vsel %vm4385, %v4386, %v4377
        %v4388 = vsel %vm4381, %v4384, %v4387
        %v4389 = vsel %vm4378, nan, %v4388
        %v4390 = vand.u32 2147483647, %v370
        %vm4391 = vcmp.le.f32.partialorder %v4390, 0.7853982
        %vm4392 = vcmp.lt.s32.totalorder %v370, 0
        %v4393 = vand.u32 %v370, 2139095040
        %v4394 = vshrl.u32 %v4393, 23
        %v4395 = vsub.s32 %v4394, 127
        %v4396 = vand.u32 2147483647, %v370
        %v4397 = vand.u32 %v4396, 8388607
        %v4398 = vor.u32 %v4397, 8388608
        %v4399 = vsub.s32 0, %v4398
        %v4400 = vadd.s32 %v4395, 1
        %vm4401 = vcmp.gt.s32.totalorder %v4400, 0
        %v4402 = vsel %vm4401, %v4400, 0
        %v4403 = vshrl.u32 %v4402, 5
        %v4404 = vand.u32 %v4402, 31
        %v4405 = vsub.s32 32, %v4404
        %v4406 = vshrl.u32 683565275, %v4405
        %v4407 = vshll.u32 683565275, %v4404
        %v4408 = vshrl.u32 2475754826, %v4405
        %v4409 = vor.u32 %v4407, %v4408
        %v4410 = vshll.u32 2475754826, %v4404
        %v4411 = vshrl.u32 2131351028, %v4405
        %v4412 = vor.u32 %v4410, %v4411
        %v4413 = vshll.u32 2131351028, %v4404
        %v4414 = vshrl.u32 2102212464, %v4405
        %v4415 = vor.u32 %v4413, %v4414
        %v4416 = vshll.u32 2102212464, %v4404
        %v4417 = vshrl.u32 920167782, %v4405
        %v4418 = vor.u32 %v4416, %v4417
        %v4419 = vshll.u32 920167782, %v4404
        %v4420 = vshrl.u32 1326507024, %v4405
        %v4421 = vor.u32 %v4419, %v4420
        %vm4422 = vcmp.lt.s32.totalorder %v4403, 1
        %vm4423 = vcmp.lt.s32.totalorder %v4403, 2
        %vm4424 = vcmp.lt.s32.totalorder %v4403, 3
        %vm4425 = vcmp.lt.s32.totalorder %v4403, 4
        %v4426 = vsel %vm4422, %v4406, %v4409
        %v4427 = vsel %vm4425, %v4415, 2102212464
        %v4428 = vsel %vm4424, %v4412, %v4427
        %v4429 = vsel %vm4423, %v4426, %v4428
        %v4430 = vsel %vm4422, %v4409, %v4412
        %v4431 = vsel %vm4425, %v4418, 920167782
        %v4432 = vsel %vm4424, %v4415, %v4431
        %v4433 = vsel %vm4423, %v4430, %v4432
        %v4434 = vsel %vm4422, %v4412, %v4415
        %v4435 = vsel %vm4425, %v4421, 1326507024
        %v4436 = vsel %vm4424, %v4418, %v4435
        %v4437 = vsel %vm4423, %v4434, %v4436
        %v4438 = vshll.u32 %v4398, 8
        %v4439 = vand.u32 %v4438, 65535
        %v4440 = vshrl.u32 %v4438, 16
        %v4441 = vand.u32 %v4437, 65535
        %v4442 = vshrl.u32 %v4437, 16
        %v4443 = vmul.u32 %v4439, %v4441
        %v4444 = vmul.u32 %v4439, %v4442
        %v4445 = vmul.u32 %v4440, %v4441
        %v4446 = vmul.u32 %v4440, %v4442
        %v4447 = vshll.u32 %v4444, 16
        %v4448 = vshrl.u32 %v4444, 16
        %v4449 = vshll.u32 %v4445, 16
        %v4450 = vshrl.u32 %v4445, 16
        %vm4451 = vc.u32 %v4443, %v4447
        %v4452 = vsel %vm4451, 1, 0
        %v4453 = vadd.s32 %v4443, %v4447
        %v4454 = vadd.s32 %v4446, %v4452
        %vm4455 = vc.u32 %v4453, %v4449
        %v4456 = vsel %vm4455, 1, 0
        %v4457 = vadd.s32 %v4453, %v4449
        %v4458 = vadd.s32 %v4454, %v4456
        %v4459 = vadd.s32 %v4458, %v4448
        %v4460 = vadd.s32 %v4459, %v4450
        %v4461 = vand.u32 %v4438, 65535
        %v4462 = vshrl.u32 %v4438, 16
        %v4463 = vand.u32 %v4433, 65535
        %v4464 = vshrl.u32 %v4433, 16
        %v4465 = vmul.u32 %v4461, %v4463
        %v4466 = vmul.u32 %v4461, %v4464
        %v4467 = vmul.u32 %v4462, %v4463
        %v4468 = vmul.u32 %v4462, %v4464
        %v4469 = vshll.u32 %v4466, 16
        %v4470 = vshrl.u32 %v4466, 16
        %v4471 = vshll.u32 %v4467, 16
        %v4472 = vshrl.u32 %v4467, 16
        %vm4473 = vc.u32 %v4465, %v4469
        %v4474 = vsel %vm4473, 1, 0
        %v4475 = vadd.s32 %v4465, %v4469
        %v4476 = vadd.s32 %v4468, %v4474
        %vm4477 = vc.u32 %v4475, %v4471
        %v4478 = vsel %vm4477, 1, 0
        %v4479 = vadd.s32 %v4475, %v4471
        %v4480 = vadd.s32 %v4476, %v4478
        %v4481 = vadd.s32 %v4480, %v4470
        %v4482 = vadd.s32 %v4481, %v4472
        %v4483 = vmul.u32 %v4438, %v4429
        %v4484 = vadd.s32 %v4460, %v4479
        %vm4485 = vc.u32 %v4460, %v4479
        %v4486 = vadd.s32 %v4482, 1
        %v4487 = vsel %vm4485, %v4486, %v4482
        %v4488 = vadd.s32 %v4483, %v4487
        %v4489 = vadd.s32 %v4488, 536870912
        %v4490 = vshrl.u32 %v4489, 30
        %v4491 = vshll.u32 %v4490, 30
        %v4492 = vsub.s32 %v4488, %v4491
        %vm4493 = vcmp.lt.s32.totalorder %v4492, 0
        %v4494 = vsub.s32 0, %v4492
        %v4495 = vsel %vm4493, %v4494, %v4492
        %v4496 = vclz %v4495
        %v4497 = vsub.s32 %v4496, 2
        %vm4498 = vcmp.gt.s32.totalorder 0, %v4497
        %v4499 = vsel %vm4498, 0, %v4497
        %v4500 = vsub.s32 32, %v4499
        %v4501 = vshll.u32 %v4492, %v4499
        %v4502 = vshrl.u32 %v4484, %v4500
        %v4503 = vor.u32 %v4501, %v4502
        %v4504 = vsub.s32 4294967266, %v4499
        %v4505 = vadd.s32 %v4504, 127
        %v4506 = vshll.u32 %v4505, 23
        %v4507 = vor.u32 4788187, %v4506
        %v4508 = vand.u32 2147483647, %v4507
        %v4510 = vcvt.s32.f32 %v4503
        %v4511 = vmul.f32 %v4510, %v4508
        %v4512 = vxor.u32 %v4511, 2147483648
        %v4513 = vsel %vm4392, %v4512, %v4511
        %v4514 = vsub.s32 4, %v4490
        %v4515 = vsel %vm4392, %v4514, %v4490
        %v4516 = vsel %vm4391, %v370, %v4513
        %v4517 = vsel %vm4391, 0, %v4515
        %v4518 = vmul.f32 %v4516, %v4516
        %v4519 = vmul.f32 %v4518, -0.001358992
        %v4520 = vadd.f32 %v4519, 0.041655596
        %v4521 = vmul.f32 %v4518, %v4520
        %v4522 = vadd.f32 %v4521, -0.4999988
        %v4523 = vmul.f32 %v4518, %v4522
        %v4524 = vadd.f32 1.0, %v4523
        %v4525 = vmul.f32 %v4516, %v4516
        %v4526 = vmul.f32 %v4525, -0.00019511016
        %v4527 = vadd.f32 %v4526, 0.008332121
        %v4528 = vmul.f32 %v4525, %v4527
        %v4529 = vadd.f32 %v4528, -0.16666654
        %v4530 = vmul.f32 %v4525, %v4529
        %v4531 = vadd.f32 %v4530, 1.0
        %v4532 = vmul.f32 %v4531, %v4516
        %vm4533 = vweird.f32 %v370
        %v4534 = vadd.s32 %v4517, 3
        %v4535 = vand.u32 %v4534, 3
        %vm4536 = vcmp.lt.s32.totalorder %v4535, 2
        %vm4537 = vcmp.eq.s32.totalorder %v4535, 0
        %v4538 = vxor.u32 %v4532, 2147483648
        %v4539 = vsel %vm4537, %v4524, %v4538
        %vm4540 = vcmp.eq.s32.totalorder %v4535, 2
        %v4541 = vxor.u32 %v4524, 2147483648
        %v4542 = vsel %vm4540, %v4541, %v4532
        %v4543 = vsel %vm4536, %v4539, %v4542
        %v4544 = vsel %vm4533, nan, %v4543
        %v4545 = vand.u32 2147483647, %v371
        %vm4546 = vcmp.le.f32.partialorder %v4545, 0.7853982
        %vm4547 = vcmp.lt.s32.totalorder %v371, 0
        %v4548 = vand.u32 %v371, 2139095040
        %v4549 = vshrl.u32 %v4548, 23
        %v4550 = vsub.s32 %v4549, 127
        %v4551 = vand.u32 2147483647, %v371
        %v4552 = vand.u32 %v4551, 8388607
        %v4553 = vor.u32 %v4552, 8388608
        %v4554 = vsub.s32 0, %v4553
        %v4555 = vadd.s32 %v4550, 1
        %vm4556 = vcmp.gt.s32.totalorder %v4555, 0
        %v4557 = vsel %vm4556, %v4555, 0
        %v4558 = vshrl.u32 %v4557, 5
        %v4559 = vand.u32 %v4557, 31
        %v4560 = vsub.s32 32, %v4559
        %v4561 = vshrl.u32 683565275, %v4560
        %v4562 = vshll.u32 683565275, %v4559
        %v4563 = vshrl.u32 2475754826, %v4560
        %v4564 = vor.u32 %v4562, %v4563
        %v4565 = vshll.u32 2475754826, %v4559
        %v4566 = vshrl.u32 2131351028, %v4560
        %v4567 = vor.u32 %v4565, %v4566
        %v4568 = vshll.u32 2131351028, %v4559
        %v4569 = vshrl.u32 2102212464, %v4560
        %v4570 = vor.u32 %v4568, %v4569
        %v4571 = vshll.u32 2102212464, %v4559
        %v4572 = vshrl.u32 920167782, %v4560
        %v4573 = vor.u32 %v4571, %v4572
        %v4574 = vshll.u32 920167782, %v4559
        %v4575 = vshrl.u32 1326507024, %v4560
        %v4576 = vor.u32 %v4574, %v4575
        %vm4577 = vcmp.lt.s32.totalorder %v4558, 1
        %vm4578 = vcmp.lt.s32.totalorder %v4558, 2
        %vm4579 = vcmp.lt.s32.totalorder %v4558, 3
        %vm4580 = vcmp.lt.s32.totalorder %v4558, 4
        %v4581 = vsel %vm4577, %v4561, %v4564
        %v4582 = vsel %vm4580, %v4570, 2102212464
        %v4583 = vsel %vm4579, %v4567, %v4582
        %v4584 = vsel %vm4578, %v4581, %v4583
        %v4585 = vsel %vm4577, %v4564, %v4567
        %v4586 = vsel %vm4580, %v4573, 920167782
        %v4587 = vsel %vm4579, %v4570, %v4586
        %v4588 = vsel %vm4578, %v4585, %v4587
        %v4589 = vsel %vm4577, %v4567, %v4570
        %v4590 = vsel %vm4580, %v4576, 1326507024
        %v4591 = vsel %vm4579, %v4573, %v4590
        %v4592 = vsel %vm4578, %v4589, %v4591
        %v4593 = vshll.u32 %v4553, 8
        %v4594 = vand.u32 %v4593, 65535
        %v4595 = vshrl.u32 %v4593, 16
        %v4596 = vand.u32 %v4592, 65535
        %v4597 = vshrl.u32 %v4592, 16
        %v4598 = vmul.u32 %v4594, %v4596
        %v4599 = vmul.u32 %v4594, %v4597
        %v4600 = vmul.u32 %v4595, %v4596
        %v4601 = vmul.u32 %v4595, %v4597
        %v4602 = vshll.u32 %v4599, 16
        %v4603 = vshrl.u32 %v4599, 16
        %v4604 = vshll.u32 %v4600, 16
        %v4605 = vshrl.u32 %v4600, 16
        %vm4606 = vc.u32 %v4598, %v4602
        %v4607 = vsel %vm4606, 1, 0
        %v4608 = vadd.s32 %v4598, %v4602
        %v4609 = vadd.s32 %v4601, %v4607
        %vm4610 = vc.u32 %v4608, %v4604
        %v4611 = vsel %vm4610, 1, 0
        %v4612 = vadd.s32 %v4608, %v4604
        %v4613 = vadd.s32 %v4609, %v4611
        %v4614 = vadd.s32 %v4613, %v4603
        %v4615 = vadd.s32 %v4614, %v4605
        %v4616 = vand.u32 %v4593, 65535
        %v4617 = vshrl.u32 %v4593, 16
        %v4618 = vand.u32 %v4588, 65535
        %v4619 = vshrl.u32 %v4588, 16
        %v4620 = vmul.u32 %v4616, %v4618
        %v4621 = vmul.u32 %v4616, %v4619
        %v4622 = vmul.u32 %v4617, %v4618
        %v4623 = vmul.u32 %v4617, %v4619
        %v4624 = vshll.u32 %v4621, 16
        %v4625 = vshrl.u32 %v4621, 16
        %v4626 = vshll.u32 %v4622, 16
        %v4627 = vshrl.u32 %v4622, 16
        %vm4628 = vc.u32 %v4620, %v4624
        %v4629 = vsel %vm4628, 1, 0
        %v4630 = vadd.s32 %v4620, %v4624
        %v4631 = vadd.s32 %v4623, %v4629
        %vm4632 = vc.u32 %v4630, %v4626
        %v4633 = vsel %vm4632, 1, 0
        %v4634 = vadd.s32 %v4630, %v4626
        %v4635 = vadd.s32 %v4631, %v4633
        %v4636 = vadd.s32 %v4635, %v4625
        %v4637 = vadd.s32 %v4636, %v4627
        %v4638 = vmul.u32 %v4593, %v4584
        %v4639 = vadd.s32 %v4615, %v4634
        %vm4640 = vc.u32 %v4615, %v4634
        %v4641 = vadd.s32 %v4637, 1
        %v4642 = vsel %vm4640, %v4641, %v4637
        %v4643 = vadd.s32 %v4638, %v4642
        %v4644 = vadd.s32 %v4643, 536870912
        %v4645 = vshrl.u32 %v4644, 30
        %v4646 = vshll.u32 %v4645, 30
        %v4647 = vsub.s32 %v4643, %v4646
        %vm4648 = vcmp.lt.s32.totalorder %v4647, 0
        %v4649 = vsub.s32 0, %v4647
        %v4650 = vsel %vm4648, %v4649, %v4647
        %v4651 = vclz %v4650
        %v4652 = vsub.s32 %v4651, 2
        %vm4653 = vcmp.gt.s32.totalorder 0, %v4652
        %v4654 = vsel %vm4653, 0, %v4652
        %v4655 = vsub.s32 32, %v4654
        %v4656 = vshll.u32 %v4647, %v4654
        %v4657 = vshrl.u32 %v4639, %v4655
        %v4658 = vor.u32 %v4656, %v4657
        %v4659 = vsub.s32 4294967266, %v4654
        %v4660 = vadd.s32 %v4659, 127
        %v4661 = vshll.u32 %v4660, 23
        %v4662 = vor.u32 4788187, %v4661
        %v4663 = vand.u32 2147483647, %v4662
        %v4665 = vcvt.s32.f32 %v4658
        %v4666 = vmul.f32 %v4665, %v4663
        %v4667 = vxor.u32 %v4666, 2147483648
        %v4668 = vsel %vm4547, %v4667, %v4666
        %v4669 = vsub.s32 4, %v4645
        %v4670 = vsel %vm4547, %v4669, %v4645
        %v4671 = vsel %vm4546, %v371, %v4668
        %v4672 = vsel %vm4546, 0, %v4670
        %v4673 = vmul.f32 %v4671, %v4671
        %v4674 = vmul.f32 %v4673, -0.001358992
        %v4675 = vadd.f32 %v4674, 0.041655596
        %v4676 = vmul.f32 %v4673, %v4675
        %v4677 = vadd.f32 %v4676, -0.4999988
        %v4678 = vmul.f32 %v4673, %v4677
        %v4679 = vadd.f32 1.0, %v4678
        %v4680 = vmul.f32 %v4671, %v4671
        %v4681 = vmul.f32 %v4680, -0.00019511016
        %v4682 = vadd.f32 %v4681, 0.008332121
        %v4683 = vmul.f32 %v4680, %v4682
        %v4684 = vadd.f32 %v4683, -0.16666654
        %v4685 = vmul.f32 %v4680, %v4684
        %v4686 = vadd.f32 %v4685, 1.0
        %v4687 = vmul.f32 %v4686, %v4671
        %vm4688 = vweird.f32 %v371
        %v4689 = vadd.s32 %v4672, 3
        %v4690 = vand.u32 %v4689, 3
        %vm4691 = vcmp.lt.s32.totalorder %v4690, 2
        %vm4692 = vcmp.eq.s32.totalorder %v4690, 0
        %v4693 = vxor.u32 %v4687, 2147483648
        %v4694 = vsel %vm4692, %v4679, %v4693
        %vm4695 = vcmp.eq.s32.totalorder %v4690, 2
        %v4696 = vxor.u32 %v4679, 2147483648
        %v4697 = vsel %vm4695, %v4696, %v4687
        %v4698 = vsel %vm4691, %v4694, %v4697
        %v4699 = vsel %vm4688, nan, %v4698
        %v4700 = vand.u32 2147483647, %v372
        %vm4701 = vcmp.le.f32.partialorder %v4700, 0.7853982
        %vm4702 = vcmp.lt.s32.totalorder %v372, 0
        %v4703 = vand.u32 %v372, 2139095040
        %v4704 = vshrl.u32 %v4703, 23
        %v4705 = vsub.s32 %v4704, 127
        %v4706 = vand.u32 2147483647, %v372
        %v4707 = vand.u32 %v4706, 8388607
        %v4708 = vor.u32 %v4707, 8388608
        %v4709 = vsub.s32 0, %v4708
        %v4710 = vadd.s32 %v4705, 1
        %vm4711 = vcmp.gt.s32.totalorder %v4710, 0
        %v4712 = vsel %vm4711, %v4710, 0
        %v4713 = vshrl.u32 %v4712, 5
        %v4714 = vand.u32 %v4712, 31
        %v4715 = vsub.s32 32, %v4714
        %v4716 = vshrl.u32 683565275, %v4715
        %v4717 = vshll.u32 683565275, %v4714
        %v4718 = vshrl.u32 2475754826, %v4715
        %v4719 = vor.u32 %v4717, %v4718
        %v4720 = vshll.u32 2475754826, %v4714
        %v4721 = vshrl.u32 2131351028, %v4715
        %v4722 = vor.u32 %v4720, %v4721
        %v4723 = vshll.u32 2131351028, %v4714
        %v4724 = vshrl.u32 2102212464, %v4715
        %v4725 = vor.u32 %v4723, %v4724
        %v4726 = vshll.u32 2102212464, %v4714
        %v4727 = vshrl.u32 920167782, %v4715
        %v4728 = vor.u32 %v4726, %v4727
        %v4729 = vshll.u32 920167782, %v4714
        %v4730 = vshrl.u32 1326507024, %v4715
        %v4731 = vor.u32 %v4729, %v4730
        %vm4732 = vcmp.lt.s32.totalorder %v4713, 1
        %vm4733 = vcmp.lt.s32.totalorder %v4713, 2
        %vm4734 = vcmp.lt.s32.totalorder %v4713, 3
        %vm4735 = vcmp.lt.s32.totalorder %v4713, 4
        %v4736 = vsel %vm4732, %v4716, %v4719
        %v4737 = vsel %vm4735, %v4725, 2102212464
        %v4738 = vsel %vm4734, %v4722, %v4737
        %v4739 = vsel %vm4733, %v4736, %v4738
        %v4740 = vsel %vm4732, %v4719, %v4722
        %v4741 = vsel %vm4735, %v4728, 920167782
        %v4742 = vsel %vm4734, %v4725, %v4741
        %v4743 = vsel %vm4733, %v4740, %v4742
        %v4744 = vsel %vm4732, %v4722, %v4725
        %v4745 = vsel %vm4735, %v4731, 1326507024
        %v4746 = vsel %vm4734, %v4728, %v4745
        %v4747 = vsel %vm4733, %v4744, %v4746
        %v4748 = vshll.u32 %v4708, 8
        %v4749 = vand.u32 %v4748, 65535
        %v4750 = vshrl.u32 %v4748, 16
        %v4751 = vand.u32 %v4747, 65535
        %v4752 = vshrl.u32 %v4747, 16
        %v4753 = vmul.u32 %v4749, %v4751
        %v4754 = vmul.u32 %v4749, %v4752
        %v4755 = vmul.u32 %v4750, %v4751
        %v4756 = vmul.u32 %v4750, %v4752
        %v4757 = vshll.u32 %v4754, 16
        %v4758 = vshrl.u32 %v4754, 16
        %v4759 = vshll.u32 %v4755, 16
        %v4760 = vshrl.u32 %v4755, 16
        %vm4761 = vc.u32 %v4753, %v4757
        %v4762 = vsel %vm4761, 1, 0
        %v4763 = vadd.s32 %v4753, %v4757
        %v4764 = vadd.s32 %v4756, %v4762
        %vm4765 = vc.u32 %v4763, %v4759
        %v4766 = vsel %vm4765, 1, 0
        %v4767 = vadd.s32 %v4763, %v4759
        %v4768 = vadd.s32 %v4764, %v4766
        %v4769 = vadd.s32 %v4768, %v4758
        %v4770 = vadd.s32 %v4769, %v4760
        %v4771 = vand.u32 %v4748, 65535
        %v4772 = vshrl.u32 %v4748, 16
        %v4773 = vand.u32 %v4743, 65535
        %v4774 = vshrl.u32 %v4743, 16
        %v4775 = vmul.u32 %v4771, %v4773
        %v4776 = vmul.u32 %v4771, %v4774
        %v4777 = vmul.u32 %v4772, %v4773
        %v4778 = vmul.u32 %v4772, %v4774
        %v4779 = vshll.u32 %v4776, 16
        %v4780 = vshrl.u32 %v4776, 16
        %v4781 = vshll.u32 %v4777, 16
        %v4782 = vshrl.u32 %v4777, 16
        %vm4783 = vc.u32 %v4775, %v4779
        %v4784 = vsel %vm4783, 1, 0
        %v4785 = vadd.s32 %v4775, %v4779
        %v4786 = vadd.s32 %v4778, %v4784
        %vm4787 = vc.u32 %v4785, %v4781
        %v4788 = vsel %vm4787, 1, 0
        %v4789 = vadd.s32 %v4785, %v4781
        %v4790 = vadd.s32 %v4786, %v4788
        %v4791 = vadd.s32 %v4790, %v4780
        %v4792 = vadd.s32 %v4791, %v4782
        %v4793 = vmul.u32 %v4748, %v4739
        %v4794 = vadd.s32 %v4770, %v4789
        %vm4795 = vc.u32 %v4770, %v4789
        %v4796 = vadd.s32 %v4792, 1
        %v4797 = vsel %vm4795, %v4796, %v4792
        %v4798 = vadd.s32 %v4793, %v4797
        %v4799 = vadd.s32 %v4798, 536870912
        %v4800 = vshrl.u32 %v4799, 30
        %v4801 = vshll.u32 %v4800, 30
        %v4802 = vsub.s32 %v4798, %v4801
        %vm4803 = vcmp.lt.s32.totalorder %v4802, 0
        %v4804 = vsub.s32 0, %v4802
        %v4805 = vsel %vm4803, %v4804, %v4802
        %v4806 = vclz %v4805
        %v4807 = vsub.s32 %v4806, 2
        %vm4808 = vcmp.gt.s32.totalorder 0, %v4807
        %v4809 = vsel %vm4808, 0, %v4807
        %v4810 = vsub.s32 32, %v4809
        %v4811 = vshll.u32 %v4802, %v4809
        %v4812 = vshrl.u32 %v4794, %v4810
        %v4813 = vor.u32 %v4811, %v4812
        %v4814 = vsub.s32 4294967266, %v4809
        %v4815 = vadd.s32 %v4814, 127
        %v4816 = vshll.u32 %v4815, 23
        %v4817 = vor.u32 4788187, %v4816
        %v4818 = vand.u32 2147483647, %v4817
        %v4820 = vcvt.s32.f32 %v4813
        %v4821 = vmul.f32 %v4820, %v4818
        %v4822 = vxor.u32 %v4821, 2147483648
        %v4823 = vsel %vm4702, %v4822, %v4821
        %v4824 = vsub.s32 4, %v4800
        %v4825 = vsel %vm4702, %v4824, %v4800
        %v4826 = vsel %vm4701, %v372, %v4823
        %v4827 = vsel %vm4701, 0, %v4825
        %v4828 = vmul.f32 %v4826, %v4826
        %v4829 = vmul.f32 %v4828, -0.001358992
        %v4830 = vadd.f32 %v4829, 0.041655596
        %v4831 = vmul.f32 %v4828, %v4830
        %v4832 = vadd.f32 %v4831, -0.4999988
        %v4833 = vmul.f32 %v4828, %v4832
        %v4834 = vadd.f32 1.0, %v4833
        %v4835 = vmul.f32 %v4826, %v4826
        %v4836 = vmul.f32 %v4835, -0.00019511016
        %v4837 = vadd.f32 %v4836, 0.008332121
        %v4838 = vmul.f32 %v4835, %v4837
        %v4839 = vadd.f32 %v4838, -0.16666654
        %v4840 = vmul.f32 %v4835, %v4839
        %v4841 = vadd.f32 %v4840, 1.0
        %v4842 = vmul.f32 %v4841, %v4826
        %vm4843 = vweird.f32 %v372
        %v4844 = vadd.s32 %v4827, 3
        %v4845 = vand.u32 %v4844, 3
        %vm4846 = vcmp.lt.s32.totalorder %v4845, 2
        %vm4847 = vcmp.eq.s32.totalorder %v4845, 0
        %v4848 = vxor.u32 %v4842, 2147483648
        %v4849 = vsel %vm4847, %v4834, %v4848
        %vm4850 = vcmp.eq.s32.totalorder %v4845, 2
        %v4851 = vxor.u32 %v4834, 2147483648
        %v4852 = vsel %vm4850, %v4851, %v4842
        %v4853 = vsel %vm4846, %v4849, %v4852
        %v4854 = vsel %vm4843, nan, %v4853
        %v4855 = vand.u32 2147483647, %v373
        %vm4856 = vcmp.le.f32.partialorder %v4855, 0.7853982
        %vm4857 = vcmp.lt.s32.totalorder %v373, 0
        %v4858 = vand.u32 %v373, 2139095040
        %v4859 = vshrl.u32 %v4858, 23
        %v4860 = vsub.s32 %v4859, 127
        %v4861 = vand.u32 2147483647, %v373
        %v4862 = vand.u32 %v4861, 8388607
        %v4863 = vor.u32 %v4862, 8388608
        %v4864 = vsub.s32 0, %v4863
        %v4865 = vadd.s32 %v4860, 1
        %vm4866 = vcmp.gt.s32.totalorder %v4865, 0
        %v4867 = vsel %vm4866, %v4865, 0
        %v4868 = vshrl.u32 %v4867, 5
        %v4869 = vand.u32 %v4867, 31
        %v4870 = vsub.s32 32, %v4869
        %v4871 = vshrl.u32 683565275, %v4870
        %v4872 = vshll.u32 683565275, %v4869
        %v4873 = vshrl.u32 2475754826, %v4870
        %v4874 = vor.u32 %v4872, %v4873
        %v4875 = vshll.u32 2475754826, %v4869
        %v4876 = vshrl.u32 2131351028, %v4870
        %v4877 = vor.u32 %v4875, %v4876
        %v4878 = vshll.u32 2131351028, %v4869
        %v4879 = vshrl.u32 2102212464, %v4870
        %v4880 = vor.u32 %v4878, %v4879
        %v4881 = vshll.u32 2102212464, %v4869
        %v4882 = vshrl.u32 920167782, %v4870
        %v4883 = vor.u32 %v4881, %v4882
        %v4884 = vshll.u32 920167782, %v4869
        %v4885 = vshrl.u32 1326507024, %v4870
        %v4886 = vor.u32 %v4884, %v4885
        %vm4887 = vcmp.lt.s32.totalorder %v4868, 1
        %vm4888 = vcmp.lt.s32.totalorder %v4868, 2
        %vm4889 = vcmp.lt.s32.totalorder %v4868, 3
        %vm4890 = vcmp.lt.s32.totalorder %v4868, 4
        %v4891 = vsel %vm4887, %v4871, %v4874
        %v4892 = vsel %vm4890, %v4880, 2102212464
        %v4893 = vsel %vm4889, %v4877, %v4892
        %v4894 = vsel %vm4888, %v4891, %v4893
        %v4895 = vsel %vm4887, %v4874, %v4877
        %v4896 = vsel %vm4890, %v4883, 920167782
        %v4897 = vsel %vm4889, %v4880, %v4896
        %v4898 = vsel %vm4888, %v4895, %v4897
        %v4899 = vsel %vm4887, %v4877, %v4880
        %v4900 = vsel %vm4890, %v4886, 1326507024
        %v4901 = vsel %vm4889, %v4883, %v4900
        %v4902 = vsel %vm4888, %v4899, %v4901
        %v4903 = vshll.u32 %v4863, 8
        %v4904 = vand.u32 %v4903, 65535
        %v4905 = vshrl.u32 %v4903, 16
        %v4906 = vand.u32 %v4902, 65535
        %v4907 = vshrl.u32 %v4902, 16
        %v4908 = vmul.u32 %v4904, %v4906
        %v4909 = vmul.u32 %v4904, %v4907
        %v4910 = vmul.u32 %v4905, %v4906
        %v4911 = vmul.u32 %v4905, %v4907
        %v4912 = vshll.u32 %v4909, 16
        %v4913 = vshrl.u32 %v4909, 16
        %v4914 = vshll.u32 %v4910, 16
        %v4915 = vshrl.u32 %v4910, 16
        %vm4916 = vc.u32 %v4908, %v4912
        %v4917 = vsel %vm4916, 1, 0
        %v4918 = vadd.s32 %v4908, %v4912
        %v4919 = vadd.s32 %v4911, %v4917
        %vm4920 = vc.u32 %v4918, %v4914
        %v4921 = vsel %vm4920, 1, 0
        %v4922 = vadd.s32 %v4918, %v4914
        %v4923 = vadd.s32 %v4919, %v4921
        %v4924 = vadd.s32 %v4923, %v4913
        %v4925 = vadd.s32 %v4924, %v4915
        %v4926 = vand.u32 %v4903, 65535
        %v4927 = vshrl.u32 %v4903, 16
        %v4928 = vand.u32 %v4898, 65535
        %v4929 = vshrl.u32 %v4898, 16
        %v4930 = vmul.u32 %v4926, %v4928
        %v4931 = vmul.u32 %v4926, %v4929
        %v4932 = vmul.u32 %v4927, %v4928
        %v4933 = vmul.u32 %v4927, %v4929
        %v4934 = vshll.u32 %v4931, 16
        %v4935 = vshrl.u32 %v4931, 16
        %v4936 = vshll.u32 %v4932, 16
        %v4937 = vshrl.u32 %v4932, 16
        %vm4938 = vc.u32 %v4930, %v4934
        %v4939 = vsel %vm4938, 1, 0
        %v4940 = vadd.s32 %v4930, %v4934
        %v4941 = vadd.s32 %v4933, %v4939
        %vm4942 = vc.u32 %v4940, %v4936
        %v4943 = vsel %vm4942, 1, 0
        %v4944 = vadd.s32 %v4940, %v4936
        %v4945 = vadd.s32 %v4941, %v4943
        %v4946 = vadd.s32 %v4945, %v4935
        %v4947 = vadd.s32 %v4946, %v4937
        %v4948 = vmul.u32 %v4903, %v4894
        %v4949 = vadd.s32 %v4925, %v4944
        %vm4950 = vc.u32 %v4925, %v4944
        %v4951 = vadd.s32 %v4947, 1
        %v4952 = vsel %vm4950, %v4951, %v4947
        %v4953 = vadd.s32 %v4948, %v4952
        %v4954 = vadd.s32 %v4953, 536870912
        %v4955 = vshrl.u32 %v4954, 30
        %v4956 = vshll.u32 %v4955, 30
        %v4957 = vsub.s32 %v4953, %v4956
        %vm4958 = vcmp.lt.s32.totalorder %v4957, 0
        %v4959 = vsub.s32 0, %v4957
        %v4960 = vsel %vm4958, %v4959, %v4957
        %v4961 = vclz %v4960
        %v4962 = vsub.s32 %v4961, 2
        %vm4963 = vcmp.gt.s32.totalorder 0, %v4962
        %v4964 = vsel %vm4963, 0, %v4962
        %v4965 = vsub.s32 32, %v4964
        %v4966 = vshll.u32 %v4957, %v4964
        %v4967 = vshrl.u32 %v4949, %v4965
        %v4968 = vor.u32 %v4966, %v4967
        %v4969 = vsub.s32 4294967266, %v4964
        %v4970 = vadd.s32 %v4969, 127
        %v4971 = vshll.u32 %v4970, 23
        %v4972 = vor.u32 4788187, %v4971
        %v4973 = vand.u32 2147483647, %v4972
        %v4975 = vcvt.s32.f32 %v4968
        %v4976 = vmul.f32 %v4975, %v4973
        %v4977 = vxor.u32 %v4976, 2147483648
        %v4978 = vsel %vm4857, %v4977, %v4976
        %v4979 = vsub.s32 4, %v4955
        %v4980 = vsel %vm4857, %v4979, %v4955
        %v4981 = vsel %vm4856, %v373, %v4978
        %v4982 = vsel %vm4856, 0, %v4980
        %v4983 = vmul.f32 %v4981, %v4981
        %v4984 = vmul.f32 %v4983, -0.001358992
        %v4985 = vadd.f32 %v4984, 0.041655596
        %v4986 = vmul.f32 %v4983, %v4985
        %v4987 = vadd.f32 %v4986, -0.4999988
        %v4988 = vmul.f32 %v4983, %v4987
        %v4989 = vadd.f32 1.0, %v4988
        %v4990 = vmul.f32 %v4981, %v4981
        %v4991 = vmul.f32 %v4990, -0.00019511016
        %v4992 = vadd.f32 %v4991, 0.008332121
        %v4993 = vmul.f32 %v4990, %v4992
        %v4994 = vadd.f32 %v4993, -0.16666654
        %v4995 = vmul.f32 %v4990, %v4994
        %v4996 = vadd.f32 %v4995, 1.0
        %v4997 = vmul.f32 %v4996, %v4981
        %vm4998 = vweird.f32 %v373
        %v4999 = vadd.s32 %v4982, 3
        %v5000 = vand.u32 %v4999, 3
        %vm5001 = vcmp.lt.s32.totalorder %v5000, 2
        %vm5002 = vcmp.eq.s32.totalorder %v5000, 0
        %v5003 = vxor.u32 %v4997, 2147483648
        %v5004 = vsel %vm5002, %v4989, %v5003
        %vm5005 = vcmp.eq.s32.totalorder %v5000, 2
        %v5006 = vxor.u32 %v4989, 2147483648
        %v5007 = vsel %vm5005, %v5006, %v4997
        %v5008 = vsel %vm5001, %v5004, %v5007
        %v5009 = vsel %vm4998, nan, %v5008
        %v5010 = vand.u32 2147483647, %v374
        %vm5011 = vcmp.le.f32.partialorder %v5010, 0.7853982
        %vm5012 = vcmp.lt.s32.totalorder %v374, 0
        %v5013 = vand.u32 %v374, 2139095040
        %v5014 = vshrl.u32 %v5013, 23
        %v5015 = vsub.s32 %v5014, 127
        %v5016 = vand.u32 2147483647, %v374
        %v5017 = vand.u32 %v5016, 8388607
        %v5018 = vor.u32 %v5017, 8388608
        %v5019 = vsub.s32 0, %v5018
        %v5020 = vadd.s32 %v5015, 1
        %vm5021 = vcmp.gt.s32.totalorder %v5020, 0
        %v5022 = vsel %vm5021, %v5020, 0
        %v5023 = vshrl.u32 %v5022, 5
        %v5024 = vand.u32 %v5022, 31
        %v5025 = vsub.s32 32, %v5024
        %v5026 = vshrl.u32 683565275, %v5025
        %v5027 = vshll.u32 683565275, %v5024
        %v5028 = vshrl.u32 2475754826, %v5025
        %v5029 = vor.u32 %v5027, %v5028
        %v5030 = vshll.u32 2475754826, %v5024
        %v5031 = vshrl.u32 2131351028, %v5025
        %v5032 = vor.u32 %v5030, %v5031
        %v5033 = vshll.u32 2131351028, %v5024
        %v5034 = vshrl.u32 2102212464, %v5025
        %v5035 = vor.u32 %v5033, %v5034
        %v5036 = vshll.u32 2102212464, %v5024
        %v5037 = vshrl.u32 920167782, %v5025
        %v5038 = vor.u32 %v5036, %v5037
        %v5039 = vshll.u32 920167782, %v5024
        %v5040 = vshrl.u32 1326507024, %v5025
        %v5041 = vor.u32 %v5039, %v5040
        %vm5042 = vcmp.lt.s32.totalorder %v5023, 1
        %vm5043 = vcmp.lt.s32.totalorder %v5023, 2
        %vm5044 = vcmp.lt.s32.totalorder %v5023, 3
        %vm5045 = vcmp.lt.s32.totalorder %v5023, 4
        %v5046 = vsel %vm5042, %v5026, %v5029
        %v5047 = vsel %vm5045, %v5035, 2102212464
        %v5048 = vsel %vm5044, %v5032, %v5047
        %v5049 = vsel %vm5043, %v5046, %v5048
        %v5050 = vsel %vm5042, %v5029, %v5032
        %v5051 = vsel %vm5045, %v5038, 920167782
        %v5052 = vsel %vm5044, %v5035, %v5051
        %v5053 = vsel %vm5043, %v5050, %v5052
        %v5054 = vsel %vm5042, %v5032, %v5035
        %v5055 = vsel %vm5045, %v5041, 1326507024
        %v5056 = vsel %vm5044, %v5038, %v5055
        %v5057 = vsel %vm5043, %v5054, %v5056
        %v5058 = vshll.u32 %v5018, 8
        %v5059 = vand.u32 %v5058, 65535
        %v5060 = vshrl.u32 %v5058, 16
        %v5061 = vand.u32 %v5057, 65535
        %v5062 = vshrl.u32 %v5057, 16
        %v5063 = vmul.u32 %v5059, %v5061
        %v5064 = vmul.u32 %v5059, %v5062
        %v5065 = vmul.u32 %v5060, %v5061
        %v5066 = vmul.u32 %v5060, %v5062
        %v5067 = vshll.u32 %v5064, 16
        %v5068 = vshrl.u32 %v5064, 16
        %v5069 = vshll.u32 %v5065, 16
        %v5070 = vshrl.u32 %v5065, 16
        %vm5071 = vc.u32 %v5063, %v5067
        %v5072 = vsel %vm5071, 1, 0
        %v5073 = vadd.s32 %v5063, %v5067
        %v5074 = vadd.s32 %v5066, %v5072
        %vm5075 = vc.u32 %v5073, %v5069
        %v5076 = vsel %vm5075, 1, 0
        %v5077 = vadd.s32 %v5073, %v5069
        %v5078 = vadd.s32 %v5074, %v5076
        %v5079 = vadd.s32 %v5078, %v5068
        %v5080 = vadd.s32 %v5079, %v5070
        %v5081 = vand.u32 %v5058, 65535
        %v5082 = vshrl.u32 %v5058, 16
        %v5083 = vand.u32 %v5053, 65535
        %v5084 = vshrl.u32 %v5053, 16
        %v5085 = vmul.u32 %v5081, %v5083
        %v5086 = vmul.u32 %v5081, %v5084
        %v5087 = vmul.u32 %v5082, %v5083
        %v5088 = vmul.u32 %v5082, %v5084
        %v5089 = vshll.u32 %v5086, 16
        %v5090 = vshrl.u32 %v5086, 16
        %v5091 = vshll.u32 %v5087, 16
        %v5092 = vshrl.u32 %v5087, 16
        %vm5093 = vc.u32 %v5085, %v5089
        %v5094 = vsel %vm5093, 1, 0
        %v5095 = vadd.s32 %v5085, %v5089
        %v5096 = vadd.s32 %v5088, %v5094
        %vm5097 = vc.u32 %v5095, %v5091
        %v5098 = vsel %vm5097, 1, 0
        %v5099 = vadd.s32 %v5095, %v5091
        %v5100 = vadd.s32 %v5096, %v5098
        %v5101 = vadd.s32 %v5100, %v5090
        %v5102 = vadd.s32 %v5101, %v5092
        %v5103 = vmul.u32 %v5058, %v5049
        %v5104 = vadd.s32 %v5080, %v5099
        %vm5105 = vc.u32 %v5080, %v5099
        %v5106 = vadd.s32 %v5102, 1
        %v5107 = vsel %vm5105, %v5106, %v5102
        %v5108 = vadd.s32 %v5103, %v5107
        %v5109 = vadd.s32 %v5108, 536870912
        %v5110 = vshrl.u32 %v5109, 30
        %v5111 = vshll.u32 %v5110, 30
        %v5112 = vsub.s32 %v5108, %v5111
        %vm5113 = vcmp.lt.s32.totalorder %v5112, 0
        %v5114 = vsub.s32 0, %v5112
        %v5115 = vsel %vm5113, %v5114, %v5112
        %v5116 = vclz %v5115
        %v5117 = vsub.s32 %v5116, 2
        %vm5118 = vcmp.gt.s32.totalorder 0, %v5117
        %v5119 = vsel %vm5118, 0, %v5117
        %v5120 = vsub.s32 32, %v5119
        %v5121 = vshll.u32 %v5112, %v5119
        %v5122 = vshrl.u32 %v5104, %v5120
        %v5123 = vor.u32 %v5121, %v5122
        %v5124 = vsub.s32 4294967266, %v5119
        %v5125 = vadd.s32 %v5124, 127
        %v5126 = vshll.u32 %v5125, 23
        %v5127 = vor.u32 4788187, %v5126
        %v5128 = vand.u32 2147483647, %v5127
        %v5130 = vcvt.s32.f32 %v5123
        %v5131 = vmul.f32 %v5130, %v5128
        %v5132 = vxor.u32 %v5131, 2147483648
        %v5133 = vsel %vm5012, %v5132, %v5131
        %v5134 = vsub.s32 4, %v5110
        %v5135 = vsel %vm5012, %v5134, %v5110
        %v5136 = vsel %vm5011, %v374, %v5133
        %v5137 = vsel %vm5011, 0, %v5135
        %v5138 = vmul.f32 %v5136, %v5136
        %v5139 = vmul.f32 %v5138, -0.001358992
        %v5140 = vadd.f32 %v5139, 0.041655596
        %v5141 = vmul.f32 %v5138, %v5140
        %v5142 = vadd.f32 %v5141, -0.4999988
        %v5143 = vmul.f32 %v5138, %v5142
        %v5144 = vadd.f32 1.0, %v5143
        %v5145 = vmul.f32 %v5136, %v5136
        %v5146 = vmul.f32 %v5145, -0.00019511016
        %v5147 = vadd.f32 %v5146, 0.008332121
        %v5148 = vmul.f32 %v5145, %v5147
        %v5149 = vadd.f32 %v5148, -0.16666654
        %v5150 = vmul.f32 %v5145, %v5149
        %v5151 = vadd.f32 %v5150, 1.0
        %v5152 = vmul.f32 %v5151, %v5136
        %vm5153 = vweird.f32 %v374
        %v5154 = vadd.s32 %v5137, 3
        %v5155 = vand.u32 %v5154, 3
        %vm5156 = vcmp.lt.s32.totalorder %v5155, 2
        %vm5157 = vcmp.eq.s32.totalorder %v5155, 0
        %v5158 = vxor.u32 %v5152, 2147483648
        %v5159 = vsel %vm5157, %v5144, %v5158
        %vm5160 = vcmp.eq.s32.totalorder %v5155, 2
        %v5161 = vxor.u32 %v5144, 2147483648
        %v5162 = vsel %vm5160, %v5161, %v5152
        %v5163 = vsel %vm5156, %v5159, %v5162
        %v5164 = vsel %vm5153, nan, %v5163
        %v5165 = vand.u32 2147483647, %v375
        %vm5166 = vcmp.le.f32.partialorder %v5165, 0.7853982
        %vm5167 = vcmp.lt.s32.totalorder %v375, 0
        %v5168 = vand.u32 %v375, 2139095040
        %v5169 = vshrl.u32 %v5168, 23
        %v5170 = vsub.s32 %v5169, 127
        %v5171 = vand.u32 2147483647, %v375
        %v5172 = vand.u32 %v5171, 8388607
        %v5173 = vor.u32 %v5172, 8388608
        %v5174 = vsub.s32 0, %v5173
        %v5175 = vadd.s32 %v5170, 1
        %vm5176 = vcmp.gt.s32.totalorder %v5175, 0
        %v5177 = vsel %vm5176, %v5175, 0
        %v5178 = vshrl.u32 %v5177, 5
        %v5179 = vand.u32 %v5177, 31
        %v5180 = vsub.s32 32, %v5179
        %v5181 = vshrl.u32 683565275, %v5180
        %v5182 = vshll.u32 683565275, %v5179
        %v5183 = vshrl.u32 2475754826, %v5180
        %v5184 = vor.u32 %v5182, %v5183
        %v5185 = vshll.u32 2475754826, %v5179
        %v5186 = vshrl.u32 2131351028, %v5180
        %v5187 = vor.u32 %v5185, %v5186
        %v5188 = vshll.u32 2131351028, %v5179
        %v5189 = vshrl.u32 2102212464, %v5180
        %v5190 = vor.u32 %v5188, %v5189
        %v5191 = vshll.u32 2102212464, %v5179
        %v5192 = vshrl.u32 920167782, %v5180
        %v5193 = vor.u32 %v5191, %v5192
        %v5194 = vshll.u32 920167782, %v5179
        %v5195 = vshrl.u32 1326507024, %v5180
        %v5196 = vor.u32 %v5194, %v5195
        %vm5197 = vcmp.lt.s32.totalorder %v5178, 1
        %vm5198 = vcmp.lt.s32.totalorder %v5178, 2
        %vm5199 = vcmp.lt.s32.totalorder %v5178, 3
        %vm5200 = vcmp.lt.s32.totalorder %v5178, 4
        %v5201 = vsel %vm5197, %v5181, %v5184
        %v5202 = vsel %vm5200, %v5190, 2102212464
        %v5203 = vsel %vm5199, %v5187, %v5202
        %v5204 = vsel %vm5198, %v5201, %v5203
        %v5205 = vsel %vm5197, %v5184, %v5187
        %v5206 = vsel %vm5200, %v5193, 920167782
        %v5207 = vsel %vm5199, %v5190, %v5206
        %v5208 = vsel %vm5198, %v5205, %v5207
        %v5209 = vsel %vm5197, %v5187, %v5190
        %v5210 = vsel %vm5200, %v5196, 1326507024
        %v5211 = vsel %vm5199, %v5193, %v5210
        %v5212 = vsel %vm5198, %v5209, %v5211
        %v5213 = vshll.u32 %v5173, 8
        %v5214 = vand.u32 %v5213, 65535
        %v5215 = vshrl.u32 %v5213, 16
        %v5216 = vand.u32 %v5212, 65535
        %v5217 = vshrl.u32 %v5212, 16
        %v5218 = vmul.u32 %v5214, %v5216
        %v5219 = vmul.u32 %v5214, %v5217
        %v5220 = vmul.u32 %v5215, %v5216
        %v5221 = vmul.u32 %v5215, %v5217
        %v5222 = vshll.u32 %v5219, 16
        %v5223 = vshrl.u32 %v5219, 16
        %v5224 = vshll.u32 %v5220, 16
        %v5225 = vshrl.u32 %v5220, 16
        %vm5226 = vc.u32 %v5218, %v5222
        %v5227 = vsel %vm5226, 1, 0
        %v5228 = vadd.s32 %v5218, %v5222
        %v5229 = vadd.s32 %v5221, %v5227
        %vm5230 = vc.u32 %v5228, %v5224
        %v5231 = vsel %vm5230, 1, 0
        %v5232 = vadd.s32 %v5228, %v5224
        %v5233 = vadd.s32 %v5229, %v5231
        %v5234 = vadd.s32 %v5233, %v5223
        %v5235 = vadd.s32 %v5234, %v5225
        %v5236 = vand.u32 %v5213, 65535
        %v5237 = vshrl.u32 %v5213, 16
        %v5238 = vand.u32 %v5208, 65535
        %v5239 = vshrl.u32 %v5208, 16
        %v5240 = vmul.u32 %v5236, %v5238
        %v5241 = vmul.u32 %v5236, %v5239
        %v5242 = vmul.u32 %v5237, %v5238
        %v5243 = vmul.u32 %v5237, %v5239
        %v5244 = vshll.u32 %v5241, 16
        %v5245 = vshrl.u32 %v5241, 16
        %v5246 = vshll.u32 %v5242, 16
        %v5247 = vshrl.u32 %v5242, 16
        %vm5248 = vc.u32 %v5240, %v5244
        %v5249 = vsel %vm5248, 1, 0
        %v5250 = vadd.s32 %v5240, %v5244
        %v5251 = vadd.s32 %v5243, %v5249
        %vm5252 = vc.u32 %v5250, %v5246
        %v5253 = vsel %vm5252, 1, 0
        %v5254 = vadd.s32 %v5250, %v5246
        %v5255 = vadd.s32 %v5251, %v5253
        %v5256 = vadd.s32 %v5255, %v5245
        %v5257 = vadd.s32 %v5256, %v5247
        %v5258 = vmul.u32 %v5213, %v5204
        %v5259 = vadd.s32 %v5235, %v5254
        %vm5260 = vc.u32 %v5235, %v5254
        %v5261 = vadd.s32 %v5257, 1
        %v5262 = vsel %vm5260, %v5261, %v5257
        %v5263 = vadd.s32 %v5258, %v5262
        %v5264 = vadd.s32 %v5263, 536870912
        %v5265 = vshrl.u32 %v5264, 30
        %v5266 = vshll.u32 %v5265, 30
        %v5267 = vsub.s32 %v5263, %v5266
        %vm5268 = vcmp.lt.s32.totalorder %v5267, 0
        %v5269 = vsub.s32 0, %v5267
        %v5270 = vsel %vm5268, %v5269, %v5267
        %v5271 = vclz %v5270
        %v5272 = vsub.s32 %v5271, 2
        %vm5273 = vcmp.gt.s32.totalorder 0, %v5272
        %v5274 = vsel %vm5273, 0, %v5272
        %v5275 = vsub.s32 32, %v5274
        %v5276 = vshll.u32 %v5267, %v5274
        %v5277 = vshrl.u32 %v5259, %v5275
        %v5278 = vor.u32 %v5276, %v5277
        %v5279 = vsub.s32 4294967266, %v5274
        %v5280 = vadd.s32 %v5279, 127
        %v5281 = vshll.u32 %v5280, 23
        %v5282 = vor.u32 4788187, %v5281
        %v5283 = vand.u32 2147483647, %v5282
        %v5285 = vcvt.s32.f32 %v5278
        %v5286 = vmul.f32 %v5285, %v5283
        %v5287 = vxor.u32 %v5286, 2147483648
        %v5288 = vsel %vm5167, %v5287, %v5286
        %v5289 = vsub.s32 4, %v5265
        %v5290 = vsel %vm5167, %v5289, %v5265
        %v5291 = vsel %vm5166, %v375, %v5288
        %v5292 = vsel %vm5166, 0, %v5290
        %v5293 = vmul.f32 %v5291, %v5291
        %v5294 = vmul.f32 %v5293, -0.001358992
        %v5295 = vadd.f32 %v5294, 0.041655596
        %v5296 = vmul.f32 %v5293, %v5295
        %v5297 = vadd.f32 %v5296, -0.4999988
        %v5298 = vmul.f32 %v5293, %v5297
        %v5299 = vadd.f32 1.0, %v5298
        %v5300 = vmul.f32 %v5291, %v5291
        %v5301 = vmul.f32 %v5300, -0.00019511016
        %v5302 = vadd.f32 %v5301, 0.008332121
        %v5303 = vmul.f32 %v5300, %v5302
        %v5304 = vadd.f32 %v5303, -0.16666654
        %v5305 = vmul.f32 %v5300, %v5304
        %v5306 = vadd.f32 %v5305, 1.0
        %v5307 = vmul.f32 %v5306, %v5291
        %vm5308 = vweird.f32 %v375
        %v5309 = vadd.s32 %v5292, 3
        %v5310 = vand.u32 %v5309, 3
        %vm5311 = vcmp.lt.s32.totalorder %v5310, 2
        %vm5312 = vcmp.eq.s32.totalorder %v5310, 0
        %v5313 = vxor.u32 %v5307, 2147483648
        %v5314 = vsel %vm5312, %v5299, %v5313
        %vm5315 = vcmp.eq.s32.totalorder %v5310, 2
        %v5316 = vxor.u32 %v5299, 2147483648
        %v5317 = vsel %vm5315, %v5316, %v5307
        %v5318 = vsel %vm5311, %v5314, %v5317
        %v5319 = vsel %vm5308, nan, %v5318
        %v5320 = vmul.f32 %v280, %v529
        %v5321 = vmul.f32 %v282, %v683
        %v5322 = vmul.f32 %v284, %v837
        %v5323 = vmul.f32 %v286, %v991
        %v5324 = vmul.f32 %v288, %v1145
        %v5325 = vmul.f32 %v290, %v1299
        %v5326 = vmul.f32 %v292, %v1453
        %v5327 = vmul.f32 %v294, %v1607
        %v5328 = vmul.f32 %v296, %v1761
        %v5329 = vmul.f32 %v298, %v1915
        %v5330 = vmul.f32 %v300, %v2069
        %v5331 = vmul.f32 %v302, %v2223
        %v5332 = vmul.f32 %v304, %v2377
        %v5333 = vmul.f32 %v306, %v2531
        %v5334 = vmul.f32 %v308, %v2685
        %v5335 = vmul.f32 %v310, %v2839
        %v5336 = vmul.f32 %v281, %v2994
        %v5337 = vmul.f32 %v283, %v3149
        %v5338 = vmul.f32 %v285, %v3304
        %v5339 = vmul.f32 %v287, %v3459
        %v5340 = vmul.f32 %v289, %v3614
        %v5341 = vmul.f32 %v291, %v3769
        %v5342 = vmul.f32 %v293, %v3924
        %v5343 = vmul.f32 %v295, %v4079
        %v5344 = vmul.f32 %v297, %v4234
        %v5345 = vmul.f32 %v299, %v4389
        %v5346 = vmul.f32 %v301, %v4544
        %v5347 = vmul.f32 %v303, %v4699
        %v5348 = vmul.f32 %v305, %v4854
        %v5349 = vmul.f32 %v307, %v5009
        %v5350 = vmul.f32 %v309, %v5164
        %v5351 = vmul.f32 %v311, %v5319
        %v5352 = vsub.f32 %v5320, %v5336
        %v5353 = vsub.f32 %v5321, %v5337
        %v5354 = vsub.f32 %v5322, %v5338
        %v5355 = vsub.f32 %v5323, %v5339
        %v5356 = vsub.f32 %v5324, %v5340
        %v5357 = vsub.f32 %v5325, %v5341
        %v5358 = vsub.f32 %v5326, %v5342
        %v5359 = vsub.f32 %v5327, %v5343
        %v5360 = vsub.f32 %v5328, %v5344
        %v5361 = vsub.f32 %v5329, %v5345
        %v5362 = vsub.f32 %v5330, %v5346
        %v5363 = vsub.f32 %v5331, %v5347
        %v5364 = vsub.f32 %v5332, %v5348
        %v5365 = vsub.f32 %v5333, %v5349
        %v5366 = vsub.f32 %v5334, %v5350
        %v5367 = vsub.f32 %v5335, %v5351
        %v5368 = vsub.f32 %v5352, %v312
        %v5369 = vsub.f32 %v5353, %v314
        %v5370 = vsub.f32 %v5354, %v316
        %v5371 = vsub.f32 %v5355, %v318
        %v5372 = vsub.f32 %v5356, %v320
        %v5373 = vsub.f32 %v5357, %v322
        %v5374 = vsub.f32 %v5358, %v324
        %v5375 = vsub.f32 %v5359, %v326
        %v5376 = vsub.f32 %v5360, %v328
        %v5377 = vsub.f32 %v5361, %v330
        %v5378 = vsub.f32 %v5362, %v332
        %v5379 = vsub.f32 %v5363, %v334
        %v5380 = vsub.f32 %v5364, %v336
        %v5381 = vsub.f32 %v5365, %v338
        %v5382 = vsub.f32 %v5366, %v340
        %v5383 = vsub.f32 %v5367, %v342
        %v5384 = vmul.f32 %v280, %v2994
        %v5385 = vmul.f32 %v282, %v3149
        %v5386 = vmul.f32 %v284, %v3304
        %v5387 = vmul.f32 %v286, %v3459
        %v5388 = vmul.f32 %v288, %v3614
        %v5389 = vmul.f32 %v290, %v3769
        %v5390 = vmul.f32 %v292, %v3924
        %v5391 = vmul.f32 %v294, %v4079
        %v5392 = vmul.f32 %v296, %v4234
        %v5393 = vmul.f32 %v298, %v4389
        %v5394 = vmul.f32 %v300, %v4544
        %v5395 = vmul.f32 %v302, %v4699
        %v5396 = vmul.f32 %v304, %v4854
        %v5397 = vmul.f32 %v306, %v5009
        %v5398 = vmul.f32 %v308, %v5164
        %v5399 = vmul.f32 %v310, %v5319
        %v5400 = vmul.f32 %v281, %v529
        %v5401 = vmul.f32 %v283, %v683
        %v5402 = vmul.f32 %v285, %v837
        %v5403 = vmul.f32 %v287, %v991
        %v5404 = vmul.f32 %v289, %v1145
        %v5405 = vmul.f32 %v291, %v1299
        %v5406 = vmul.f32 %v293, %v1453
        %v5407 = vmul.f32 %v295, %v1607
        %v5408 = vmul.f32 %v297, %v1761
        %v5409 = vmul.f32 %v299, %v1915
        %v5410 = vmul.f32 %v301, %v2069
        %v5411 = vmul.f32 %v303, %v2223
        %v5412 = vmul.f32 %v305, %v2377
        %v5413 = vmul.f32 %v307, %v2531
        %v5414 = vmul.f32 %v309, %v2685
        %v5415 = vmul.f32 %v311, %v2839
        %v5416 = vadd.f32 %v5384, %v5400
        %v5417 = vadd.f32 %v5385, %v5401
        %v5418 = vadd.f32 %v5386, %v5402
        %v5419 = vadd.f32 %v5387, %v5403
        %v5420 = vadd.f32 %v5388, %v5404
        %v5421 = vadd.f32 %v5389, %v5405
        %v5422 = vadd.f32 %v5390, %v5406
        %v5423 = vadd.f32 %v5391, %v5407
        %v5424 = vadd.f32 %v5392, %v5408
        %v5425 = vadd.f32 %v5393, %v5409
        %v5426 = vadd.f32 %v5394, %v5410
        %v5427 = vadd.f32 %v5395, %v5411
        %v5428 = vadd.f32 %v5396, %v5412
        %v5429 = vadd.f32 %v5397, %v5413
        %v5430 = vadd.f32 %v5398, %v5414
        %v5431 = vadd.f32 %v5399, %v5415
        %v5432 = vsub.f32 %v5416, %v313
        %v5433 = vsub.f32 %v5417, %v315
        %v5434 = vsub.f32 %v5418, %v317
        %v5435 = vsub.f32 %v5419, %v319
        %v5436 = vsub.f32 %v5420, %v321
        %v5437 = vsub.f32 %v5421, %v323
        %v5438 = vsub.f32 %v5422, %v325
        %v5439 = vsub.f32 %v5423, %v327
        %v5440 = vsub.f32 %v5424, %v329
        %v5441 = vsub.f32 %v5425, %v331
        %v5442 = vsub.f32 %v5426, %v333
        %v5443 = vsub.f32 %v5427, %v335
        %v5444 = vsub.f32 %v5428, %v337
        %v5445 = vsub.f32 %v5429, %v339
        %v5446 = vsub.f32 %v5430, %v341
        %v5447 = vsub.f32 %v5431, %v343
        %v5448 = vmul.f32 %v5368, %v5368
        %v5449 = vmul.f32 %v5369, %v5369
        %v5450 = vmul.f32 %v5370, %v5370
        %v5451 = vmul.f32 %v5371, %v5371
        %v5452 = vmul.f32 %v5372, %v5372
        %v5453 = vmul.f32 %v5373, %v5373
        %v5454 = vmul.f32 %v5374, %v5374
        %v5455 = vmul.f32 %v5375, %v5375
        %v5456 = vmul.f32 %v5376, %v5376
        %v5457 = vmul.f32 %v5377, %v5377
        %v5458 = vmul.f32 %v5378, %v5378
        %v5459 = vmul.f32 %v5379, %v5379
        %v5460 = vmul.f32 %v5380, %v5380
        %v5461 = vmul.f32 %v5381, %v5381
        %v5462 = vmul.f32 %v5382, %v5382
        %v5463 = vmul.f32 %v5383, %v5383
        %v5464 = vmul.f32 %v5432, %v5432
        %v5465 = vmul.f32 %v5433, %v5433
        %v5466 = vmul.f32 %v5434, %v5434
        %v5467 = vmul.f32 %v5435, %v5435
        %v5468 = vmul.f32 %v5436, %v5436
        %v5469 = vmul.f32 %v5437, %v5437
        %v5470 = vmul.f32 %v5438, %v5438
        %v5471 = vmul.f32 %v5439, %v5439
        %v5472 = vmul.f32 %v5440, %v5440
        %v5473 = vmul.f32 %v5441, %v5441
        %v5474 = vmul.f32 %v5442, %v5442
        %v5475 = vmul.f32 %v5443, %v5443
        %v5476 = vmul.f32 %v5444, %v5444
        %v5477 = vmul.f32 %v5445, %v5445
        %v5478 = vmul.f32 %v5446, %v5446
        %v5479 = vmul.f32 %v5447, %v5447
        %v5480 = vadd.f32 %v5448, %v5464
        %v5481 = vadd.f32 %v5449, %v5465
        %v5482 = vadd.f32 %v5450, %v5466
        %v5483 = vadd.f32 %v5451, %v5467
        %v5484 = vadd.f32 %v5452, %v5468
        %v5485 = vadd.f32 %v5453, %v5469
        %v5486 = vadd.f32 %v5454, %v5470
        %v5487 = vadd.f32 %v5455, %v5471
        %v5488 = vadd.f32 %v5456, %v5472
        %v5489 = vadd.f32 %v5457, %v5473
        %v5490 = vadd.f32 %v5458, %v5474
        %v5491 = vadd.f32 %v5459, %v5475
        %v5492 = vadd.f32 %v5460, %v5476
        %v5493 = vadd.f32 %v5461, %v5477
        %v5494 = vadd.f32 %v5462, %v5478
        %v5495 = vadd.f32 %v5463, %v5479
        %v5496 = vrsqrt.pop %v5480
        %v5497 = vmul.f32 %v5496, %v5480
        %v5498 = vmul.f32 %v5497, %v5496
        %v5499 = vmul.f32 0.5, %v5498
        %v5500 = vsub.f32 1.5, %v5499
        %v5501 = vmul.f32 %v5496, %v5500
        %v5502 = vmul.f32 %v5480, %v5501
        %vm5503 = vcmp.eq.f32.partialorder %v5480, inf
        %v5504 = vsel %vm5503, %v5480, %v5502
        %vm5505 = vcmp.eq.f32.partialorder %v5480, 0.0
        %v5506 = vand.u32 %v5480, 2147483648
        %v5507 = vsel %vm5505, %v5506, %v5504
        %v5508 = vrsqrt.pop %v5481
        %v5509 = vmul.f32 %v5508, %v5481
        %v5510 = vmul.f32 %v5509, %v5508
        %v5511 = vmul.f32 0.5, %v5510
        %v5512 = vsub.f32 1.5, %v5511
        %v5513 = vmul.f32 %v5508, %v5512
        %v5514 = vmul.f32 %v5481, %v5513
        %vm5515 = vcmp.eq.f32.partialorder %v5481, inf
        %v5516 = vsel %vm5515, %v5481, %v5514
        %vm5517 = vcmp.eq.f32.partialorder %v5481, 0.0
        %v5518 = vand.u32 %v5481, 2147483648
        %v5519 = vsel %vm5517, %v5518, %v5516
        %v5520 = vrsqrt.pop %v5482
        %v5521 = vmul.f32 %v5520, %v5482
        %v5522 = vmul.f32 %v5521, %v5520
        %v5523 = vmul.f32 0.5, %v5522
        %v5524 = vsub.f32 1.5, %v5523
        %v5525 = vmul.f32 %v5520, %v5524
        %v5526 = vmul.f32 %v5482, %v5525
        %vm5527 = vcmp.eq.f32.partialorder %v5482, inf
        %v5528 = vsel %vm5527, %v5482, %v5526
        %vm5529 = vcmp.eq.f32.partialorder %v5482, 0.0
        %v5530 = vand.u32 %v5482, 2147483648
        %v5531 = vsel %vm5529, %v5530, %v5528
        %v5532 = vrsqrt.pop %v5483
        %v5533 = vmul.f32 %v5532, %v5483
        %v5534 = vmul.f32 %v5533, %v5532
        %v5535 = vmul.f32 0.5, %v5534
        %v5536 = vsub.f32 1.5, %v5535
        %v5537 = vmul.f32 %v5532, %v5536
        %v5538 = vmul.f32 %v5483, %v5537
        %vm5539 = vcmp.eq.f32.partialorder %v5483, inf
        %v5540 = vsel %vm5539, %v5483, %v5538
        %vm5541 = vcmp.eq.f32.partialorder %v5483, 0.0
        %v5542 = vand.u32 %v5483, 2147483648
        %v5543 = vsel %vm5541, %v5542, %v5540
        %v5544 = vrsqrt.pop %v5484
        %v5545 = vmul.f32 %v5544, %v5484
        %v5546 = vmul.f32 %v5545, %v5544
        %v5547 = vmul.f32 0.5, %v5546
        %v5548 = vsub.f32 1.5, %v5547
        %v5549 = vmul.f32 %v5544, %v5548
        %v5550 = vmul.f32 %v5484, %v5549
        %vm5551 = vcmp.eq.f32.partialorder %v5484, inf
        %v5552 = vsel %vm5551, %v5484, %v5550
        %vm5553 = vcmp.eq.f32.partialorder %v5484, 0.0
        %v5554 = vand.u32 %v5484, 2147483648
        %v5555 = vsel %vm5553, %v5554, %v5552
        %v5556 = vrsqrt.pop %v5485
        %v5557 = vmul.f32 %v5556, %v5485
        %v5558 = vmul.f32 %v5557, %v5556
        %v5559 = vmul.f32 0.5, %v5558
        %v5560 = vsub.f32 1.5, %v5559
        %v5561 = vmul.f32 %v5556, %v5560
        %v5562 = vmul.f32 %v5485, %v5561
        %vm5563 = vcmp.eq.f32.partialorder %v5485, inf
        %v5564 = vsel %vm5563, %v5485, %v5562
        %vm5565 = vcmp.eq.f32.partialorder %v5485, 0.0
        %v5566 = vand.u32 %v5485, 2147483648
        %v5567 = vsel %vm5565, %v5566, %v5564
        %v5568 = vrsqrt.pop %v5486
        %v5569 = vmul.f32 %v5568, %v5486
        %v5570 = vmul.f32 %v5569, %v5568
        %v5571 = vmul.f32 0.5, %v5570
        %v5572 = vsub.f32 1.5, %v5571
        %v5573 = vmul.f32 %v5568, %v5572
        %v5574 = vmul.f32 %v5486, %v5573
        %vm5575 = vcmp.eq.f32.partialorder %v5486, inf
        %v5576 = vsel %vm5575, %v5486, %v5574
        %vm5577 = vcmp.eq.f32.partialorder %v5486, 0.0
        %v5578 = vand.u32 %v5486, 2147483648
        %v5579 = vsel %vm5577, %v5578, %v5576
        %v5580 = vrsqrt.pop %v5487
        %v5581 = vmul.f32 %v5580, %v5487
        %v5582 = vmul.f32 %v5581, %v5580
        %v5583 = vmul.f32 0.5, %v5582
        %v5584 = vsub.f32 1.5, %v5583
        %v5585 = vmul.f32 %v5580, %v5584
        %v5586 = vmul.f32 %v5487, %v5585
        %vm5587 = vcmp.eq.f32.partialorder %v5487, inf
        %v5588 = vsel %vm5587, %v5487, %v5586
        %vm5589 = vcmp.eq.f32.partialorder %v5487, 0.0
        %v5590 = vand.u32 %v5487, 2147483648
        %v5591 = vsel %vm5589, %v5590, %v5588
        %v5592 = vrsqrt.pop %v5488
        %v5593 = vmul.f32 %v5592, %v5488
        %v5594 = vmul.f32 %v5593, %v5592
        %v5595 = vmul.f32 0.5, %v5594
        %v5596 = vsub.f32 1.5, %v5595
        %v5597 = vmul.f32 %v5592, %v5596
        %v5598 = vmul.f32 %v5488, %v5597
        %vm5599 = vcmp.eq.f32.partialorder %v5488, inf
        %v5600 = vsel %vm5599, %v5488, %v5598
        %vm5601 = vcmp.eq.f32.partialorder %v5488, 0.0
        %v5602 = vand.u32 %v5488, 2147483648
        %v5603 = vsel %vm5601, %v5602, %v5600
        %v5604 = vrsqrt.pop %v5489
        %v5605 = vmul.f32 %v5604, %v5489
        %v5606 = vmul.f32 %v5605, %v5604
        %v5607 = vmul.f32 0.5, %v5606
        %v5608 = vsub.f32 1.5, %v5607
        %v5609 = vmul.f32 %v5604, %v5608
        %v5610 = vmul.f32 %v5489, %v5609
        %vm5611 = vcmp.eq.f32.partialorder %v5489, inf
        %v5612 = vsel %vm5611, %v5489, %v5610
        %vm5613 = vcmp.eq.f32.partialorder %v5489, 0.0
        %v5614 = vand.u32 %v5489, 2147483648
        %v5615 = vsel %vm5613, %v5614, %v5612
        %v5616 = vrsqrt.pop %v5490
        %v5617 = vmul.f32 %v5616, %v5490
        %v5618 = vmul.f32 %v5617, %v5616
        %v5619 = vmul.f32 0.5, %v5618
        %v5620 = vsub.f32 1.5, %v5619
        %v5621 = vmul.f32 %v5616, %v5620
        %v5622 = vmul.f32 %v5490, %v5621
        %vm5623 = vcmp.eq.f32.partialorder %v5490, inf
        %v5624 = vsel %vm5623, %v5490, %v5622
        %vm5625 = vcmp.eq.f32.partialorder %v5490, 0.0
        %v5626 = vand.u32 %v5490, 2147483648
        %v5627 = vsel %vm5625, %v5626, %v5624
        %v5628 = vrsqrt.pop %v5491
        %v5629 = vmul.f32 %v5628, %v5491
        %v5630 = vmul.f32 %v5629, %v5628
        %v5631 = vmul.f32 0.5, %v5630
        %v5632 = vsub.f32 1.5, %v5631
        %v5633 = vmul.f32 %v5628, %v5632
        %v5634 = vmul.f32 %v5491, %v5633
        %vm5635 = vcmp.eq.f32.partialorder %v5491, inf
        %v5636 = vsel %vm5635, %v5491, %v5634
        %vm5637 = vcmp.eq.f32.partialorder %v5491, 0.0
        %v5638 = vand.u32 %v5491, 2147483648
        %v5639 = vsel %vm5637, %v5638, %v5636
        %v5640 = vrsqrt.pop %v5492
        %v5641 = vmul.f32 %v5640, %v5492
        %v5642 = vmul.f32 %v5641, %v5640
        %v5643 = vmul.f32 0.5, %v5642
        %v5644 = vsub.f32 1.5, %v5643
        %v5645 = vmul.f32 %v5640, %v5644
        %v5646 = vmul.f32 %v5492, %v5645
        %vm5647 = vcmp.eq.f32.partialorder %v5492, inf
        %v5648 = vsel %vm5647, %v5492, %v5646
        %vm5649 = vcmp.eq.f32.partialorder %v5492, 0.0
        %v5650 = vand.u32 %v5492, 2147483648
        %v5651 = vsel %vm5649, %v5650, %v5648
        %v5652 = vrsqrt.pop %v5493
        %v5653 = vmul.f32 %v5652, %v5493
        %v5654 = vmul.f32 %v5653, %v5652
        %v5655 = vmul.f32 0.5, %v5654
        %v5656 = vsub.f32 1.5, %v5655
        %v5657 = vmul.f32 %v5652, %v5656
        %v5658 = vmul.f32 %v5493, %v5657
        %vm5659 = vcmp.eq.f32.partialorder %v5493, inf
        %v5660 = vsel %vm5659, %v5493, %v5658
        %vm5661 = vcmp.eq.f32.partialorder %v5493, 0.0
        %v5662 = vand.u32 %v5493, 2147483648
        %v5663 = vsel %vm5661, %v5662, %v5660
        %v5664 = vrsqrt.pop %v5494
        %v5665 = vmul.f32 %v5664, %v5494
        %v5666 = vmul.f32 %v5665, %v5664
        %v5667 = vmul.f32 0.5, %v5666
        %v5668 = vsub.f32 1.5, %v5667
        %v5669 = vmul.f32 %v5664, %v5668
        %v5670 = vmul.f32 %v5494, %v5669
        %vm5671 = vcmp.eq.f32.partialorder %v5494, inf
        %v5672 = vsel %vm5671, %v5494, %v5670
        %vm5673 = vcmp.eq.f32.partialorder %v5494, 0.0
        %v5674 = vand.u32 %v5494, 2147483648
        %v5675 = vsel %vm5673, %v5674, %v5672
        %v5676 = vrsqrt.pop %v5495
        %v5677 = vmul.f32 %v5676, %v5495
        %v5678 = vmul.f32 %v5677, %v5676
        %v5679 = vmul.f32 0.5, %v5678
        %v5680 = vsub.f32 1.5, %v5679
        %v5681 = vmul.f32 %v5676, %v5680
        %v5682 = vmul.f32 %v5495, %v5681
        %vm5683 = vcmp.eq.f32.partialorder %v5495, inf
        %v5684 = vsel %vm5683, %v5495, %v5682
        %vm5685 = vcmp.eq.f32.partialorder %v5495, 0.0
        %v5686 = vand.u32 %v5495, 2147483648
        %v5687 = vsel %vm5685, %v5686, %v5684
        %5688 = vadd.xlane.f32.xlu0 %v5507
        %v5689 = vpop.xlane.xlu0 %5688
        %5690 = vadd.xlane.f32.xlu0 %v5519
        %v5691 = vpop.xlane.xlu0 %5690
        %5692 = vadd.xlane.f32.xlu0 %v5531
        %v5693 = vpop.xlane.xlu0 %5692
        %5694 = vadd.xlane.f32.xlu0 %v5543
        %v5695 = vpop.xlane.xlu0 %5694
        %5696 = vadd.xlane.f32.xlu0 %v5555
        %v5697 = vpop.xlane.xlu0 %5696
        %5698 = vadd.xlane.f32.xlu0 %v5567
        %v5699 = vpop.xlane.xlu0 %5698
        %5700 = vadd.xlane.f32.xlu0 %v5579
        %v5701 = vpop.xlane.xlu0 %5700
        %5702 = vadd.xlane.f32.xlu0 %v5591
        %v5703 = vpop.xlane.xlu0 %5702
        %5704 = vadd.xlane.f32.xlu0 %v5603
        %v5705 = vpop.xlane.xlu0 %5704
        %5706 = vadd.xlane.f32.xlu0 %v5615
        %v5707 = vpop.xlane.xlu0 %5706
        %5708 = vadd.xlane.f32.xlu0 %v5627
        %v5709 = vpop.xlane.xlu0 %5708
        %5710 = vadd.xlane.f32.xlu0 %v5639
        %v5711 = vpop.xlane.xlu0 %5710
        %5712 = vadd.xlane.f32.xlu0 %v5651
        %v5713 = vpop.xlane.xlu0 %5712
        %5714 = vadd.xlane.f32.xlu0 %v5663
        %v5715 = vpop.xlane.xlu0 %5714
        %5716 = vadd.xlane.f32.xlu0 %v5675
        %v5717 = vpop.xlane.xlu0 %5716
        %5718 = vadd.xlane.f32.xlu0 %v5687
        %v5719 = vpop.xlane.xlu0 %5718
        %v5720 = vsub.f32 12.0, %v5689
        %v5721 = vsub.f32 12.0, %v5691
        %v5722 = vsub.f32 12.0, %v5693
        %v5723 = vsub.f32 12.0, %v5695
        %v5724 = vsub.f32 12.0, %v5697
        %v5725 = vsub.f32 12.0, %v5699
        %v5726 = vsub.f32 12.0, %v5701
        %v5727 = vsub.f32 12.0, %v5703
        %v5728 = vsub.f32 12.0, %v5705
        %v5729 = vsub.f32 12.0, %v5707
        %v5730 = vsub.f32 12.0, %v5709
        %v5731 = vsub.f32 12.0, %v5711
        %v5732 = vsub.f32 12.0, %v5713
        %v5733 = vsub.f32 12.0, %v5715
        %v5734 = vsub.f32 12.0, %v5717
        %v5735 = vsub.f32 12.0, %v5719
        %vm5736 = vcmask 7168
        %5737 = vst.msk [vmem:[%s278] sm:$0xff] %vm5736, %v5720
        %5738 = vst.msk [vmem:[%s278 + $0x8] sm:$0xff] %vm5736, %v5721
        %5739 = vst.msk [vmem:[%s278 + $0x10] sm:$0xff] %vm5736, %v5722
        %5740 = vst.msk [vmem:[%s278 + $0x18] sm:$0xff] %vm5736, %v5723
        %5741 = vst.msk [vmem:[%s278 + $0x20] sm:$0xff] %vm5736, %v5724
        %5742 = vst.msk [vmem:[%s278 + $0x28] sm:$0xff] %vm5736, %v5725
        %5743 = vst.msk [vmem:[%s278 + $0x30] sm:$0xff] %vm5736, %v5726
        %5744 = vst.msk [vmem:[%s278 + $0x38] sm:$0xff] %vm5736, %v5727
        %5745 = vst.msk [vmem:[%s278 + $0x40] sm:$0xff] %vm5736, %v5728
        %5746 = vst.msk [vmem:[%s278 + $0x48] sm:$0xff] %vm5736, %v5729
        %5747 = vst.msk [vmem:[%s278 + $0x50] sm:$0xff] %vm5736, %v5730
        %5748 = vst.msk [vmem:[%s278 + $0x58] sm:$0xff] %vm5736, %v5731
        %5749 = vst.msk [vmem:[%s278 + $0x60] sm:$0xff] %vm5736, %v5732
        %5750 = vst.msk [vmem:[%s278 + $0x68] sm:$0xff] %vm5736, %v5733
        %5751 = vst.msk [vmem:[%s278 + $0x70] sm:$0xff] %vm5736, %v5734
        %5752 = vst.msk [vmem:[%s278 + $0x78] sm:$0xff] %vm5736, %v5735
        %s5753 = smul.u32 16, %s20
        %p5754 = scmp.lt.s32.totalorder %s5753, 127
        %s5755 = scalar_select %p5754, %s5753, 127
        %s5756 = smul.addr %s5755, 8
        %s5757 = scalar_lea.vmem %s3, %s5756
        // Predicated region
        $region45: #{tpu_custom_call.1} parent=31 // pred_check
          %p5758 = pneg %p116
        $region46: #{tpu_custom_call.1} parent=31 // pred_check_branch
          %5760 = sbr.rel (%p5758) target = $region48
        $region47: #{tpu_custom_call.1} parent=31 // pred_region
          %s5761 = smul.u32 16, %s20
        $region48: #{tpu_custom_call.1} parent=31 // pred_fallthru
          _
      $region32: #{tpu_custom_call.1} parent=5 // pred_fallthru
        _
      %p5762 = scmp.le.s32.totalorder 2, %s15
      // Predicated region
      $region49: #{tpu_custom_call.1} parent=5 // pred_check
        %p5763 = pneg %p5762
      $region50: #{tpu_custom_call.1} parent=5 // pred_check_branch
        %5765 = sbr.rel (%p5763) target = $region52
      $region51: #{tpu_custom_call.1} parent=5 // pred_region
        %s5766 = ssub.s32 %s15, 2
        // Predicated region
        $region53: #{tpu_custom_call.1} parent=51 // pred_check
          %p5767 = pneg %p122
        $region54: #{tpu_custom_call.1} parent=51 // pred_check_branch
          %5769 = sbr.rel (%p5767) target = $region56
        $region55: #{tpu_custom_call.1} parent=51 // pred_region
          %s5770 = smul.u32 16, %s21
          %p5771 = scmp.lt.s32.totalorder %s5770, 127
          %s5772 = scalar_select %p5771, %s5770, 127
          %s5773 = smul.addr %s5772, 8
          %s5774 = scalar_lea.vmem %s3, %s5773
        $region56: #{tpu_custom_call.1} parent=51 // pred_fallthru
          _
      $region52: #{tpu_custom_call.1} parent=5 // pred_fallthru
        _
    $region6: #{tpu_custom_call.1} parent=1 // loop_footer
      %s19 = sadd.s32 1, %s15
    $region7: #{tpu_custom_call.1} parent=1 // loop_footer_branch
      %14 = sbr.rel target = $region3
    $region8: #{tpu_custom_call.1} parent=1 // loop_exit
      _
    %5775 = vsyncpa [#allocation3], 1
    %s5776 = scalar_lea.sflag [#allocation3], 1
    %5777 = vsyncpa %s5776, 1
    %5778 = vsyncpa [#allocation5], 1
    %s5779 = scalar_lea.sflag [#allocation5], 1
    %5780 = vsyncpa %s5779, 1

</llo_original>
